<compile_context>
chip_gen: v6e
topology: v6e:2x2x1
jax: 0.10.0
libtpu: 0.0.40
codegen_flags: <defaults>
</compile_context>

<pallas_src>
import numpy as np
import jax
import jax.numpy as jnp
from jax import lax
from jax.experimental import pallas as pl
from jax.experimental.pallas import tpu as pltpu

EPS = 1e-5          # GroupNorm eps (PyTorch default)
NEG_SLOPE = 0.01    # LeakyReLU negative_slope


def _leaky(v):
    return jnp.where(v >= 0, v, v * NEG_SLOPE)


# ---------------------------------------------------------------------------
# Config
# ---------------------------------------------------------------------------
def make_cfg(inChans=32, in_spatial=(4, 8, 4), in_dense_features=(2, 4, 2),
             out_dense_features=(2, 4, 4), conv_out_chans=16,
             kernel_size=3, stride=2, padding=1, groups=8):
    k, s, p = kernel_size, stride, padding
    conv_out = tuple((d + 2 * p - k) // s + 1 for d in in_spatial)
    assert conv_out == tuple(in_dense_features), \
        "in_dense_features must match conv1 output spatial dims"
    assert inChans % groups == 0 and inChans % 2 == 0
    return dict(inChans=inChans, midChans=inChans // 2, groups=groups,
                conv_out_chans=conv_out_chans, ksize=(k, k, k),
                stride=s, pad=p, in_spatial=tuple(in_spatial),
                in_dense=tuple(in_dense_features),
                out_dense=tuple(out_dense_features), conv_out=conv_out,
                F1=conv_out_chans * int(np.prod(conv_out)),
                F2=inChans * int(np.prod(out_dense_features)))


# ---------------------------------------------------------------------------
# Fused Pallas kernel: GroupNorm + LeakyReLU + Conv3d + dense1 + sigmoid +
#                      VDraw + dense2 + LeakyReLU   (one grid step per image)
# ---------------------------------------------------------------------------
def _make_fused_kernel(cfg):
    D, H, W = cfg['in_spatial']
    C = cfg['inChans']
    Do, Ho, Wo = cfg['conv_out']
    Cout = cfg['conv_out_chans']
    MID = cfg['midChans']
    KD, KH, _ = cfg['ksize']
    DH, WC = D * H, W * C
    RO, KO = Do * Ho, Wo * Cout

    def kernel(x_ref, eps_ref, gamma_ref, beta_ref, gmat_ref, gmatT_ref,
               smat_ref, wf_ref, cb_ref, w1_ref, b1_ref, w2_ref, b2_ref,
               distr_ref, out_ref):
        f32 = jnp.float32
        x = x_ref[0]                                             # (DH, WC)

        # ---- GroupNorm (stats per group, affine per channel) + LeakyReLU ----
        inv_n = 1.0 / float(DH)
        lane_mean = jnp.sum(x, axis=0, keepdims=True) * inv_n    # (1, WC)
        lane_msq = jnp.sum(x * x, axis=0, keepdims=True) * inv_n
        g_mean = jnp.dot(lane_mean, gmat_ref[...], preferred_element_type=f32)
        g_msq = jnp.dot(lane_msq, gmat_ref[...], preferred_element_type=f32)
        g_var = g_msq - g_mean * g_mean                          # biased var
        mu = jnp.dot(g_mean, gmatT_ref[...], preferred_element_type=f32)
        var = jnp.dot(g_var, gmatT_ref[...], preferred_element_type=f32)
        scale = lax.rsqrt(var + EPS) * gamma_ref[...]            # (1, WC)
        shift = beta_ref[...] - mu * scale
        y = _leaky(x * scale + shift)                            # (DH, WC)

        # ---- Conv3d (k=3, s=2, p=1): per-(kd,kh) row gather + folded matmul --
        acc = jnp.zeros((RO, KO), f32)
        for t in range(KD * KH):
            gathered = jnp.dot(smat_ref[t], y,                   # (RO, WC)
                               preferred_element_type=f32)
            acc = acc + jnp.dot(gathered, wf_ref[t],             # (RO, KO)
                                preferred_element_type=f32)
        acc = acc + cb_ref[...]                                  # conv bias

        # ---- dense1 (consumes conv rows directly) + sigmoid -----------------
        vd = b1_ref[...]                                         # (1, C)
        for r in range(RO):
            vd = vd + jnp.dot(acc[r:r + 1, :], w1_ref[r],
                              preferred_element_type=f32)
        out_vd = 1.0 / (1.0 + jnp.exp(-vd))                      # sigmoid
        distr_ref[0] = out_vd                                    # (1, C)

        # ---- VDraw: mean + std * eps ----------------------------------------
        z = out_vd[:, :MID] + out_vd[:, MID:2 * MID] * eps_ref[0]  # (1, MID)

        # ---- dense2 + LeakyReLU ----------------------------------------------
        o = jnp.dot(z, w2_ref[...], preferred_element_type=f32) + b2_ref[...]
        out_ref[0] = _leaky(o)                                   # (1, F2)

    return kernel


# ---------------------------------------------------------------------------
# Parameter init (torch-like layouts) and packing into kernel-friendly forms
# ---------------------------------------------------------------------------
def init_params(key, cfg):
    C = cfg['inChans']
    Cout = cfg['conv_out_chans']
    K = cfg['ksize'][0]
    MID = cfg['midChans']
    F1, F2 = cfg['F1'], cfg['F2']
    ks = jax.random.split(key, 8)

    def unif(k, shape, fan_in):
        b = 1.0 / np.sqrt(fan_in)
        return jax.random.uniform(k, shape, jnp.float32, -b, b)

    return {
        'gn_g': 1.0 + 0.1 * jax.random.normal(ks[0], (C,), jnp.float32),
        'gn_b': 0.1 * jax.random.normal(ks[1], (C,), jnp.float32),
        'conv_w': unif(ks[2], (Cout, C, K, K, K), C * K ** 3),   # OIDHW
        'conv_b': unif(ks[3], (Cout,), C * K ** 3),
        'd1_w': unif(ks[4], (C, F1), F1),                        # (out, in)
        'd1_b': unif(ks[5], (C,), F1),
        'd2_w': unif(ks[6], (F2, MID), MID),                     # (out, in)
        'd2_b': unif(ks[7], (F2,), MID),
    }


def pack_params(params, cfg):
    D, H, W = cfg['in_spatial']
    C, G = cfg['inChans'], cfg['groups']
    cg = C // G
    Do, Ho, Wo = cfg['conv_out']
    Cout = cfg['conv_out_chans']
    KD, KH, KW = cfg['ksize']
    s, p = cfg['stride'], cfg['pad']
    MID, F2 = cfg['midChans'], cfg['F2']
    DH, WC = D * H, W * C
    RO, KO = Do * Ho, Wo * Cout

    gn_g = np.asarray(params['gn_g'], np.float32)
    gn_b = np.asarray(params['gn_b'], np.float32)
    conv_w = np.asarray(params['conv_w'], np.float32)
    conv_b = np.asarray(params['conv_b'], np.float32)
    d1_w = np.asarray(params['d1_w'], np.float32)
    d1_b = np.asarray(params['d1_b'], np.float32)
    d2_w = np.asarray(params['d2_w'], np.float32)
    d2_b = np.asarray(params['d2_b'], np.float32)

    # per-lane affine (lane l = w*C + c)
    gamma_lane = np.tile(gn_g, W).reshape(1, WC)
    beta_lane = np.tile(gn_b, W).reshape(1, WC)

    # group membership matrices (lane -> group mean, group -> lane broadcast)
    lane_grp = (np.arange(WC) % C) // cg
    gmat = np.zeros((WC, G), np.float32)
    gmat[np.arange(WC), lane_grp] = 1.0 / (W * cg)
    gmatT = np.zeros((G, WC), np.float32)
    gmatT[lane_grp, np.arange(WC)] = 1.0

    # per-(kd,kh) row-selection matrices (zero rows implement D/H padding)
    smat = np.zeros((KD * KH, RO, DH), np.float32)
    for kd in range(KD):
        for kh in range(KH):
            t = kd * KH + kh
            for do in range(Do):
                idd = s * do + kd - p
                if idd < 0 or idd >= D:
                    continue
                for ho in range(Ho):
                    ih = s * ho + kh - p
                    if ih < 0 or ih >= H:
                        continue
                    smat[t, do * Ho + ho, idd * H + ih] = 1.0

    # conv weights with (kw, cin, W-stride, W-padding) folded into (WC -> KO)
    wfold = np.zeros((KD * KH, WC, KO), np.float32)
    for kd in range(KD):
        for kh in range(KH):
            t = kd * KH + kh
            for kw in range(KW):
                for wo in range(Wo):
                    win = s * wo + kw - p
                    if win < 0 or win >= W:
                        continue
                    wfold[t, win * C:(win + 1) * C,
                          wo * Cout:(wo + 1) * Cout] += conv_w[:, :, kd, kh, kw].T
    cb_lane = np.tile(conv_b, Wo).reshape(1, KO)

    # dense1 weight repacked to the (do*Ho+ho, wo*Cout+cout) conv-row layout
    w1p = d1_w.reshape(C, Cout, Do, Ho, Wo).transpose(2, 3, 4, 1, 0)
    w1p = np.ascontiguousarray(w1p).reshape(RO, KO, C)
    b1 = d1_b.reshape(1, C)

    w2p = np.ascontiguousarray(d2_w.T)                # (MID, F2)
    b2 = d2_b.reshape(1, F2)

    to = lambda a: jnp.asarray(a, jnp.float32)
    return dict(gamma=to(gamma_lane), beta=to(beta_lane), gmat=to(gmat),
                gmatT=to(gmatT), smat=to(smat), wfold=to(wfold),
                cb=to(cb_lane), w1=to(w1p), b1=to(b1), w2=to(w2p), b2=to(b2))


# ---------------------------------------------------------------------------
# Forward wrapper (one pallas_call for the whole module)
# ---------------------------------------------------------------------------
def vd_resampling_forward(packed, cfg, x, eps):
    N, C, D, H, W = x.shape
    assert (D, H, W) == cfg['in_spatial'] and C == cfg['inChans']
    G, MID, F2 = cfg['groups'], cfg['midChans'], cfg['F2']
    Do, Ho, Wo = cfg['conv_out']
    Cout = cfg['conv_out_chans']
    KD, KH, _ = cfg['ksize']
    DH, WC = D * H, W * C
    RO, KO = Do * Ho, Wo * Cout
    od, oh, ow = cfg['out_dense']

    # NCDHW -> lane-dense (N, D*H, W*C); eps -> (N, 1, MID)
    xf = jnp.transpose(x, (0, 2, 3, 4, 1)).reshape(N, DH, WC).astype(jnp.float32)
    eps3 = eps.reshape(N, 1, MID).astype(jnp.float32)

    def full(shape):
        return pl.BlockSpec(shape, lambda n, _s=len(shape): (0,) * _s)

    distr3, out3 = pl.pallas_call(
        _make_fused_kernel(cfg),
        out_shape=(jax.ShapeDtypeStruct((N, 1, C), jnp.float32),
                   jax.ShapeDtypeStruct((N, 1, F2), jnp.float32)),
        grid=(N,),
        in_specs=[
            pl.BlockSpec((1, DH, WC), lambda n: (n, 0, 0)),
            pl.BlockSpec((1, 1, MID), lambda n: (n, 0, 0)),
            full((1, WC)), full((1, WC)),
            full((WC, G)), full((G, WC)),
            full((KD * KH, RO, DH)), full((KD * KH, WC, KO)),
            full((1, KO)),
            full((RO, KO, C)), full((1, C)),
            full((MID, F2)), full((1, F2)),
        ],
        out_specs=(pl.BlockSpec((1, 1, C), lambda n: (n, 0, 0)),
                   pl.BlockSpec((1, 1, F2), lambda n: (n, 0, 0))),
        compiler_params=pltpu.CompilerParams(
            dimension_semantics=("parallel",)),
    )(xf, eps3, packed['gamma'], packed['beta'], packed['gmat'],
      packed['gmatT'], packed['smat'], packed['wfold'], packed['cb'],
      packed['w1'], packed['b1'], packed['w2'], packed['b2'])

    distr = distr3.reshape(N, C)
    out = out3.reshape(N, C, od, oh, ow)      # matches torch .view order
    return out, distr


# ---------------------------------------------------------------------------
# Pure-JAX reference (numerical verification only)
# ---------------------------------------------------------------------------
def reference_forward(params, cfg, x, eps):
    C, G, MID = cfg['inChans'], cfg['groups'], cfg['midChans']
    od, oh, ow = cfg['out_dense']
    N = x.shape[0]
    x = x.astype(jnp.float32)

    xg = x.reshape(N, G, -1)
    mean = jnp.mean(xg, axis=2, keepdims=True)
    var = jnp.mean((xg - mean) ** 2, axis=2, keepdims=True)
    xn = ((xg - mean) * lax.rsqrt(var + EPS)).reshape(x.shape)
    out = xn * params['gn_g'].reshape(1, C, 1, 1, 1) \
             + params['gn_b'].reshape(1, C, 1, 1, 1)
    out = _leaky(out)

    out = lax.conv_general_dilated(
        out, params['conv_w'], window_strides=(2, 2, 2),
        padding=((1, 1), (1, 1), (1, 1)),
        dimension_numbers=('NCDHW', 'OIDHW', 'NCDHW'))
    out = out + params['conv_b'].reshape(1, -1, 1, 1, 1)

    flat = out.reshape(N, -1)
    vd = flat @ params['d1_w'].T + params['d1_b']
    vd = jax.nn.sigmoid(vd)
    distr = vd
    z = vd[:, :MID] + vd[:, MID:] * eps
    o = z @ params['d2_w'].T + params['d2_b']
    o = _leaky(o)
    return o.reshape(N, C, od, oh, ow), distr


# ---------------------------------------------------------------------------
if __name__ == "__main__":
    key = jax.random.PRNGKey(0)
    kx, kp, ke = jax.random.split(key, 3)

    cfg = make_cfg(inChans=32, in_spatial=(4, 8, 4),
                   in_dense_features=(2, 4, 2), out_dense_features=(2, 4, 4))
    N = 2
    D, H, W = cfg['in_spatial']

    x = jax.random.normal(kx, (N, cfg['inChans'], D, H, W), jnp.float32)
    eps = jax.random.normal(ke, (N, cfg['midChans']), jnp.float32)

    params = init_params(kp, cfg)
    packed = pack_params(params, cfg)

    out, distr = vd_resampling_forward(packed, cfg, x, eps)
    out, distr = jax.block_until_ready((out, distr))

    ref_out, ref_distr = jax.block_until_ready(
        reference_forward(params, cfg, x, eps))

    assert out.shape == (N, cfg['inChans'], *cfg['out_dense'])
    assert distr.shape == (N, cfg['inChans'])
    np.testing.assert_allclose(np.asarray(distr), np.asarray(ref_distr),
                               rtol=2e-3, atol=2e-3)
    np.testing.assert_allclose(np.asarray(out), np.asarray(ref_out),
                               rtol=2e-3, atol=2e-3)

    print("KERNEL_OK")
</pallas_src>

<mosaic_0001>
module attributes {stable_mosaic.version = 11 : i64} {
  func.func @kernel(%arg0: i32, %arg1: memref<1x32x128xf32, #tpu.memory_space<vmem>>, %arg2: memref<1x1x16xf32, #tpu.memory_space<vmem>>, %arg3: memref<1x128xf32, #tpu.memory_space<vmem>>, %arg4: memref<1x128xf32, #tpu.memory_space<vmem>>, %arg5: memref<128x8xf32, #tpu.memory_space<vmem>>, %arg6: memref<8x128xf32, #tpu.memory_space<vmem>>, %arg7: memref<9x8x32xf32, #tpu.memory_space<vmem>>, %arg8: memref<9x128x32xf32, #tpu.memory_space<vmem>>, %arg9: memref<1x32xf32, #tpu.memory_space<vmem>>, %arg10: memref<8x32x32xf32, #tpu.memory_space<vmem>>, %arg11: memref<1x32xf32, #tpu.memory_space<vmem>>, %arg12: memref<16x1024xf32, #tpu.memory_space<vmem>>, %arg13: memref<1x1024xf32, #tpu.memory_space<vmem>>, %arg14: memref<1x1x32xf32, #tpu.memory_space<vmem>>, %arg15: memref<1x1x1024xf32, #tpu.memory_space<vmem>>) attributes {dimension_semantics = [#tpu.dimension_semantics<parallel>], iteration_bounds = array<i64: 2>, scalar_prefetch = 0 : i64, scratch_operands = 0 : i64, tpu.core_type = #tpu.core_type<tc>, window_params = [{transform_indices = @transform_0, window_bounds = array<i64: 1, 32, 128>}, {transform_indices = @transform_1, window_bounds = array<i64: 1, 1, 16>}, {pipeline_mode = #tpu.pipeline_mode<synchronous>, transform_indices = @transform_2, window_bounds = array<i64: 1, 128>}, {pipeline_mode = #tpu.pipeline_mode<synchronous>, transform_indices = @transform_3, window_bounds = array<i64: 1, 128>}, {pipeline_mode = #tpu.pipeline_mode<synchronous>, transform_indices = @transform_4, window_bounds = array<i64: 128, 8>}, {pipeline_mode = #tpu.pipeline_mode<synchronous>, transform_indices = @transform_5, window_bounds = array<i64: 8, 128>}, {pipeline_mode = #tpu.pipeline_mode<synchronous>, transform_indices = @transform_6, window_bounds = array<i64: 9, 8, 32>}, {pipeline_mode = #tpu.pipeline_mode<synchronous>, transform_indices = @transform_7, window_bounds = array<i64: 9, 128, 32>}, {pipeline_mode = #tpu.pipeline_mode<synchronous>, transform_indices = @transform_8, window_bounds = array<i64: 1, 32>}, {pipeline_mode = #tpu.pipeline_mode<synchronous>, transform_indices = @transform_9, window_bounds = array<i64: 8, 32, 32>}, {pipeline_mode = #tpu.pipeline_mode<synchronous>, transform_indices = @transform_10, window_bounds = array<i64: 1, 32>}, {pipeline_mode = #tpu.pipeline_mode<synchronous>, transform_indices = @transform_11, window_bounds = array<i64: 16, 1024>}, {pipeline_mode = #tpu.pipeline_mode<synchronous>, transform_indices = @transform_12, window_bounds = array<i64: 1, 1024>}, {transform_indices = @transform_13, window_bounds = array<i64: 1, 1, 32>}, {transform_indices = @transform_14, window_bounds = array<i64: 1, 1, 1024>}]} {
    %c0 = arith.constant 0 : index
    %c0_0 = arith.constant 0 : index
    %c0_1 = arith.constant 0 : index
    %0 = vector.load %arg1[%c0, %c0_0, %c0_1] : memref<1x32x128xf32, #tpu.memory_space<vmem>>, vector<1x32x128xf32>
    %1 = vector.shape_cast %0 : vector<1x32x128xf32> to vector<32x128xf32>
    %cst = arith.constant dense<0.000000e+00> : vector<128xf32>
    %2 = vector.multi_reduction <add>, %1, %cst [0] : vector<32x128xf32> to vector<128xf32>
    %3 = vector.shape_cast %2 : vector<128xf32> to vector<1x128xf32>
    %cst_2 = arith.constant 3.125000e-02 : f32
    %4 = vector.broadcast %cst_2 : f32 to vector<1x128xf32>
    %5 = arith.mulf %3, %4 : vector<1x128xf32>
    %6 = arith.mulf %1, %1 : vector<32x128xf32>
    %cst_3 = arith.constant dense<0.000000e+00> : vector<128xf32>
    %7 = vector.multi_reduction <add>, %6, %cst_3 [0] : vector<32x128xf32> to vector<128xf32>
    %8 = vector.shape_cast %7 : vector<128xf32> to vector<1x128xf32>
    %cst_4 = arith.constant 3.125000e-02 : f32
    %9 = vector.broadcast %cst_4 : f32 to vector<1x128xf32>
    %10 = arith.mulf %8, %9 : vector<1x128xf32>
    %c0_5 = arith.constant 0 : index
    %c0_6 = arith.constant 0 : index
    %11 = vector.load %arg5[%c0_5, %c0_6] : memref<128x8xf32, #tpu.memory_space<vmem>>, vector<128x8xf32>
    %cst_7 = arith.constant dense<0.000000e+00> : vector<1x8xf32>
    %12 = tpu.matmul %5, %11, %cst_7 {dimension_numbers = #tpu.dot_dimension_numbers<[1], [0], [0], [1], [0, 0, 1, 1], [], []>} : vector<1x128xf32>, vector<128x8xf32>, vector<1x8xf32> -> vector<1x8xf32>
    %c0_8 = arith.constant 0 : index
    %c0_9 = arith.constant 0 : index
    %13 = vector.load %arg5[%c0_8, %c0_9] : memref<128x8xf32, #tpu.memory_space<vmem>>, vector<128x8xf32>
    %cst_10 = arith.constant dense<0.000000e+00> : vector<1x8xf32>
    %14 = tpu.matmul %10, %13, %cst_10 {dimension_numbers = #tpu.dot_dimension_numbers<[1], [0], [0], [1], [0, 0, 1, 1], [], []>} : vector<1x128xf32>, vector<128x8xf32>, vector<1x8xf32> -> vector<1x8xf32>
    %15 = arith.mulf %12, %12 : vector<1x8xf32>
    %16 = arith.subf %14, %15 : vector<1x8xf32>
    %c0_11 = arith.constant 0 : index
    %c0_12 = arith.constant 0 : index
    %17 = vector.load %arg6[%c0_11, %c0_12] : memref<8x128xf32, #tpu.memory_space<vmem>>, vector<8x128xf32>
    %cst_13 = arith.constant dense<0.000000e+00> : vector<1x128xf32>
    %18 = tpu.matmul %12, %17, %cst_13 {dimension_numbers = #tpu.dot_dimension_numbers<[1], [0], [0], [1], [0, 0, 1, 1], [], []>} : vector<1x8xf32>, vector<8x128xf32>, vector<1x128xf32> -> vector<1x128xf32>
    %c0_14 = arith.constant 0 : index
    %c0_15 = arith.constant 0 : index
    %19 = vector.load %arg6[%c0_14, %c0_15] : memref<8x128xf32, #tpu.memory_space<vmem>>, vector<8x128xf32>
    %cst_16 = arith.constant dense<0.000000e+00> : vector<1x128xf32>
    %20 = tpu.matmul %16, %19, %cst_16 {dimension_numbers = #tpu.dot_dimension_numbers<[1], [0], [0], [1], [0, 0, 1, 1], [], []>} : vector<1x8xf32>, vector<8x128xf32>, vector<1x128xf32> -> vector<1x128xf32>
    %cst_17 = arith.constant 9.99999974E-6 : f32
    %21 = vector.broadcast %cst_17 : f32 to vector<1x128xf32>
    %22 = arith.addf %20, %21 : vector<1x128xf32>
    %23 = math.rsqrt %22 : vector<1x128xf32>
    %c0_18 = arith.constant 0 : index
    %c0_19 = arith.constant 0 : index
    %24 = vector.load %arg3[%c0_18, %c0_19] : memref<1x128xf32, #tpu.memory_space<vmem>>, vector<1x128xf32>
    %25 = arith.mulf %23, %24 : vector<1x128xf32>
    %c0_20 = arith.constant 0 : index
    %c0_21 = arith.constant 0 : index
    %26 = vector.load %arg4[%c0_20, %c0_21] : memref<1x128xf32, #tpu.memory_space<vmem>>, vector<1x128xf32>
    %27 = arith.mulf %18, %25 : vector<1x128xf32>
    %28 = arith.subf %26, %27 : vector<1x128xf32>
    %29 = vector.broadcast %25 : vector<1x128xf32> to vector<32x128xf32>
    %30 = arith.mulf %1, %29 : vector<32x128xf32>
    %31 = vector.broadcast %28 : vector<1x128xf32> to vector<32x128xf32>
    %32 = arith.addf %30, %31 : vector<32x128xf32>
    %cst_22 = arith.constant 0.000000e+00 : f32
    %33 = vector.broadcast %cst_22 : f32 to vector<32x128xf32>
    %34 = arith.cmpf oge, %32, %33 : vector<32x128xf32>
    %cst_23 = arith.constant 0.00999999977 : f32
    %35 = vector.broadcast %cst_23 : f32 to vector<32x128xf32>
    %36 = arith.mulf %32, %35 : vector<32x128xf32>
    %37 = arith.select %34, %32, %36 : vector<32x128xi1>, vector<32x128xf32>
    %cst_24 = arith.constant 0.000000e+00 : f32
    %38 = vector.broadcast %cst_24 : f32 to vector<8x32xf32>
    %c0_25 = arith.constant 0 : index
    %c0_26 = arith.constant 0 : index
    %c0_27 = arith.constant 0 : index
    %39 = vector.load %arg7[%c0_25, %c0_26, %c0_27] : memref<9x8x32xf32, #tpu.memory_space<vmem>>, vector<1x8x32xf32>
    %40 = vector.shape_cast %39 : vector<1x8x32xf32> to vector<8x32xf32>
    %cst_28 = arith.constant dense<0.000000e+00> : vector<8x128xf32>
    %41 = tpu.matmul %40, %37, %cst_28 {dimension_numbers = #tpu.dot_dimension_numbers<[1], [0], [0], [1], [0, 0, 1, 1], [], []>} : vector<8x32xf32>, vector<32x128xf32>, vector<8x128xf32> -> vector<8x128xf32>
    %c0_29 = arith.constant 0 : index
    %c0_30 = arith.constant 0 : index
    %c0_31 = arith.constant 0 : index
    %42 = vector.load %arg8[%c0_29, %c0_30, %c0_31] : memref<9x128x32xf32, #tpu.memory_space<vmem>>, vector<1x128x32xf32>
    %43 = vector.shape_cast %42 : vector<1x128x32xf32> to vector<128x32xf32>
    %cst_32 = arith.constant dense<0.000000e+00> : vector<8x32xf32>
    %44 = tpu.matmul %41, %43, %cst_32 {dimension_numbers = #tpu.dot_dimension_numbers<[1], [0], [0], [1], [0, 0, 1, 1], [], []>} : vector<8x128xf32>, vector<128x32xf32>, vector<8x32xf32> -> vector<8x32xf32>
    %45 = arith.addf %38, %44 : vector<8x32xf32>
    %c1 = arith.constant 1 : index
    %c0_33 = arith.constant 0 : index
    %c0_34 = arith.constant 0 : index
    %46 = vector.load %arg7[%c1, %c0_33, %c0_34] : memref<9x8x32xf32, #tpu.memory_space<vmem>>, vector<1x8x32xf32>
    %47 = vector.shape_cast %46 : vector<1x8x32xf32> to vector<8x32xf32>
    %cst_35 = arith.constant dense<0.000000e+00> : vector<8x128xf32>
    %48 = tpu.matmul %47, %37, %cst_35 {dimension_numbers = #tpu.dot_dimension_numbers<[1], [0], [0], [1], [0, 0, 1, 1], [], []>} : vector<8x32xf32>, vector<32x128xf32>, vector<8x128xf32> -> vector<8x128xf32>
    %c1_36 = arith.constant 1 : index
    %c0_37 = arith.constant 0 : index
    %c0_38 = arith.constant 0 : index
    %49 = vector.load %arg8[%c1_36, %c0_37, %c0_38] : memref<9x128x32xf32, #tpu.memory_space<vmem>>, vector<1x128x32xf32>
    %50 = vector.shape_cast %49 : vector<1x128x32xf32> to vector<128x32xf32>
    %cst_39 = arith.constant dense<0.000000e+00> : vector<8x32xf32>
    %51 = tpu.matmul %48, %50, %cst_39 {dimension_numbers = #tpu.dot_dimension_numbers<[1], [0], [0], [1], [0, 0, 1, 1], [], []>} : vector<8x128xf32>, vector<128x32xf32>, vector<8x32xf32> -> vector<8x32xf32>
    %52 = arith.addf %45, %51 : vector<8x32xf32>
    %c2 = arith.constant 2 : index
    %c0_40 = arith.constant 0 : index
    %c0_41 = arith.constant 0 : index
    %53 = vector.load %arg7[%c2, %c0_40, %c0_41] : memref<9x8x32xf32, #tpu.memory_space<vmem>>, vector<1x8x32xf32>
    %54 = vector.shape_cast %53 : vector<1x8x32xf32> to vector<8x32xf32>
    %cst_42 = arith.constant dense<0.000000e+00> : vector<8x128xf32>
    %55 = tpu.matmul %54, %37, %cst_42 {dimension_numbers = #tpu.dot_dimension_numbers<[1], [0], [0], [1], [0, 0, 1, 1], [], []>} : vector<8x32xf32>, vector<32x128xf32>, vector<8x128xf32> -> vector<8x128xf32>
    %c2_43 = arith.constant 2 : index
    %c0_44 = arith.constant 0 : index
    %c0_45 = arith.constant 0 : index
    %56 = vector.load %arg8[%c2_43, %c0_44, %c0_45] : memref<9x128x32xf32, #tpu.memory_space<vmem>>, vector<1x128x32xf32>
    %57 = vector.shape_cast %56 : vector<1x128x32xf32> to vector<128x32xf32>
    %cst_46 = arith.constant dense<0.000000e+00> : vector<8x32xf32>
    %58 = tpu.matmul %55, %57, %cst_46 {dimension_numbers = #tpu.dot_dimension_numbers<[1], [0], [0], [1], [0, 0, 1, 1], [], []>} : vector<8x128xf32>, vector<128x32xf32>, vector<8x32xf32> -> vector<8x32xf32>
    %59 = arith.addf %52, %58 : vector<8x32xf32>
    %c3 = arith.constant 3 : index
    %c0_47 = arith.constant 0 : index
    %c0_48 = arith.constant 0 : index
    %60 = vector.load %arg7[%c3, %c0_47, %c0_48] : memref<9x8x32xf32, #tpu.memory_space<vmem>>, vector<1x8x32xf32>
    %61 = vector.shape_cast %60 : vector<1x8x32xf32> to vector<8x32xf32>
    %cst_49 = arith.constant dense<0.000000e+00> : vector<8x128xf32>
    %62 = tpu.matmul %61, %37, %cst_49 {dimension_numbers = #tpu.dot_dimension_numbers<[1], [0], [0], [1], [0, 0, 1, 1], [], []>} : vector<8x32xf32>, vector<32x128xf32>, vector<8x128xf32> -> vector<8x128xf32>
    %c3_50 = arith.constant 3 : index
    %c0_51 = arith.constant 0 : index
    %c0_52 = arith.constant 0 : index
    %63 = vector.load %arg8[%c3_50, %c0_51, %c0_52] : memref<9x128x32xf32, #tpu.memory_space<vmem>>, vector<1x128x32xf32>
    %64 = vector.shape_cast %63 : vector<1x128x32xf32> to vector<128x32xf32>
    %cst_53 = arith.constant dense<0.000000e+00> : vector<8x32xf32>
    %65 = tpu.matmul %62, %64, %cst_53 {dimension_numbers = #tpu.dot_dimension_numbers<[1], [0], [0], [1], [0, 0, 1, 1], [], []>} : vector<8x128xf32>, vector<128x32xf32>, vector<8x32xf32> -> vector<8x32xf32>
    %66 = arith.addf %59, %65 : vector<8x32xf32>
    %c4 = arith.constant 4 : index
    %c0_54 = arith.constant 0 : index
    %c0_55 = arith.constant 0 : index
    %67 = vector.load %arg7[%c4, %c0_54, %c0_55] : memref<9x8x32xf32, #tpu.memory_space<vmem>>, vector<1x8x32xf32>
    %68 = vector.shape_cast %67 : vector<1x8x32xf32> to vector<8x32xf32>
    %cst_56 = arith.constant dense<0.000000e+00> : vector<8x128xf32>
    %69 = tpu.matmul %68, %37, %cst_56 {dimension_numbers = #tpu.dot_dimension_numbers<[1], [0], [0], [1], [0, 0, 1, 1], [], []>} : vector<8x32xf32>, vector<32x128xf32>, vector<8x128xf32> -> vector<8x128xf32>
    %c4_57 = arith.constant 4 : index
    %c0_58 = arith.constant 0 : index
    %c0_59 = arith.constant 0 : index
    %70 = vector.load %arg8[%c4_57, %c0_58, %c0_59] : memref<9x128x32xf32, #tpu.memory_space<vmem>>, vector<1x128x32xf32>
    %71 = vector.shape_cast %70 : vector<1x128x32xf32> to vector<128x32xf32>
    %cst_60 = arith.constant dense<0.000000e+00> : vector<8x32xf32>
    %72 = tpu.matmul %69, %71, %cst_60 {dimension_numbers = #tpu.dot_dimension_numbers<[1], [0], [0], [1], [0, 0, 1, 1], [], []>} : vector<8x128xf32>, vector<128x32xf32>, vector<8x32xf32> -> vector<8x32xf32>
    %73 = arith.addf %66, %72 : vector<8x32xf32>
    %c5 = arith.constant 5 : index
    %c0_61 = arith.constant 0 : index
    %c0_62 = arith.constant 0 : index
    %74 = vector.load %arg7[%c5, %c0_61, %c0_62] : memref<9x8x32xf32, #tpu.memory_space<vmem>>, vector<1x8x32xf32>
    %75 = vector.shape_cast %74 : vector<1x8x32xf32> to vector<8x32xf32>
    %cst_63 = arith.constant dense<0.000000e+00> : vector<8x128xf32>
    %76 = tpu.matmul %75, %37, %cst_63 {dimension_numbers = #tpu.dot_dimension_numbers<[1], [0], [0], [1], [0, 0, 1, 1], [], []>} : vector<8x32xf32>, vector<32x128xf32>, vector<8x128xf32> -> vector<8x128xf32>
    %c5_64 = arith.constant 5 : index
    %c0_65 = arith.constant 0 : index
    %c0_66 = arith.constant 0 : index
    %77 = vector.load %arg8[%c5_64, %c0_65, %c0_66] : memref<9x128x32xf32, #tpu.memory_space<vmem>>, vector<1x128x32xf32>
    %78 = vector.shape_cast %77 : vector<1x128x32xf32> to vector<128x32xf32>
    %cst_67 = arith.constant dense<0.000000e+00> : vector<8x32xf32>
    %79 = tpu.matmul %76, %78, %cst_67 {dimension_numbers = #tpu.dot_dimension_numbers<[1], [0], [0], [1], [0, 0, 1, 1], [], []>} : vector<8x128xf32>, vector<128x32xf32>, vector<8x32xf32> -> vector<8x32xf32>
    %80 = arith.addf %73, %79 : vector<8x32xf32>
    %c6 = arith.constant 6 : index
    %c0_68 = arith.constant 0 : index
    %c0_69 = arith.constant 0 : index
    %81 = vector.load %arg7[%c6, %c0_68, %c0_69] : memref<9x8x32xf32, #tpu.memory_space<vmem>>, vector<1x8x32xf32>
    %82 = vector.shape_cast %81 : vector<1x8x32xf32> to vector<8x32xf32>
    %cst_70 = arith.constant dense<0.000000e+00> : vector<8x128xf32>
    %83 = tpu.matmul %82, %37, %cst_70 {dimension_numbers = #tpu.dot_dimension_numbers<[1], [0], [0], [1], [0, 0, 1, 1], [], []>} : vector<8x32xf32>, vector<32x128xf32>, vector<8x128xf32> -> vector<8x128xf32>
    %c6_71 = arith.constant 6 : index
    %c0_72 = arith.constant 0 : index
    %c0_73 = arith.constant 0 : index
    %84 = vector.load %arg8[%c6_71, %c0_72, %c0_73] : memref<9x128x32xf32, #tpu.memory_space<vmem>>, vector<1x128x32xf32>
    %85 = vector.shape_cast %84 : vector<1x128x32xf32> to vector<128x32xf32>
    %cst_74 = arith.constant dense<0.000000e+00> : vector<8x32xf32>
    %86 = tpu.matmul %83, %85, %cst_74 {dimension_numbers = #tpu.dot_dimension_numbers<[1], [0], [0], [1], [0, 0, 1, 1], [], []>} : vector<8x128xf32>, vector<128x32xf32>, vector<8x32xf32> -> vector<8x32xf32>
    %87 = arith.addf %80, %86 : vector<8x32xf32>
    %c7 = arith.constant 7 : index
    %c0_75 = arith.constant 0 : index
    %c0_76 = arith.constant 0 : index
    %88 = vector.load %arg7[%c7, %c0_75, %c0_76] : memref<9x8x32xf32, #tpu.memory_space<vmem>>, vector<1x8x32xf32>
    %89 = vector.shape_cast %88 : vector<1x8x32xf32> to vector<8x32xf32>
    %cst_77 = arith.constant dense<0.000000e+00> : vector<8x128xf32>
    %90 = tpu.matmul %89, %37, %cst_77 {dimension_numbers = #tpu.dot_dimension_numbers<[1], [0], [0], [1], [0, 0, 1, 1], [], []>} : vector<8x32xf32>, vector<32x128xf32>, vector<8x128xf32> -> vector<8x128xf32>
    %c7_78 = arith.constant 7 : index
    %c0_79 = arith.constant 0 : index
    %c0_80 = arith.constant 0 : index
    %91 = vector.load %arg8[%c7_78, %c0_79, %c0_80] : memref<9x128x32xf32, #tpu.memory_space<vmem>>, vector<1x128x32xf32>
    %92 = vector.shape_cast %91 : vector<1x128x32xf32> to vector<128x32xf32>
    %cst_81 = arith.constant dense<0.000000e+00> : vector<8x32xf32>
    %93 = tpu.matmul %90, %92, %cst_81 {dimension_numbers = #tpu.dot_dimension_numbers<[1], [0], [0], [1], [0, 0, 1, 1], [], []>} : vector<8x128xf32>, vector<128x32xf32>, vector<8x32xf32> -> vector<8x32xf32>
    %94 = arith.addf %87, %93 : vector<8x32xf32>
    %c8 = arith.constant 8 : index
    %c0_82 = arith.constant 0 : index
    %c0_83 = arith.constant 0 : index
    %95 = vector.load %arg7[%c8, %c0_82, %c0_83] : memref<9x8x32xf32, #tpu.memory_space<vmem>>, vector<1x8x32xf32>
    %96 = vector.shape_cast %95 : vector<1x8x32xf32> to vector<8x32xf32>
    %cst_84 = arith.constant dense<0.000000e+00> : vector<8x128xf32>
    %97 = tpu.matmul %96, %37, %cst_84 {dimension_numbers = #tpu.dot_dimension_numbers<[1], [0], [0], [1], [0, 0, 1, 1], [], []>} : vector<8x32xf32>, vector<32x128xf32>, vector<8x128xf32> -> vector<8x128xf32>
    %c8_85 = arith.constant 8 : index
    %c0_86 = arith.constant 0 : index
    %c0_87 = arith.constant 0 : index
    %98 = vector.load %arg8[%c8_85, %c0_86, %c0_87] : memref<9x128x32xf32, #tpu.memory_space<vmem>>, vector<1x128x32xf32>
    %99 = vector.shape_cast %98 : vector<1x128x32xf32> to vector<128x32xf32>
    %cst_88 = arith.constant dense<0.000000e+00> : vector<8x32xf32>
    %100 = tpu.matmul %97, %99, %cst_88 {dimension_numbers = #tpu.dot_dimension_numbers<[1], [0], [0], [1], [0, 0, 1, 1], [], []>} : vector<8x128xf32>, vector<128x32xf32>, vector<8x32xf32> -> vector<8x32xf32>
    %101 = arith.addf %94, %100 : vector<8x32xf32>
    %c0_89 = arith.constant 0 : index
    %c0_90 = arith.constant 0 : index
    %102 = vector.load %arg9[%c0_89, %c0_90] : memref<1x32xf32, #tpu.memory_space<vmem>>, vector<1x32xf32>
    %103 = vector.broadcast %102 : vector<1x32xf32> to vector<8x32xf32>
    %104 = arith.addf %101, %103 : vector<8x32xf32>
    %c0_91 = arith.constant 0 : index
    %c0_92 = arith.constant 0 : index
    %105 = vector.load %arg11[%c0_91, %c0_92] : memref<1x32xf32, #tpu.memory_space<vmem>>, vector<1x32xf32>
    %106 = vector.extract_strided_slice %104 {offsets = [0, 0], sizes = [1, 32], strides = [1, 1]} : vector<8x32xf32> to vector<1x32xf32>
    %c0_93 = arith.constant 0 : index
    %c0_94 = arith.constant 0 : index
    %c0_95 = arith.constant 0 : index
    %107 = vector.load %arg10[%c0_93, %c0_94, %c0_95] : memref<8x32x32xf32, #tpu.memory_space<vmem>>, vector<1x32x32xf32>
    %108 = vector.shape_cast %107 : vector<1x32x32xf32> to vector<32x32xf32>
    %cst_96 = arith.constant dense<0.000000e+00> : vector<1x32xf32>
    %109 = tpu.matmul %106, %108, %cst_96 {dimension_numbers = #tpu.dot_dimension_numbers<[1], [0], [0], [1], [0, 0, 1, 1], [], []>} : vector<1x32xf32>, vector<32x32xf32>, vector<1x32xf32> -> vector<1x32xf32>
    %110 = arith.addf %105, %109 : vector<1x32xf32>
    %111 = vector.extract_strided_slice %104 {offsets = [1, 0], sizes = [1, 32], strides = [1, 1]} : vector<8x32xf32> to vector<1x32xf32>
    %c1_97 = arith.constant 1 : index
    %c0_98 = arith.constant 0 : index
    %c0_99 = arith.constant 0 : index
    %112 = vector.load %arg10[%c1_97, %c0_98, %c0_99] : memref<8x32x32xf32, #tpu.memory_space<vmem>>, vector<1x32x32xf32>
    %113 = vector.shape_cast %112 : vector<1x32x32xf32> to vector<32x32xf32>
    %cst_100 = arith.constant dense<0.000000e+00> : vector<1x32xf32>
    %114 = tpu.matmul %111, %113, %cst_100 {dimension_numbers = #tpu.dot_dimension_numbers<[1], [0], [0], [1], [0, 0, 1, 1], [], []>} : vector<1x32xf32>, vector<32x32xf32>, vector<1x32xf32> -> vector<1x32xf32>
    %115 = arith.addf %110, %114 : vector<1x32xf32>
    %116 = vector.extract_strided_slice %104 {offsets = [2, 0], sizes = [1, 32], strides = [1, 1]} : vector<8x32xf32> to vector<1x32xf32>
    %c2_101 = arith.constant 2 : index
    %c0_102 = arith.constant 0 : index
    %c0_103 = arith.constant 0 : index
    %117 = vector.load %arg10[%c2_101, %c0_102, %c0_103] : memref<8x32x32xf32, #tpu.memory_space<vmem>>, vector<1x32x32xf32>
    %118 = vector.shape_cast %117 : vector<1x32x32xf32> to vector<32x32xf32>
    %cst_104 = arith.constant dense<0.000000e+00> : vector<1x32xf32>
    %119 = tpu.matmul %116, %118, %cst_104 {dimension_numbers = #tpu.dot_dimension_numbers<[1], [0], [0], [1], [0, 0, 1, 1], [], []>} : vector<1x32xf32>, vector<32x32xf32>, vector<1x32xf32> -> vector<1x32xf32>
    %120 = arith.addf %115, %119 : vector<1x32xf32>
    %121 = vector.extract_strided_slice %104 {offsets = [3, 0], sizes = [1, 32], strides = [1, 1]} : vector<8x32xf32> to vector<1x32xf32>
    %c3_105 = arith.constant 3 : index
    %c0_106 = arith.constant 0 : index
    %c0_107 = arith.constant 0 : index
    %122 = vector.load %arg10[%c3_105, %c0_106, %c0_107] : memref<8x32x32xf32, #tpu.memory_space<vmem>>, vector<1x32x32xf32>
    %123 = vector.shape_cast %122 : vector<1x32x32xf32> to vector<32x32xf32>
    %cst_108 = arith.constant dense<0.000000e+00> : vector<1x32xf32>
    %124 = tpu.matmul %121, %123, %cst_108 {dimension_numbers = #tpu.dot_dimension_numbers<[1], [0], [0], [1], [0, 0, 1, 1], [], []>} : vector<1x32xf32>, vector<32x32xf32>, vector<1x32xf32> -> vector<1x32xf32>
    %125 = arith.addf %120, %124 : vector<1x32xf32>
    %126 = vector.extract_strided_slice %104 {offsets = [4, 0], sizes = [1, 32], strides = [1, 1]} : vector<8x32xf32> to vector<1x32xf32>
    %c4_109 = arith.constant 4 : index
    %c0_110 = arith.constant 0 : index
    %c0_111 = arith.constant 0 : index
    %127 = vector.load %arg10[%c4_109, %c0_110, %c0_111] : memref<8x32x32xf32, #tpu.memory_space<vmem>>, vector<1x32x32xf32>
    %128 = vector.shape_cast %127 : vector<1x32x32xf32> to vector<32x32xf32>
    %cst_112 = arith.constant dense<0.000000e+00> : vector<1x32xf32>
    %129 = tpu.matmul %126, %128, %cst_112 {dimension_numbers = #tpu.dot_dimension_numbers<[1], [0], [0], [1], [0, 0, 1, 1], [], []>} : vector<1x32xf32>, vector<32x32xf32>, vector<1x32xf32> -> vector<1x32xf32>
    %130 = arith.addf %125, %129 : vector<1x32xf32>
    %131 = vector.extract_strided_slice %104 {offsets = [5, 0], sizes = [1, 32], strides = [1, 1]} : vector<8x32xf32> to vector<1x32xf32>
    %c5_113 = arith.constant 5 : index
    %c0_114 = arith.constant 0 : index
    %c0_115 = arith.constant 0 : index
    %132 = vector.load %arg10[%c5_113, %c0_114, %c0_115] : memref<8x32x32xf32, #tpu.memory_space<vmem>>, vector<1x32x32xf32>
    %133 = vector.shape_cast %132 : vector<1x32x32xf32> to vector<32x32xf32>
    %cst_116 = arith.constant dense<0.000000e+00> : vector<1x32xf32>
    %134 = tpu.matmul %131, %133, %cst_116 {dimension_numbers = #tpu.dot_dimension_numbers<[1], [0], [0], [1], [0, 0, 1, 1], [], []>} : vector<1x32xf32>, vector<32x32xf32>, vector<1x32xf32> -> vector<1x32xf32>
    %135 = arith.addf %130, %134 : vector<1x32xf32>
    %136 = vector.extract_strided_slice %104 {offsets = [6, 0], sizes = [1, 32], strides = [1, 1]} : vector<8x32xf32> to vector<1x32xf32>
    %c6_117 = arith.constant 6 : index
    %c0_118 = arith.constant 0 : index
    %c0_119 = arith.constant 0 : index
    %137 = vector.load %arg10[%c6_117, %c0_118, %c0_119] : memref<8x32x32xf32, #tpu.memory_space<vmem>>, vector<1x32x32xf32>
    %138 = vector.shape_cast %137 : vector<1x32x32xf32> to vector<32x32xf32>
    %cst_120 = arith.constant dense<0.000000e+00> : vector<1x32xf32>
    %139 = tpu.matmul %136, %138, %cst_120 {dimension_numbers = #tpu.dot_dimension_numbers<[1], [0], [0], [1], [0, 0, 1, 1], [], []>} : vector<1x32xf32>, vector<32x32xf32>, vector<1x32xf32> -> vector<1x32xf32>
    %140 = arith.addf %135, %139 : vector<1x32xf32>
    %141 = vector.extract_strided_slice %104 {offsets = [7, 0], sizes = [1, 32], strides = [1, 1]} : vector<8x32xf32> to vector<1x32xf32>
    %c7_121 = arith.constant 7 : index
    %c0_122 = arith.constant 0 : index
    %c0_123 = arith.constant 0 : index
    %142 = vector.load %arg10[%c7_121, %c0_122, %c0_123] : memref<8x32x32xf32, #tpu.memory_space<vmem>>, vector<1x32x32xf32>
    %143 = vector.shape_cast %142 : vector<1x32x32xf32> to vector<32x32xf32>
    %cst_124 = arith.constant dense<0.000000e+00> : vector<1x32xf32>
    %144 = tpu.matmul %141, %143, %cst_124 {dimension_numbers = #tpu.dot_dimension_numbers<[1], [0], [0], [1], [0, 0, 1, 1], [], []>} : vector<1x32xf32>, vector<32x32xf32>, vector<1x32xf32> -> vector<1x32xf32>
    %145 = arith.addf %140, %144 : vector<1x32xf32>
    %cst_125 = arith.constant 0.000000e+00 : f32
    %146 = vector.broadcast %cst_125 : f32 to vector<1x32xf32>
    %147 = arith.subf %146, %145 : vector<1x32xf32>
    %148 = math.exp %147 : vector<1x32xf32>
    %cst_126 = arith.constant 1.000000e+00 : f32
    %149 = vector.broadcast %cst_126 : f32 to vector<1x32xf32>
    %150 = arith.addf %149, %148 : vector<1x32xf32>
    %cst_127 = arith.constant 1.000000e+00 : f32
    %151 = vector.broadcast %cst_127 : f32 to vector<1x32xf32>
    %152 = arith.divf %151, %150 : vector<1x32xf32>
    %c0_128 = arith.constant 0 : index
    %c0_129 = arith.constant 0 : index
    %c0_130 = arith.constant 0 : index
    %153 = vector.load %arg14[%c0_128, %c0_129, %c0_130] : memref<1x1x32xf32, #tpu.memory_space<vmem>>, vector<1x1x32xf32>
    %154 = vector.shape_cast %153 : vector<1x1x32xf32> to vector<1x32xf32>
    %155 = vector.shape_cast %152 : vector<1x32xf32> to vector<1x1x32xf32>
    tpu.vector_store %arg14[%c0_128, %c0_129, %c0_130], %155 {strides = array<i32>} : memref<1x1x32xf32, #tpu.memory_space<vmem>>, vector<1x1x32xf32>,
    %156 = vector.extract_strided_slice %152 {offsets = [0, 0], sizes = [1, 16], strides = [1, 1]} : vector<1x32xf32> to vector<1x16xf32>
    %157 = vector.extract_strided_slice %152 {offsets = [0, 16], sizes = [1, 16], strides = [1, 1]} : vector<1x32xf32> to vector<1x16xf32>
    %c0_131 = arith.constant 0 : index
    %c0_132 = arith.constant 0 : index
    %c0_133 = arith.constant 0 : index
    %158 = vector.load %arg2[%c0_131, %c0_132, %c0_133] : memref<1x1x16xf32, #tpu.memory_space<vmem>>, vector<1x1x16xf32>
    %159 = vector.shape_cast %158 : vector<1x1x16xf32> to vector<1x16xf32>
    %160 = arith.mulf %157, %159 : vector<1x16xf32>
    %161 = arith.addf %156, %160 : vector<1x16xf32>
    %c0_134 = arith.constant 0 : index
    %c0_135 = arith.constant 0 : index
    %162 = vector.load %arg12[%c0_134, %c0_135] : memref<16x1024xf32, #tpu.memory_space<vmem>>, vector<16x1024xf32>
    %cst_136 = arith.constant dense<0.000000e+00> : vector<1x1024xf32>
    %163 = tpu.matmul %161, %162, %cst_136 {dimension_numbers = #tpu.dot_dimension_numbers<[1], [0], [0], [1], [0, 0, 1, 1], [], []>} : vector<1x16xf32>, vector<16x1024xf32>, vector<1x1024xf32> -> vector<1x1024xf32>
    %c0_137 = arith.constant 0 : index
    %c0_138 = arith.constant 0 : index
    %164 = vector.load %arg13[%c0_137, %c0_138] : memref<1x1024xf32, #tpu.memory_space<vmem>>, vector<1x1024xf32>
    %165 = arith.addf %163, %164 : vector<1x1024xf32>
    %cst_139 = arith.constant 0.000000e+00 : f32
    %166 = vector.broadcast %cst_139 : f32 to vector<1x1024xf32>
    %167 = arith.cmpf oge, %165, %166 : vector<1x1024xf32>
    %cst_140 = arith.constant 0.00999999977 : f32
    %168 = vector.broadcast %cst_140 : f32 to vector<1x1024xf32>
    %169 = arith.mulf %165, %168 : vector<1x1024xf32>
    %170 = arith.select %167, %165, %169 : vector<1x1024xi1>, vector<1x1024xf32>
    %c0_141 = arith.constant 0 : index
    %c0_142 = arith.constant 0 : index
    %c0_143 = arith.constant 0 : index
    %171 = vector.load %arg15[%c0_141, %c0_142, %c0_143] : memref<1x1x1024xf32, #tpu.memory_space<vmem>>, vector<1x1x1024xf32>
    %172 = vector.shape_cast %171 : vector<1x1x1024xf32> to vector<1x1024xf32>
    %173 = vector.shape_cast %170 : vector<1x1024xf32> to vector<1x1x1024xf32>
    tpu.vector_store %arg15[%c0_141, %c0_142, %c0_143], %173 {strides = array<i32>} : memref<1x1x1024xf32, #tpu.memory_space<vmem>>, vector<1x1x1024xf32>,
    return
  }
  func.func @transform_0(%arg0: i32) -> (i32, i32, i32) {
    %c0_i32 = arith.constant 0 : i32
    %c0_i32_0 = arith.constant 0 : i32
    %c0_i32_1 = arith.constant 0 : i32
    return %arg0, %c0_i32, %c0_i32_0 : i32, i32, i32
  }
  func.func @transform_1(%arg0: i32) -> (i32, i32, i32) {
    %c0_i32 = arith.constant 0 : i32
    %c0_i32_0 = arith.constant 0 : i32
    %c0_i32_1 = arith.constant 0 : i32
    return %arg0, %c0_i32, %c0_i32_0 : i32, i32, i32
  }
  func.func @transform_2(%arg0: i32) -> (i32, i32) {
    %c0_i32 = arith.constant 0 : i32
    %c0_i32_0 = arith.constant 0 : i32
    %c0_i32_1 = arith.constant 0 : i32
    return %c0_i32, %c0_i32_0 : i32, i32
  }
  func.func @transform_3(%arg0: i32) -> (i32, i32) {
    %c0_i32 = arith.constant 0 : i32
    %c0_i32_0 = arith.constant 0 : i32
    %c0_i32_1 = arith.constant 0 : i32
    return %c0_i32, %c0_i32_0 : i32, i32
  }
  func.func @transform_4(%arg0: i32) -> (i32, i32) {
    %c0_i32 = arith.constant 0 : i32
    %c0_i32_0 = arith.constant 0 : i32
    %c0_i32_1 = arith.constant 0 : i32
    return %c0_i32, %c0_i32_0 : i32, i32
  }
  func.func @transform_5(%arg0: i32) -> (i32, i32) {
    %c0_i32 = arith.constant 0 : i32
    %c0_i32_0 = arith.constant 0 : i32
    %c0_i32_1 = arith.constant 0 : i32
    return %c0_i32, %c0_i32_0 : i32, i32
  }
  func.func @transform_6(%arg0: i32) -> (i32, i32, i32) {
    %c0_i32 = arith.constant 0 : i32
    %c0_i32_0 = arith.constant 0 : i32
    %c0_i32_1 = arith.constant 0 : i32
    %c0_i32_2 = arith.constant 0 : i32
    return %c0_i32, %c0_i32_0, %c0_i32_1 : i32, i32, i32
  }
  func.func @transform_7(%arg0: i32) -> (i32, i32, i32) {
    %c0_i32 = arith.constant 0 : i32
    %c0_i32_0 = arith.constant 0 : i32
    %c0_i32_1 = arith.constant 0 : i32
    %c0_i32_2 = arith.constant 0 : i32
    return %c0_i32, %c0_i32_0, %c0_i32_1 : i32, i32, i32
  }
  func.func @transform_8(%arg0: i32) -> (i32, i32) {
    %c0_i32 = arith.constant 0 : i32
    %c0_i32_0 = arith.constant 0 : i32
    %c0_i32_1 = arith.constant 0 : i32
    return %c0_i32, %c0_i32_0 : i32, i32
  }
  func.func @transform_9(%arg0: i32) -> (i32, i32, i32) {
    %c0_i32 = arith.constant 0 : i32
    %c0_i32_0 = arith.constant 0 : i32
    %c0_i32_1 = arith.constant 0 : i32
    %c0_i32_2 = arith.constant 0 : i32
    return %c0_i32, %c0_i32_0, %c0_i32_1 : i32, i32, i32
  }
  func.func @transform_10(%arg0: i32) -> (i32, i32) {
    %c0_i32 = arith.constant 0 : i32
    %c0_i32_0 = arith.constant 0 : i32
    %c0_i32_1 = arith.constant 0 : i32
    return %c0_i32, %c0_i32_0 : i32, i32
  }
  func.func @transform_11(%arg0: i32) -> (i32, i32) {
    %c0_i32 = arith.constant 0 : i32
    %c0_i32_0 = arith.constant 0 : i32
    %c0_i32_1 = arith.constant 0 : i32
    return %c0_i32, %c0_i32_0 : i32, i32
  }
  func.func @transform_12(%arg0: i32) -> (i32, i32) {
    %c0_i32 = arith.constant 0 : i32
    %c0_i32_0 = arith.constant 0 : i32
    %c0_i32_1 = arith.constant 0 : i32
    return %c0_i32, %c0_i32_0 : i32, i32
  }
  func.func @transform_13(%arg0: i32) -> (i32, i32, i32) {
    %c0_i32 = arith.constant 0 : i32
    %c0_i32_0 = arith.constant 0 : i32
    %c0_i32_1 = arith.constant 0 : i32
    return %arg0, %c0_i32, %c0_i32_0 : i32, i32, i32
  }
  func.func @transform_14(%arg0: i32) -> (i32, i32, i32) {
    %c0_i32 = arith.constant 0 : i32
    %c0_i32_0 = arith.constant 0 : i32
    %c0_i32_1 = arith.constant 0 : i32
    return %arg0, %c0_i32, %c0_i32_0 : i32, i32, i32
  }
}

</mosaic_0001>

<llo_original>
// kernel: tpu_custom_call.1
$region0: #{tpu_custom_call.1}
  #allocation0 [shape = 'u32[]', space=smem, size = 0x4, offset = 0x4, fixed_abs, tag = 'smem constant byte address 0x4 - core index']
  #allocation1 [shape = 'u32[144,128]{1,0:T(1,128)}', space=vmem, size = 0x12000, scoped, tag = 'internal scratch']
  %s0 = inlined_call_operand.vmem [shape: f32[2,32,128], index: 0, kind: input, shape index: {}]
  %s1 = inlined_call_operand.vmem [shape: f32[2,1,16], index: 1, kind: input, shape index: {}]
  %s2 = inlined_call_operand.vmem [shape: f32[1,128], index: 2, kind: input, shape index: {}]
  %s3 = inlined_call_operand.vmem [shape: f32[1,128], index: 3, kind: input, shape index: {}]
  %s4 = inlined_call_operand.vmem [shape: f32[128,8], index: 4, kind: input, shape index: {}]
  %s5 = inlined_call_operand.vmem [shape: f32[8,128], index: 5, kind: input, shape index: {}]
  %s6 = inlined_call_operand.vmem [shape: f32[9,8,32], index: 6, kind: input, shape index: {}]
  %s7 = inlined_call_operand.vmem [shape: f32[9,128,32], index: 7, kind: input, shape index: {}]
  %s8 = inlined_call_operand.vmem [shape: f32[1,32], index: 8, kind: input, shape index: {}]
  %s9 = inlined_call_operand.vmem [shape: f32[8,32,32], index: 9, kind: input, shape index: {}]
  %s10 = inlined_call_operand.vmem [shape: f32[1,32], index: 10, kind: input, shape index: {}]
  %s11 = inlined_call_operand.vmem [shape: f32[16,1024], index: 11, kind: input, shape index: {}]
  %s12 = inlined_call_operand.vmem [shape: f32[1,1024], index: 12, kind: input, shape index: {}]
  %s13 = inlined_call_operand.hbm [shape: f32[2,1,32], index: 13, kind: output, shape index: {0}]
  %s14 = inlined_call_operand.hbm [shape: f32[2,1,1024], index: 14, kind: output, shape index: {1}]
  %15 = xla_tuple %s13, %s14
  %s16 = sld [smem:[#allocation0]]
  $region93: #{tpu_custom_call.1} parent=0
    _
  %s18 = ssub.s32 1, %s16
  %s19 = scalar_select 0, %s18, %s16
  $region1: #{tpu_custom_call.1} parent=0
    #allocation2 [shape = 'u8[1024]{0}', space=vmem, size = 0x400, scoped, tag = 'output window, operand 0']
    #allocation3 [shape = 's32[2]{0}', space=sflag, size = 0x8, scoped, tag = 'scoped memory for tpu_custom_call.1']
    #allocation4 [shape = 'u8[8192]{0}', space=vmem, size = 0x2000, scoped, tag = 'output window, operand 1']
    #allocation5 [shape = 's32[2]{0}', space=sflag, size = 0x8, scoped, tag = 'scoped memory for tpu_custom_call.1']
    %20 = vsyncpa [#allocation3], 0
    %s21 = scalar_lea.sflag [#allocation3], 1
    %22 = vsyncpa %s21, 0
    %23 = vsyncpa [#allocation5], 0
    %s24 = scalar_lea.sflag [#allocation5], 1
    %25 = vsyncpa %s24, 0
    loop: start=0, step=1, limit=4
    $region2: #{tpu_custom_call.1} parent=1 // loop_pre_header
      _
    $region3: #{tpu_custom_call.1} parent=1 // loop_header
      %s27 = sphi 0, %s31
      %p28 = scmp.ge.s32.totalorder %s27, 4
      %s37 = sphi 0, %s39
      %s40 = sphi 0, %s37
      %s41 = sphi 0, %s40
      %s57 = sphi 0, %s41
      %s63 = sphi 0, %s65
      %s66 = sphi 0, %s63
      %s67 = sphi 0, %s66
      %s83 = sphi 0, %s67
      %s87 = sphi 0, %s87
      %s89 = sphi 0, %s87
      %s90 = sphi 0, %s89
      %s104 = sphi 0, %s90
      %s108 = sphi 0, %s108
      %s110 = sphi 0, %s108
      %s111 = sphi 0, %s110
      %s125 = sphi 0, %s111
      %s129 = sphi 0, %s129
      %s131 = sphi 0, %s129
      %s132 = sphi 0, %s131
      %s146 = sphi 0, %s132
      %s150 = sphi 0, %s150
      %s152 = sphi 0, %s150
      %s153 = sphi 0, %s152
      %s167 = sphi 0, %s153
      %s171 = sphi 0, %s171
      %s173 = sphi 0, %s171
      %s174 = sphi 0, %s173
      %s188 = sphi 0, %s174
      %s192 = sphi 0, %s192
      %s194 = sphi 0, %s192
      %s195 = sphi 0, %s194
      %s209 = sphi 0, %s195
      %s213 = sphi 0, %s213
      %s215 = sphi 0, %s213
      %s216 = sphi 0, %s215
      %s230 = sphi 0, %s216
      %s234 = sphi 0, %s234
      %s236 = sphi 0, %s234
      %s237 = sphi 0, %s236
      %s251 = sphi 0, %s237
      %s255 = sphi 0, %s255
      %s257 = sphi 0, %s255
      %s258 = sphi 0, %s257
      %s272 = sphi 0, %s258
      %s276 = sphi 0, %s276
      %s278 = sphi 0, %s276
      %s279 = sphi 0, %s278
      %s293 = sphi 0, %s279
      %s297 = sphi 0, %s297
      %s299 = sphi 0, %s297
      %s300 = sphi 0, %s299
      %s314 = sphi 0, %s300
      %s320 = sphi 0, %s322
      %s323 = sphi 0, %s320
      %s324 = sphi 0, %s323
      %s340 = sphi 0, %s324
      %s346 = sphi 0, %s348
      %s349 = sphi 0, %s346
      %s350 = sphi 0, %s349
      %s366 = sphi 0, %s350
    $region4: #{tpu_custom_call.1} parent=1 // loop_header_branch
      %30 = sbr.rel (%p28) target = $region8
    $region5: #{tpu_custom_call.1} parent=1 // loop_body
      %s32 = ssub.s32 %s27, 1
      %s33 = ssub.s32 %s27, 2
      %s34 = sadd.s32 %s27, 1
      %s35 = ssub.s32 %s27, %s34
      %p36 = scmp.eq.s32.totalorder %s35, 0
      %s38 = sadd.s32 %s37, 1
      %s39 = scalar_select %p36, %s37, %s38
      %p42 = pneg %p36
      %p43 = scmp.eq.s32.totalorder %s27, 1
      %p44 = por %p42, %p43
      %p45 = scmp.ne.s32.totalorder %s37, %s40
      %p46 = scmp.eq.s32.totalorder %s27, 0
      %p47 = por %p45, %p46
      %p48 = scmp.ne.s32.totalorder %s37, %s40
      %p49 = scmp.eq.s32.totalorder %s32, 1
      %p50 = por %p48, %p49
      %p51 = scmp.ne.s32.totalorder %s40, %s41
      %p52 = scmp.eq.s32.totalorder %s32, 0
      %p53 = por %p51, %p52
      %p54 = scmp.ne.s32.totalorder %s40, %s41
      %p55 = scmp.eq.s32.totalorder %s33, 1
      %p56 = por %p54, %p55
      %p58 = scmp.ne.s32.totalorder %s41, %s57
      %p59 = scmp.eq.s32.totalorder %s33, 0
      %p60 = por %p58, %p59
      %s61 = ssub.s32 %s27, %s34
      %p62 = scmp.eq.s32.totalorder %s61, 0
      %s64 = sadd.s32 %s63, 1
      %s65 = scalar_select %p62, %s63, %s64
      %p68 = pneg %p62
      %p69 = scmp.eq.s32.totalorder %s27, 1
      %p70 = por %p68, %p69
      %p71 = scmp.ne.s32.totalorder %s63, %s66
      %p72 = scmp.eq.s32.totalorder %s27, 0
      %p73 = por %p71, %p72
      %p74 = scmp.ne.s32.totalorder %s63, %s66
      %p75 = scmp.eq.s32.totalorder %s32, 1
      %p76 = por %p74, %p75
      %p77 = scmp.ne.s32.totalorder %s66, %s67
      %p78 = scmp.eq.s32.totalorder %s32, 0
      %p79 = por %p77, %p78
      %p80 = scmp.ne.s32.totalorder %s66, %s67
      %p81 = scmp.eq.s32.totalorder %s33, 1
      %p82 = por %p80, %p81
      %p84 = scmp.ne.s32.totalorder %s67, %s83
      %p85 = scmp.eq.s32.totalorder %s33, 0
      %p86 = por %p84, %p85
      %s88 = sadd.s32 %s87, 1
      %p91 = scmp.eq.s32.totalorder %s27, 1
      %p92 = scmp.ne.s32.totalorder %s87, %s89
      %p93 = scmp.eq.s32.totalorder %s27, 0
      %p94 = por %p92, %p93
      %p95 = scmp.ne.s32.totalorder %s87, %s89
      %p96 = scmp.eq.s32.totalorder %s32, 1
      %p97 = por %p95, %p96
      %p98 = scmp.ne.s32.totalorder %s89, %s90
      %p99 = scmp.eq.s32.totalorder %s32, 0
      %p100 = por %p98, %p99
      %p101 = scmp.ne.s32.totalorder %s89, %s90
      %p102 = scmp.eq.s32.totalorder %s33, 1
      %p103 = por %p101, %p102
      %p105 = scmp.ne.s32.totalorder %s90, %s104
      %p106 = scmp.eq.s32.totalorder %s33, 0
      %p107 = por %p105, %p106
      %s109 = sadd.s32 %s108, 1
      %p112 = scmp.eq.s32.totalorder %s27, 1
      %p113 = scmp.ne.s32.totalorder %s108, %s110
      %p114 = scmp.eq.s32.totalorder %s27, 0
      %p115 = por %p113, %p114
      %p116 = scmp.ne.s32.totalorder %s108, %s110
      %p117 = scmp.eq.s32.totalorder %s32, 1
      %p118 = por %p116, %p117
      %p119 = scmp.ne.s32.totalorder %s110, %s111
      %p120 = scmp.eq.s32.totalorder %s32, 0
      %p121 = por %p119, %p120
      %p122 = scmp.ne.s32.totalorder %s110, %s111
      %p123 = scmp.eq.s32.totalorder %s33, 1
      %p124 = por %p122, %p123
      %p126 = scmp.ne.s32.totalorder %s111, %s125
      %p127 = scmp.eq.s32.totalorder %s33, 0
      %p128 = por %p126, %p127
      %s130 = sadd.s32 %s129, 1
      %p133 = scmp.eq.s32.totalorder %s27, 1
      %p134 = scmp.ne.s32.totalorder %s129, %s131
      %p135 = scmp.eq.s32.totalorder %s27, 0
      %p136 = por %p134, %p135
      %p137 = scmp.ne.s32.totalorder %s129, %s131
      %p138 = scmp.eq.s32.totalorder %s32, 1
      %p139 = por %p137, %p138
      %p140 = scmp.ne.s32.totalorder %s131, %s132
      %p141 = scmp.eq.s32.totalorder %s32, 0
      %p142 = por %p140, %p141
      %p143 = scmp.ne.s32.totalorder %s131, %s132
      %p144 = scmp.eq.s32.totalorder %s33, 1
      %p145 = por %p143, %p144
      %p147 = scmp.ne.s32.totalorder %s132, %s146
      %p148 = scmp.eq.s32.totalorder %s33, 0
      %p149 = por %p147, %p148
      %s151 = sadd.s32 %s150, 1
      %p154 = scmp.eq.s32.totalorder %s27, 1
      %p155 = scmp.ne.s32.totalorder %s150, %s152
      %p156 = scmp.eq.s32.totalorder %s27, 0
      %p157 = por %p155, %p156
      %p158 = scmp.ne.s32.totalorder %s150, %s152
      %p159 = scmp.eq.s32.totalorder %s32, 1
      %p160 = por %p158, %p159
      %p161 = scmp.ne.s32.totalorder %s152, %s153
      %p162 = scmp.eq.s32.totalorder %s32, 0
      %p163 = por %p161, %p162
      %p164 = scmp.ne.s32.totalorder %s152, %s153
      %p165 = scmp.eq.s32.totalorder %s33, 1
      %p166 = por %p164, %p165
      %p168 = scmp.ne.s32.totalorder %s153, %s167
      %p169 = scmp.eq.s32.totalorder %s33, 0
      %p170 = por %p168, %p169
      %s172 = sadd.s32 %s171, 1
      %p175 = scmp.eq.s32.totalorder %s27, 1
      %p176 = scmp.ne.s32.totalorder %s171, %s173
      %p177 = scmp.eq.s32.totalorder %s27, 0
      %p178 = por %p176, %p177
      %p179 = scmp.ne.s32.totalorder %s171, %s173
      %p180 = scmp.eq.s32.totalorder %s32, 1
      %p181 = por %p179, %p180
      %p182 = scmp.ne.s32.totalorder %s173, %s174
      %p183 = scmp.eq.s32.totalorder %s32, 0
      %p184 = por %p182, %p183
      %p185 = scmp.ne.s32.totalorder %s173, %s174
      %p186 = scmp.eq.s32.totalorder %s33, 1
      %p187 = por %p185, %p186
      %p189 = scmp.ne.s32.totalorder %s174, %s188
      %p190 = scmp.eq.s32.totalorder %s33, 0
      %p191 = por %p189, %p190
      %s193 = sadd.s32 %s192, 1
      %p196 = scmp.eq.s32.totalorder %s27, 1
      %p197 = scmp.ne.s32.totalorder %s192, %s194
      %p198 = scmp.eq.s32.totalorder %s27, 0
      %p199 = por %p197, %p198
      %p200 = scmp.ne.s32.totalorder %s192, %s194
      %p201 = scmp.eq.s32.totalorder %s32, 1
      %p202 = por %p200, %p201
      %p203 = scmp.ne.s32.totalorder %s194, %s195
      %p204 = scmp.eq.s32.totalorder %s32, 0
      %p205 = por %p203, %p204
      %p206 = scmp.ne.s32.totalorder %s194, %s195
      %p207 = scmp.eq.s32.totalorder %s33, 1
      %p208 = por %p206, %p207
      %p210 = scmp.ne.s32.totalorder %s195, %s209
      %p211 = scmp.eq.s32.totalorder %s33, 0
      %p212 = por %p210, %p211
      %s214 = sadd.s32 %s213, 1
      %p217 = scmp.eq.s32.totalorder %s27, 1
      %p218 = scmp.ne.s32.totalorder %s213, %s215
      %p219 = scmp.eq.s32.totalorder %s27, 0
      %p220 = por %p218, %p219
      %p221 = scmp.ne.s32.totalorder %s213, %s215
      %p222 = scmp.eq.s32.totalorder %s32, 1
      %p223 = por %p221, %p222
      %p224 = scmp.ne.s32.totalorder %s215, %s216
      %p225 = scmp.eq.s32.totalorder %s32, 0
      %p226 = por %p224, %p225
      %p227 = scmp.ne.s32.totalorder %s215, %s216
      %p228 = scmp.eq.s32.totalorder %s33, 1
      %p229 = por %p227, %p228
      %p231 = scmp.ne.s32.totalorder %s216, %s230
      %p232 = scmp.eq.s32.totalorder %s33, 0
      %p233 = por %p231, %p232
      %s235 = sadd.s32 %s234, 1
      %p238 = scmp.eq.s32.totalorder %s27, 1
      %p239 = scmp.ne.s32.totalorder %s234, %s236
      %p240 = scmp.eq.s32.totalorder %s27, 0
      %p241 = por %p239, %p240
      %p242 = scmp.ne.s32.totalorder %s234, %s236
      %p243 = scmp.eq.s32.totalorder %s32, 1
      %p244 = por %p242, %p243
      %p245 = scmp.ne.s32.totalorder %s236, %s237
      %p246 = scmp.eq.s32.totalorder %s32, 0
      %p247 = por %p245, %p246
      %p248 = scmp.ne.s32.totalorder %s236, %s237
      %p249 = scmp.eq.s32.totalorder %s33, 1
      %p250 = por %p248, %p249
      %p252 = scmp.ne.s32.totalorder %s237, %s251
      %p253 = scmp.eq.s32.totalorder %s33, 0
      %p254 = por %p252, %p253
      %s256 = sadd.s32 %s255, 1
      %p259 = scmp.eq.s32.totalorder %s27, 1
      %p260 = scmp.ne.s32.totalorder %s255, %s257
      %p261 = scmp.eq.s32.totalorder %s27, 0
      %p262 = por %p260, %p261
      %p263 = scmp.ne.s32.totalorder %s255, %s257
      %p264 = scmp.eq.s32.totalorder %s32, 1
      %p265 = por %p263, %p264
      %p266 = scmp.ne.s32.totalorder %s257, %s258
      %p267 = scmp.eq.s32.totalorder %s32, 0
      %p268 = por %p266, %p267
      %p269 = scmp.ne.s32.totalorder %s257, %s258
      %p270 = scmp.eq.s32.totalorder %s33, 1
      %p271 = por %p269, %p270
      %p273 = scmp.ne.s32.totalorder %s258, %s272
      %p274 = scmp.eq.s32.totalorder %s33, 0
      %p275 = por %p273, %p274
      %s277 = sadd.s32 %s276, 1
      %p280 = scmp.eq.s32.totalorder %s27, 1
      %p281 = scmp.ne.s32.totalorder %s276, %s278
      %p282 = scmp.eq.s32.totalorder %s27, 0
      %p283 = por %p281, %p282
      %p284 = scmp.ne.s32.totalorder %s276, %s278
      %p285 = scmp.eq.s32.totalorder %s32, 1
      %p286 = por %p284, %p285
      %p287 = scmp.ne.s32.totalorder %s278, %s279
      %p288 = scmp.eq.s32.totalorder %s32, 0
      %p289 = por %p287, %p288
      %p290 = scmp.ne.s32.totalorder %s278, %s279
      %p291 = scmp.eq.s32.totalorder %s33, 1
      %p292 = por %p290, %p291
      %p294 = scmp.ne.s32.totalorder %s279, %s293
      %p295 = scmp.eq.s32.totalorder %s33, 0
      %p296 = por %p294, %p295
      %s298 = sadd.s32 %s297, 1
      %p301 = scmp.eq.s32.totalorder %s27, 1
      %p302 = scmp.ne.s32.totalorder %s297, %s299
      %p303 = scmp.eq.s32.totalorder %s27, 0
      %p304 = por %p302, %p303
      %p305 = scmp.ne.s32.totalorder %s297, %s299
      %p306 = scmp.eq.s32.totalorder %s32, 1
      %p307 = por %p305, %p306
      %p308 = scmp.ne.s32.totalorder %s299, %s300
      %p309 = scmp.eq.s32.totalorder %s32, 0
      %p310 = por %p308, %p309
      %p311 = scmp.ne.s32.totalorder %s299, %s300
      %p312 = scmp.eq.s32.totalorder %s33, 1
      %p313 = por %p311, %p312
      %p315 = scmp.ne.s32.totalorder %s300, %s314
      %p316 = scmp.eq.s32.totalorder %s33, 0
      %p317 = por %p315, %p316
      %s318 = ssub.s32 %s27, %s34
      %p319 = scmp.eq.s32.totalorder %s318, 0
      %s321 = sadd.s32 %s320, 1
      %s322 = scalar_select %p319, %s320, %s321
      %p325 = pneg %p319
      %p326 = scmp.eq.s32.totalorder %s27, 1
      %p327 = por %p325, %p326
      %p328 = scmp.ne.s32.totalorder %s320, %s323
      %p329 = scmp.eq.s32.totalorder %s27, 0
      %p330 = por %p328, %p329
      %p331 = scmp.ne.s32.totalorder %s320, %s323
      %p332 = scmp.eq.s32.totalorder %s32, 1
      %p333 = por %p331, %p332
      %p334 = scmp.ne.s32.totalorder %s323, %s324
      %p335 = scmp.eq.s32.totalorder %s32, 0
      %p336 = por %p334, %p335
      %p337 = scmp.ne.s32.totalorder %s323, %s324
      %p338 = scmp.eq.s32.totalorder %s33, 1
      %p339 = por %p337, %p338
      %p341 = scmp.ne.s32.totalorder %s324, %s340
      %p342 = scmp.eq.s32.totalorder %s33, 0
      %p343 = por %p341, %p342
      %s344 = ssub.s32 %s27, %s34
      %p345 = scmp.eq.s32.totalorder %s344, 0
      %s347 = sadd.s32 %s346, 1
      %s348 = scalar_select %p345, %s346, %s347
      %p351 = pneg %p345
      %p352 = scmp.eq.s32.totalorder %s27, 1
      %p353 = por %p351, %p352
      %p354 = scmp.ne.s32.totalorder %s346, %s349
      %p355 = scmp.eq.s32.totalorder %s27, 0
      %p356 = por %p354, %p355
      %p357 = scmp.ne.s32.totalorder %s346, %s349
      %p358 = scmp.eq.s32.totalorder %s32, 1
      %p359 = por %p357, %p358
      %p360 = scmp.ne.s32.totalorder %s349, %s350
      %p361 = scmp.eq.s32.totalorder %s32, 0
      %p362 = por %p360, %p361
      %p363 = scmp.ne.s32.totalorder %s349, %s350
      %p364 = scmp.eq.s32.totalorder %s33, 1
      %p365 = por %p363, %p364
      %p367 = scmp.ne.s32.totalorder %s350, %s366
      %p368 = scmp.eq.s32.totalorder %s33, 0
      %p369 = por %p367, %p368
      %p370 = scmp.le.s32.totalorder 1, %s27
      %p371 = scmp.lt.s32.totalorder %s27, 3
      %p372 = pnand %p370, %p371
      %p373 = pneg %p372
      // Predicated region
      $region9: #{tpu_custom_call.1} parent=5 // pred_check
        _
      $region10: #{tpu_custom_call.1} parent=5 // pred_check_branch
        %375 = sbr.rel (%p372) target = $region12
      $region11: #{tpu_custom_call.1} parent=5 // pred_region
        %s376 = ssub.s32 %s27, 1
        // Predicated region
        $region13: #{tpu_custom_call.1} parent=11 // pred_check
          %p377 = pneg %p100
        $region14: #{tpu_custom_call.1} parent=11 // pred_check_branch
          %379 = sbr.rel (%p377) target = $region16
        $region15: #{tpu_custom_call.1} parent=11 // pred_region
          _
        $region16: #{tpu_custom_call.1} parent=11 // pred_fallthru
          _
        // Predicated region
        $region17: #{tpu_custom_call.1} parent=11 // pred_check
          %p380 = pneg %p121
        $region18: #{tpu_custom_call.1} parent=11 // pred_check_branch
          %382 = sbr.rel (%p380) target = $region20
        $region19: #{tpu_custom_call.1} parent=11 // pred_region
          _
        $region20: #{tpu_custom_call.1} parent=11 // pred_fallthru
          _
        // Predicated region
        $region21: #{tpu_custom_call.1} parent=11 // pred_check
          %p383 = pneg %p142
        $region22: #{tpu_custom_call.1} parent=11 // pred_check_branch
          %385 = sbr.rel (%p383) target = $region24
        $region23: #{tpu_custom_call.1} parent=11 // pred_region
          _
        $region24: #{tpu_custom_call.1} parent=11 // pred_fallthru
          _
        // Predicated region
        $region25: #{tpu_custom_call.1} parent=11 // pred_check
          %p386 = pneg %p163
        $region26: #{tpu_custom_call.1} parent=11 // pred_check_branch
          %388 = sbr.rel (%p386) target = $region28
        $region27: #{tpu_custom_call.1} parent=11 // pred_region
          _
        $region28: #{tpu_custom_call.1} parent=11 // pred_fallthru
          _
        // Predicated region
        $region29: #{tpu_custom_call.1} parent=11 // pred_check
          %p389 = pneg %p184
        $region30: #{tpu_custom_call.1} parent=11 // pred_check_branch
          %391 = sbr.rel (%p389) target = $region32
        $region31: #{tpu_custom_call.1} parent=11 // pred_region
          _
        $region32: #{tpu_custom_call.1} parent=11 // pred_fallthru
          _
        // Predicated region
        $region33: #{tpu_custom_call.1} parent=11 // pred_check
          %p392 = pneg %p205
        $region34: #{tpu_custom_call.1} parent=11 // pred_check_branch
          %394 = sbr.rel (%p392) target = $region36
        $region35: #{tpu_custom_call.1} parent=11 // pred_region
          _
        $region36: #{tpu_custom_call.1} parent=11 // pred_fallthru
          _
        // Predicated region
        $region37: #{tpu_custom_call.1} parent=11 // pred_check
          %p395 = pneg %p226
        $region38: #{tpu_custom_call.1} parent=11 // pred_check_branch
          %397 = sbr.rel (%p395) target = $region40
        $region39: #{tpu_custom_call.1} parent=11 // pred_region
          _
        $region40: #{tpu_custom_call.1} parent=11 // pred_fallthru
          _
        // Predicated region
        $region41: #{tpu_custom_call.1} parent=11 // pred_check
          %p398 = pneg %p247
        $region42: #{tpu_custom_call.1} parent=11 // pred_check_branch
          %400 = sbr.rel (%p398) target = $region44
        $region43: #{tpu_custom_call.1} parent=11 // pred_region
          _
        $region44: #{tpu_custom_call.1} parent=11 // pred_fallthru
          _
        // Predicated region
        $region45: #{tpu_custom_call.1} parent=11 // pred_check
          %p401 = pneg %p268
        $region46: #{tpu_custom_call.1} parent=11 // pred_check_branch
          %403 = sbr.rel (%p401) target = $region48
        $region47: #{tpu_custom_call.1} parent=11 // pred_region
          _
        $region48: #{tpu_custom_call.1} parent=11 // pred_fallthru
          _
        // Predicated region
        $region49: #{tpu_custom_call.1} parent=11 // pred_check
          %p404 = pneg %p289
        $region50: #{tpu_custom_call.1} parent=11 // pred_check_branch
          %406 = sbr.rel (%p404) target = $region52
        $region51: #{tpu_custom_call.1} parent=11 // pred_region
          _
        $region52: #{tpu_custom_call.1} parent=11 // pred_fallthru
          _
        // Predicated region
        $region53: #{tpu_custom_call.1} parent=11 // pred_check
          %p407 = pneg %p310
        $region54: #{tpu_custom_call.1} parent=11 // pred_check_branch
          %409 = sbr.rel (%p407) target = $region56
        $region55: #{tpu_custom_call.1} parent=11 // pred_region
          _
        $region56: #{tpu_custom_call.1} parent=11 // pred_fallthru
          _
      $region12: #{tpu_custom_call.1} parent=5 // pred_fallthru
        _
      %p410 = scmp.lt.s32.totalorder %s27, 2
      // Predicated region
      $region57: #{tpu_custom_call.1} parent=5 // pred_check
        %p411 = pneg %p410
      $region58: #{tpu_custom_call.1} parent=5 // pred_check_branch
        %413 = sbr.rel (%p411) target = $region60
      $region59: #{tpu_custom_call.1} parent=5 // pred_region
        // Predicated region
        $region61: #{tpu_custom_call.1} parent=59 // pred_check
          %p414 = pneg %p47
        $region62: #{tpu_custom_call.1} parent=59 // pred_check_branch
          %416 = sbr.rel (%p414) target = $region64
        $region63: #{tpu_custom_call.1} parent=59 // pred_region
          %p417 = scmp.lt.s32.totalorder %s27, 1
          %s418 = scalar_select %p417, %s27, 1
          %s419 = smul.addr %s418, 4
          %s420 = smul.addr %s419, 8
          %s421 = scalar_lea.vmem %s0, %s420
        $region64: #{tpu_custom_call.1} parent=59 // pred_fallthru
          _
        // Predicated region
        $region65: #{tpu_custom_call.1} parent=59 // pred_check
          %p422 = pneg %p73
        $region66: #{tpu_custom_call.1} parent=59 // pred_check_branch
          %424 = sbr.rel (%p422) target = $region68
        $region67: #{tpu_custom_call.1} parent=59 // pred_region
          %p425 = scmp.lt.s32.totalorder %s27, 1
          %s426 = scalar_select %p425, %s27, 1
          %s427 = scalar_lea.vmem %s1, %s426
        $region68: #{tpu_custom_call.1} parent=59 // pred_fallthru
          _
      $region60: #{tpu_custom_call.1} parent=5 // pred_fallthru
        _
      %p428 = scmp.le.s32.totalorder 1, %s27
      %p429 = scmp.lt.s32.totalorder %s27, 3
      %p430 = pnand %p428, %p429
      %p431 = pneg %p430
      // Predicated region
      $region69: #{tpu_custom_call.1} parent=5 // pred_check
        _
      $region70: #{tpu_custom_call.1} parent=5 // pred_check_branch
        %433 = sbr.rel (%p430) target = $region72
      $region71: #{tpu_custom_call.1} parent=5 // pred_region
        %s434 = ssub.s32 %s27, 1
        %p435 = scmp.lt.s32.totalorder %s32, 1
        %s436 = scalar_select %p435, %s32, 1
        %s437 = smul.addr %s436, 4
        %s438 = smul.addr %s437, 8
        %s439 = scalar_lea.vmem %s0, %s438
        %p440 = pneg %p53
        %p441 = pneg %p50
        %p442 = scmp.lt.s32.totalorder %s32, 1
        %s443 = scalar_select %p442, %s32, 1
        %s444 = scalar_lea.vmem %s1, %s443
        %p445 = pneg %p79
        %p446 = pneg %p76
        %p447 = pneg %p100
        %p448 = pneg %p97
        %p449 = pneg %p121
        %p450 = pneg %p118
        %p451 = pneg %p142
        %p452 = pneg %p139
        %p453 = pneg %p163
        %p454 = pneg %p160
        %p455 = pneg %p184
        %p456 = pneg %p181
        %p457 = pneg %p205
        %p458 = pneg %p202
        %p459 = pneg %p226
        %p460 = pneg %p223
        %p461 = pneg %p247
        %p462 = pneg %p244
        %p463 = pneg %p268
        %p464 = pneg %p265
        %p465 = pneg %p289
        %p466 = pneg %p286
        %p467 = pneg %p310
        %p468 = pneg %p307
        %p469 = pneg %p336
        %p470 = pneg %p333
        %s471 = sand.u32 %s323, 1
        %s472 = scalar_lea.sflag [#allocation3], %s471
        %s473 = sand.u32 %s323, 1
        %s474 = scalar_lea.vmem [#allocation2], %s473
        %p475 = pneg %p362
        %p476 = pneg %p359
        %s477 = sand.u32 %s349, 1
        %s478 = scalar_lea.sflag [#allocation5], %s477
        %s479 = sand.u32 %s349, 1
        %s480 = smul.addr %s479, 8
        %s481 = scalar_lea.vmem [#allocation4], %s480
        %p482 = scmp.lt.s32.totalorder %s32, 1
        %s483 = scalar_select %p482, %s32, 1
        %s484 = smul.addr %s483, 4
        %s485 = smul.addr %s484, 8
        %s486 = scalar_lea.vmem %s0, %s485
        %p487 = scmp.lt.s32.totalorder %s32, 1
        %s488 = scalar_select %p487, %s32, 1
        %s489 = scalar_lea.vmem %s1, %s488
        %v490 = vld [vmem:[%s486] sm:$0xff]
        %v491 = vld [vmem:[%s486 + $0x8] sm:$0xff]
        %v492 = vld [vmem:[%s486 + $0x10] sm:$0xff]
        %v493 = vld [vmem:[%s486 + $0x18] sm:$0xff]
        %v494 = vadd.f32 %v490, %v491
        %v495 = vadd.f32 %v494, %v492
        %v496 = vadd.f32 %v495, %v493
        %v497 = vrot.slane %v496, 4
        %v498 = vadd.f32 %v496, %v497
        %v499 = vrot.slane %v498, 2
        %v500 = vadd.f32 %v498, %v499
        %v501 = vrot.slane %v500, 1
        %v502 = vadd.f32 %v500, %v501
        %v503 = vmul.f32 %v502, 0.03125
        %v504 = vmul.f32 %v490, %v490
        %v505 = vmul.f32 %v491, %v491
        %v506 = vmul.f32 %v492, %v492
        %v507 = vmul.f32 %v493, %v493
        %v508 = vadd.f32 %v504, %v505
        %v509 = vadd.f32 %v508, %v506
        %v510 = vadd.f32 %v509, %v507
        %v511 = vrot.slane %v510, 4
        %v512 = vadd.f32 %v510, %v511
        %v513 = vrot.slane %v512, 2
        %v514 = vadd.f32 %v512, %v513
        %v515 = vrot.slane %v514, 1
        %v516 = vadd.f32 %v514, %v515
        %v517 = vmul.f32 %v516, 0.03125
        %v518 = vld [vmem:[%s4] sm:$0xff]
        %v519 = vld [vmem:[%s4 + $0x8] sm:$0xff]
        %v520 = vld [vmem:[%s4 + $0x10] sm:$0xff]
        %v521 = vld [vmem:[%s4 + $0x18] sm:$0xff]
        %v522 = vld [vmem:[%s4 + $0x20] sm:$0xff]
        %v523 = vld [vmem:[%s4 + $0x28] sm:$0xff]
        %v524 = vld [vmem:[%s4 + $0x30] sm:$0xff]
        %v525 = vld [vmem:[%s4 + $0x38] sm:$0xff]
        %v526 = vld [vmem:[%s4 + $0x40] sm:$0xff]
        %v527 = vld [vmem:[%s4 + $0x48] sm:$0xff]
        %v528 = vld [vmem:[%s4 + $0x50] sm:$0xff]
        %v529 = vld [vmem:[%s4 + $0x58] sm:$0xff]
        %v530 = vld [vmem:[%s4 + $0x60] sm:$0xff]
        %v531 = vld [vmem:[%s4 + $0x68] sm:$0xff]
        %v532 = vld [vmem:[%s4 + $0x70] sm:$0xff]
        %v533 = vld [vmem:[%s4 + $0x78] sm:$0xff]
        %534 = vmatprep.subr.mxu0 0.0
        %535 = vmatpush1.msra.mxu0 %v533
        %536 = vmatprep.subr.mxu0 0.0
        %537 = vmatpush1.msra.mxu0 %v532
        %538 = vmatprep.subr.mxu0 0.0
        %539 = vmatpush1.msra.mxu0 %v531
        %540 = vmatprep.subr.mxu0 0.0
        %541 = vmatpush1.msra.mxu0 %v530
        %542 = vmatprep.subr.mxu0 0.0
        %543 = vmatpush1.msra.mxu0 %v529
        %544 = vmatprep.subr.mxu0 0.0
        %545 = vmatpush1.msra.mxu0 %v528
        %546 = vmatprep.subr.mxu0 0.0
        %547 = vmatpush1.msra.mxu0 %v527
        %548 = vmatprep.subr.mxu0 0.0
        %549 = vmatpush1.msra.mxu0 %v526
        %550 = vmatprep.subr.mxu0 0.0
        %551 = vmatpush1.msra.mxu0 %v525
        %552 = vmatprep.subr.mxu0 0.0
        %553 = vmatpush1.msra.mxu0 %v524
        %554 = vmatprep.subr.mxu0 0.0
        %555 = vmatpush1.msra.mxu0 %v523
        %556 = vmatprep.subr.mxu0 0.0
        %557 = vmatpush1.msra.mxu0 %v522
        %558 = vmatprep.subr.mxu0 0.0
        %559 = vmatpush1.msra.mxu0 %v521
        %560 = vmatprep.subr.mxu0 0.0
        %561 = vmatpush1.msra.mxu0 %v520
        %562 = vmatprep.subr.mxu0 0.0
        %563 = vmatpush1.msra.mxu0 %v519
        %564 = vmatprep.subr.mxu0 0.0
        %565 = vmatpush1.msra.mxu0 %v518
        %566 = vmatprep.subr.mxu0 0.0
        %567 = vmatpush2.msra.mxu0 0.0
        %568 = vmatprep.subr.mxu0 0.0
        %569 = vmatpush2.msra.mxu0 0.0
        %570 = vmatprep.subr.mxu0 0.0
        %571 = vmatpush2.msra.mxu0 0.0
        %572 = vmatprep.subr.mxu0 0.0
        %573 = vmatpush2.msra.mxu0 0.0
        %574 = vmatprep.subr.mxu0 0.0
        %575 = vmatpush2.msra.mxu0 0.0
        %576 = vmatprep.subr.mxu0 0.0
        %577 = vmatpush2.msra.mxu0 0.0
        %578 = vmatprep.subr.mxu0 0.0
        %579 = vmatpush2.msra.mxu0 0.0
        %580 = vmatprep.subr.mxu0 0.0
        %581 = vmatpush2.msra.mxu0 0.0
        %582 = vmatprep.subr.mxu0 0.0
        %583 = vmatpush2.msra.mxu0 0.0
        %584 = vmatprep.subr.mxu0 0.0
        %585 = vmatpush2.msra.mxu0 0.0
        %586 = vmatprep.subr.mxu0 0.0
        %587 = vmatpush2.msra.mxu0 0.0
        %588 = vmatprep.subr.mxu0 0.0
        %589 = vmatpush2.msra.mxu0 0.0
        %590 = vmatprep.subr.mxu0 0.0
        %591 = vmatpush2.msra.mxu0 0.0
        %592 = vmatprep.subr.mxu0 0.0
        %593 = vmatpush2.msra.mxu0 0.0
        %594 = vmatprep.subr.mxu0 0.0
        %595 = vmatpush2.msra.mxu0 0.0
        %596 = vmatprep.subr.mxu0 0.0
        %597 = vmatpush2.msra.mxu0 0.0
        %598 = vmatprep.mubr.f32.mxu0 0.0
        %599 = vmatmul.mubr.f32.gmra.mxu0 %v503
        %v600 = vpop.f32.mrf.mxu0
        %v601 = vadd.f32 0.0, %v600
        %v602 = vpop.f32.mrf.mxu0
        %603 = vdwg.mxu0
        %604 = vmatprep.subr.mxu0 0.0
        %605 = vmatpush1.msra.mxu0 %v533
        %606 = vmatprep.subr.mxu0 0.0
        %607 = vmatpush1.msra.mxu0 %v532
        %608 = vmatprep.subr.mxu0 0.0
        %609 = vmatpush1.msra.mxu0 %v531
        %610 = vmatprep.subr.mxu0 0.0
        %611 = vmatpush1.msra.mxu0 %v530
        %612 = vmatprep.subr.mxu0 0.0
        %613 = vmatpush1.msra.mxu0 %v529
        %614 = vmatprep.subr.mxu0 0.0
        %615 = vmatpush1.msra.mxu0 %v528
        %616 = vmatprep.subr.mxu0 0.0
        %617 = vmatpush1.msra.mxu0 %v527
        %618 = vmatprep.subr.mxu0 0.0
        %619 = vmatpush1.msra.mxu0 %v526
        %620 = vmatprep.subr.mxu0 0.0
        %621 = vmatpush1.msra.mxu0 %v525
        %622 = vmatprep.subr.mxu0 0.0
        %623 = vmatpush1.msra.mxu0 %v524
        %624 = vmatprep.subr.mxu0 0.0
        %625 = vmatpush1.msra.mxu0 %v523
        %626 = vmatprep.subr.mxu0 0.0
        %627 = vmatpush1.msra.mxu0 %v522
        %628 = vmatprep.subr.mxu0 0.0
        %629 = vmatpush1.msra.mxu0 %v521
        %630 = vmatprep.subr.mxu0 0.0
        %631 = vmatpush1.msra.mxu0 %v520
        %632 = vmatprep.subr.mxu0 0.0
        %633 = vmatpush1.msra.mxu0 %v519
        %634 = vmatprep.subr.mxu0 0.0
        %635 = vmatpush1.msra.mxu0 %v518
        %636 = vmatprep.subr.mxu0 0.0
        %637 = vmatpush2.msra.mxu0 0.0
        %638 = vmatprep.subr.mxu0 0.0
        %639 = vmatpush2.msra.mxu0 0.0
        %640 = vmatprep.subr.mxu0 0.0
        %641 = vmatpush2.msra.mxu0 0.0
        %642 = vmatprep.subr.mxu0 0.0
        %643 = vmatpush2.msra.mxu0 0.0
        %644 = vmatprep.subr.mxu0 0.0
        %645 = vmatpush2.msra.mxu0 0.0
        %646 = vmatprep.subr.mxu0 0.0
        %647 = vmatpush2.msra.mxu0 0.0
        %648 = vmatprep.subr.mxu0 0.0
        %649 = vmatpush2.msra.mxu0 0.0
        %650 = vmatprep.subr.mxu0 0.0
        %651 = vmatpush2.msra.mxu0 0.0
        %652 = vmatprep.subr.mxu0 0.0
        %653 = vmatpush2.msra.mxu0 0.0
        %654 = vmatprep.subr.mxu0 0.0
        %655 = vmatpush2.msra.mxu0 0.0
        %656 = vmatprep.subr.mxu0 0.0
        %657 = vmatpush2.msra.mxu0 0.0
        %658 = vmatprep.subr.mxu0 0.0
        %659 = vmatpush2.msra.mxu0 0.0
        %660 = vmatprep.subr.mxu0 0.0
        %661 = vmatpush2.msra.mxu0 0.0
        %662 = vmatprep.subr.mxu0 0.0
        %663 = vmatpush2.msra.mxu0 0.0
        %664 = vmatprep.subr.mxu0 0.0
        %665 = vmatpush2.msra.mxu0 0.0
        %666 = vmatprep.subr.mxu0 0.0
        %667 = vmatpush2.msra.mxu0 0.0
        %668 = vmatprep.mubr.f32.mxu0 0.0
        %669 = vmatmul.mubr.f32.gmra.mxu0 %v517
        %v670 = vpop.f32.mrf.mxu0
        %v671 = vadd.f32 0.0, %v670
        %v672 = vpop.f32.mrf.mxu0
        %673 = vdwg.mxu0
        %v674 = vmul.f32 %v601, %v601
        %v675 = vsub.f32 %v671, %v674
        %v676 = vld [vmem:[%s5] sm:$0xff]
        %vm677 = vcmask 64512
        %v679 = vsel %vm677, %v601, 0
        %681 = vmatprep.subr.mxu0 0.0
        %682 = vmatpush1.msra.mxu0 0.0
        %683 = vmatprep.subr.mxu0 0.0
        %684 = vmatpush1.msra.mxu0 0.0
        %685 = vmatprep.subr.mxu0 0.0
        %686 = vmatpush1.msra.mxu0 0.0
        %687 = vmatprep.subr.mxu0 0.0
        %688 = vmatpush1.msra.mxu0 0.0
        %689 = vmatprep.subr.mxu0 0.0
        %690 = vmatpush1.msra.mxu0 0.0
        %691 = vmatprep.subr.mxu0 0.0
        %692 = vmatpush1.msra.mxu0 0.0
        %693 = vmatprep.subr.mxu0 0.0
        %694 = vmatpush1.msra.mxu0 0.0
        %695 = vmatprep.subr.mxu0 0.0
        %696 = vmatpush1.msra.mxu0 0.0
        %697 = vmatprep.subr.mxu0 0.0
        %698 = vmatpush1.msra.mxu0 0.0
        %699 = vmatprep.subr.mxu0 0.0
        %700 = vmatpush1.msra.mxu0 0.0
        %701 = vmatprep.subr.mxu0 0.0
        %702 = vmatpush1.msra.mxu0 0.0
        %703 = vmatprep.subr.mxu0 0.0
        %704 = vmatpush1.msra.mxu0 0.0
        %705 = vmatprep.subr.mxu0 0.0
        %706 = vmatpush1.msra.mxu0 0.0
        %707 = vmatprep.subr.mxu0 0.0
        %708 = vmatpush1.msra.mxu0 0.0
        %709 = vmatprep.subr.mxu0 0.0
        %710 = vmatpush1.msra.mxu0 0.0
        %711 = vmatprep.subr.mxu0 0.0
        %712 = vmatpush1.msra.mxu0 %v676
        %713 = vmatprep.subr.mxu0 0.0
        %714 = vmatpush2.msra.mxu0 0.0
        %715 = vmatprep.subr.mxu0 0.0
        %716 = vmatpush2.msra.mxu0 0.0
        %717 = vmatprep.subr.mxu0 0.0
        %718 = vmatpush2.msra.mxu0 0.0
        %719 = vmatprep.subr.mxu0 0.0
        %720 = vmatpush2.msra.mxu0 0.0
        %721 = vmatprep.subr.mxu0 0.0
        %722 = vmatpush2.msra.mxu0 0.0
        %723 = vmatprep.subr.mxu0 0.0
        %724 = vmatpush2.msra.mxu0 0.0
        %725 = vmatprep.subr.mxu0 0.0
        %726 = vmatpush2.msra.mxu0 0.0
        %727 = vmatprep.subr.mxu0 0.0
        %728 = vmatpush2.msra.mxu0 0.0
        %729 = vmatprep.subr.mxu0 0.0
        %730 = vmatpush2.msra.mxu0 0.0
        %731 = vmatprep.subr.mxu0 0.0
        %732 = vmatpush2.msra.mxu0 0.0
        %733 = vmatprep.subr.mxu0 0.0
        %734 = vmatpush2.msra.mxu0 0.0
        %735 = vmatprep.subr.mxu0 0.0
        %736 = vmatpush2.msra.mxu0 0.0
        %737 = vmatprep.subr.mxu0 0.0
        %738 = vmatpush2.msra.mxu0 0.0
        %739 = vmatprep.subr.mxu0 0.0
        %740 = vmatpush2.msra.mxu0 0.0
        %741 = vmatprep.subr.mxu0 0.0
        %742 = vmatpush2.msra.mxu0 0.0
        %743 = vmatprep.subr.mxu0 0.0
        %744 = vmatpush2.msra.mxu0 0.0
        %745 = vmatprep.mubr.f32.mxu0 0.0
        %746 = vmatmul.mubr.f32.gmra.mxu0 %v679
        %v747 = vpop.f32.mrf.mxu0
        %v748 = vadd.f32 0.0, %v747
        %v749 = vpop.f32.mrf.mxu0
        %750 = vdwg.mxu0
        %v752 = vsel %vm677, %v675, 0
        %754 = vmatprep.subr.mxu0 0.0
        %755 = vmatpush1.msra.mxu0 0.0
        %756 = vmatprep.subr.mxu0 0.0
        %757 = vmatpush1.msra.mxu0 0.0
        %758 = vmatprep.subr.mxu0 0.0
        %759 = vmatpush1.msra.mxu0 0.0
        %760 = vmatprep.subr.mxu0 0.0
        %761 = vmatpush1.msra.mxu0 0.0
        %762 = vmatprep.subr.mxu0 0.0
        %763 = vmatpush1.msra.mxu0 0.0
        %764 = vmatprep.subr.mxu0 0.0
        %765 = vmatpush1.msra.mxu0 0.0
        %766 = vmatprep.subr.mxu0 0.0
        %767 = vmatpush1.msra.mxu0 0.0
        %768 = vmatprep.subr.mxu0 0.0
        %769 = vmatpush1.msra.mxu0 0.0
        %770 = vmatprep.subr.mxu0 0.0
        %771 = vmatpush1.msra.mxu0 0.0
        %772 = vmatprep.subr.mxu0 0.0
        %773 = vmatpush1.msra.mxu0 0.0
        %774 = vmatprep.subr.mxu0 0.0
        %775 = vmatpush1.msra.mxu0 0.0
        %776 = vmatprep.subr.mxu0 0.0
        %777 = vmatpush1.msra.mxu0 0.0
        %778 = vmatprep.subr.mxu0 0.0
        %779 = vmatpush1.msra.mxu0 0.0
        %780 = vmatprep.subr.mxu0 0.0
        %781 = vmatpush1.msra.mxu0 0.0
        %782 = vmatprep.subr.mxu0 0.0
        %783 = vmatpush1.msra.mxu0 0.0
        %784 = vmatprep.subr.mxu0 0.0
        %785 = vmatpush1.msra.mxu0 %v676
        %786 = vmatprep.subr.mxu0 0.0
        %787 = vmatpush2.msra.mxu0 0.0
        %788 = vmatprep.subr.mxu0 0.0
        %789 = vmatpush2.msra.mxu0 0.0
        %790 = vmatprep.subr.mxu0 0.0
        %791 = vmatpush2.msra.mxu0 0.0
        %792 = vmatprep.subr.mxu0 0.0
        %793 = vmatpush2.msra.mxu0 0.0
        %794 = vmatprep.subr.mxu0 0.0
        %795 = vmatpush2.msra.mxu0 0.0
        %796 = vmatprep.subr.mxu0 0.0
        %797 = vmatpush2.msra.mxu0 0.0
        %798 = vmatprep.subr.mxu0 0.0
        %799 = vmatpush2.msra.mxu0 0.0
        %800 = vmatprep.subr.mxu0 0.0
        %801 = vmatpush2.msra.mxu0 0.0
        %802 = vmatprep.subr.mxu0 0.0
        %803 = vmatpush2.msra.mxu0 0.0
        %804 = vmatprep.subr.mxu0 0.0
        %805 = vmatpush2.msra.mxu0 0.0
        %806 = vmatprep.subr.mxu0 0.0
        %807 = vmatpush2.msra.mxu0 0.0
        %808 = vmatprep.subr.mxu0 0.0
        %809 = vmatpush2.msra.mxu0 0.0
        %810 = vmatprep.subr.mxu0 0.0
        %811 = vmatpush2.msra.mxu0 0.0
        %812 = vmatprep.subr.mxu0 0.0
        %813 = vmatpush2.msra.mxu0 0.0
        %814 = vmatprep.subr.mxu0 0.0
        %815 = vmatpush2.msra.mxu0 0.0
        %816 = vmatprep.subr.mxu0 0.0
        %817 = vmatpush2.msra.mxu0 0.0
        %818 = vmatprep.mubr.f32.mxu0 0.0
        %819 = vmatmul.mubr.f32.gmra.mxu0 %v752
        %v820 = vpop.f32.mrf.mxu0
        %v821 = vadd.f32 1e-05, %v820
        %v822 = vpop.f32.mrf.mxu0
        %823 = vdwg.mxu0
        %v824 = vrsqrt.pop %v821
        %v825 = vld [vmem:[%s2] sm:$0x1]
        %v826 = vmul.f32 %v824, %v825
        %v827 = vld [vmem:[%s3] sm:$0x1]
        %v828 = vmul.f32 %v748, %v826
        %v829 = vsub.f32 %v827, %v828
        %v830 = vlaneseq
        %v831 = vshrl.u32 %v830, 7
        %v832 = vsub.s32 0, %v831
        %v833 = vrot.slane %v826, %v832
        %v834 = vmul.f32 %v490, %v833
        %v835 = vmul.f32 %v491, %v833
        %v836 = vmul.f32 %v492, %v833
        %v837 = vmul.f32 %v493, %v833
        %v839 = vlaneseq
        %v840 = vshrl.u32 %v839, 7
        %v841 = vsub.s32 0, %v840
        %v842 = vrot.slane %v829, %v841
        %v844 = vadd.f32 %v834, %v842
        %v845 = vadd.f32 %v835, %v842
        %v846 = vadd.f32 %v836, %v842
        %v847 = vadd.f32 %v837, %v842
        %vm848 = vcmp.ge.f32.partialorder %v844, 0.0
        %vm849 = vcmp.ge.f32.partialorder %v845, 0.0
        %vm850 = vcmp.ge.f32.partialorder %v846, 0.0
        %vm851 = vcmp.ge.f32.partialorder %v847, 0.0
        %v852 = vmul.f32 %v844, 0.01
        %v853 = vmul.f32 %v845, 0.01
        %v854 = vmul.f32 %v846, 0.01
        %v855 = vmul.f32 %v847, 0.01
        %v856 = vsel %vm848, %v844, %v852
        %v857 = vsel %vm849, %v845, %v853
        %v858 = vsel %vm850, %v846, %v854
        %v859 = vsel %vm851, %v847, %v855
        %v860 = vld [vmem:[%s6] sm:$0xff]
        %vm861 = vcmask 261120
        %v863 = vsel %vm861, %v860, 0
        %865 = vmatprep.subr.mxu0 0.0
        %866 = vmatpush1.msra.mxu0 0.0
        %867 = vmatprep.subr.mxu0 0.0
        %868 = vmatpush1.msra.mxu0 0.0
        %869 = vmatprep.subr.mxu0 0.0
        %870 = vmatpush1.msra.mxu0 0.0
        %871 = vmatprep.subr.mxu0 0.0
        %872 = vmatpush1.msra.mxu0 0.0
        %873 = vmatprep.subr.mxu0 0.0
        %874 = vmatpush1.msra.mxu0 0.0
        %875 = vmatprep.subr.mxu0 0.0
        %876 = vmatpush1.msra.mxu0 0.0
        %877 = vmatprep.subr.mxu0 0.0
        %878 = vmatpush1.msra.mxu0 0.0
        %879 = vmatprep.subr.mxu0 0.0
        %880 = vmatpush1.msra.mxu0 0.0
        %881 = vmatprep.subr.mxu0 0.0
        %882 = vmatpush1.msra.mxu0 0.0
        %883 = vmatprep.subr.mxu0 0.0
        %884 = vmatpush1.msra.mxu0 0.0
        %885 = vmatprep.subr.mxu0 0.0
        %886 = vmatpush1.msra.mxu0 0.0
        %887 = vmatprep.subr.mxu0 0.0
        %888 = vmatpush1.msra.mxu0 0.0
        %889 = vmatprep.subr.mxu0 0.0
        %890 = vmatpush1.msra.mxu0 %v859
        %891 = vmatprep.subr.mxu0 0.0
        %892 = vmatpush1.msra.mxu0 %v858
        %893 = vmatprep.subr.mxu0 0.0
        %894 = vmatpush1.msra.mxu0 %v857
        %895 = vmatprep.subr.mxu0 0.0
        %896 = vmatpush1.msra.mxu0 %v856
        %897 = vmatprep.subr.mxu0 0.0
        %898 = vmatpush2.msra.mxu0 0.0
        %899 = vmatprep.subr.mxu0 0.0
        %900 = vmatpush2.msra.mxu0 0.0
        %901 = vmatprep.subr.mxu0 0.0
        %902 = vmatpush2.msra.mxu0 0.0
        %903 = vmatprep.subr.mxu0 0.0
        %904 = vmatpush2.msra.mxu0 0.0
        %905 = vmatprep.subr.mxu0 0.0
        %906 = vmatpush2.msra.mxu0 0.0
        %907 = vmatprep.subr.mxu0 0.0
        %908 = vmatpush2.msra.mxu0 0.0
        %909 = vmatprep.subr.mxu0 0.0
        %910 = vmatpush2.msra.mxu0 0.0
        %911 = vmatprep.subr.mxu0 0.0
        %912 = vmatpush2.msra.mxu0 0.0
        %913 = vmatprep.subr.mxu0 0.0
        %914 = vmatpush2.msra.mxu0 0.0
        %915 = vmatprep.subr.mxu0 0.0
        %916 = vmatpush2.msra.mxu0 0.0
        %917 = vmatprep.subr.mxu0 0.0
        %918 = vmatpush2.msra.mxu0 0.0
        %919 = vmatprep.subr.mxu0 0.0
        %920 = vmatpush2.msra.mxu0 0.0
        %921 = vmatprep.subr.mxu0 0.0
        %922 = vmatpush2.msra.mxu0 0.0
        %923 = vmatprep.subr.mxu0 0.0
        %924 = vmatpush2.msra.mxu0 0.0
        %925 = vmatprep.subr.mxu0 0.0
        %926 = vmatpush2.msra.mxu0 0.0
        %927 = vmatprep.subr.mxu0 0.0
        %928 = vmatpush2.msra.mxu0 0.0
        %929 = vmatprep.mubr.f32.mxu0 0.0
        %930 = vmatmul.mubr.f32.gmra.mxu0 %v863
        %v931 = vpop.f32.mrf.mxu0
        %v932 = vadd.f32 0.0, %v931
        %v933 = vpop.f32.mrf.mxu0
        %934 = vdwg.mxu0
        %v935 = vld [vmem:[%s7] sm:$0xff]
        %v936 = vld [vmem:[%s7 + $0x8] sm:$0xff]
        %v937 = vld [vmem:[%s7 + $0x10] sm:$0xff]
        %v938 = vld [vmem:[%s7 + $0x18] sm:$0xff]
        %v939 = vld [vmem:[%s7 + $0x20] sm:$0xff]
        %v940 = vld [vmem:[%s7 + $0x28] sm:$0xff]
        %v941 = vld [vmem:[%s7 + $0x30] sm:$0xff]
        %v942 = vld [vmem:[%s7 + $0x38] sm:$0xff]
        %v943 = vld [vmem:[%s7 + $0x40] sm:$0xff]
        %v944 = vld [vmem:[%s7 + $0x48] sm:$0xff]
        %v945 = vld [vmem:[%s7 + $0x50] sm:$0xff]
        %v946 = vld [vmem:[%s7 + $0x58] sm:$0xff]
        %v947 = vld [vmem:[%s7 + $0x60] sm:$0xff]
        %v948 = vld [vmem:[%s7 + $0x68] sm:$0xff]
        %v949 = vld [vmem:[%s7 + $0x70] sm:$0xff]
        %v950 = vld [vmem:[%s7 + $0x78] sm:$0xff]
        %s951 = scalar_lea.vmem %s6, 8
        %v952 = vld [vmem:[%s951] sm:$0xff]
        %v954 = vsel %vm861, %v952, 0
        %956 = vmatprep.subr.mxu0 0.0
        %957 = vmatpush1.msra.mxu0 0.0
        %958 = vmatprep.subr.mxu0 0.0
        %959 = vmatpush1.msra.mxu0 0.0
        %960 = vmatprep.subr.mxu0 0.0
        %961 = vmatpush1.msra.mxu0 0.0
        %962 = vmatprep.subr.mxu0 0.0
        %963 = vmatpush1.msra.mxu0 0.0
        %964 = vmatprep.subr.mxu0 0.0
        %965 = vmatpush1.msra.mxu0 0.0
        %966 = vmatprep.subr.mxu0 0.0
        %967 = vmatpush1.msra.mxu0 0.0
        %968 = vmatprep.subr.mxu0 0.0
        %969 = vmatpush1.msra.mxu0 0.0
        %970 = vmatprep.subr.mxu0 0.0
        %971 = vmatpush1.msra.mxu0 0.0
        %972 = vmatprep.subr.mxu0 0.0
        %973 = vmatpush1.msra.mxu0 0.0
        %974 = vmatprep.subr.mxu0 0.0
        %975 = vmatpush1.msra.mxu0 0.0
        %976 = vmatprep.subr.mxu0 0.0
        %977 = vmatpush1.msra.mxu0 0.0
        %978 = vmatprep.subr.mxu0 0.0
        %979 = vmatpush1.msra.mxu0 0.0
        %980 = vmatprep.subr.mxu0 0.0
        %981 = vmatpush1.msra.mxu0 %v859
        %982 = vmatprep.subr.mxu0 0.0
        %983 = vmatpush1.msra.mxu0 %v858
        %984 = vmatprep.subr.mxu0 0.0
        %985 = vmatpush1.msra.mxu0 %v857
        %986 = vmatprep.subr.mxu0 0.0
        %987 = vmatpush1.msra.mxu0 %v856
        %988 = vmatprep.subr.mxu0 0.0
        %989 = vmatpush2.msra.mxu0 0.0
        %990 = vmatprep.subr.mxu0 0.0
        %991 = vmatpush2.msra.mxu0 0.0
        %992 = vmatprep.subr.mxu0 0.0
        %993 = vmatpush2.msra.mxu0 0.0
        %994 = vmatprep.subr.mxu0 0.0
        %995 = vmatpush2.msra.mxu0 0.0
        %996 = vmatprep.subr.mxu0 0.0
        %997 = vmatpush2.msra.mxu0 0.0
        %998 = vmatprep.subr.mxu0 0.0
        %999 = vmatpush2.msra.mxu0 0.0
        %1000 = vmatprep.subr.mxu0 0.0
        %1001 = vmatpush2.msra.mxu0 0.0
        %1002 = vmatprep.subr.mxu0 0.0
        %1003 = vmatpush2.msra.mxu0 0.0
        %1004 = vmatprep.subr.mxu0 0.0
        %1005 = vmatpush2.msra.mxu0 0.0
        %1006 = vmatprep.subr.mxu0 0.0
        %1007 = vmatpush2.msra.mxu0 0.0
        %1008 = vmatprep.subr.mxu0 0.0
        %1009 = vmatpush2.msra.mxu0 0.0
        %1010 = vmatprep.subr.mxu0 0.0
        %1011 = vmatpush2.msra.mxu0 0.0
        %1012 = vmatprep.subr.mxu0 0.0
        %1013 = vmatpush2.msra.mxu0 0.0
        %1014 = vmatprep.subr.mxu0 0.0
        %1015 = vmatpush2.msra.mxu0 0.0
        %1016 = vmatprep.subr.mxu0 0.0
        %1017 = vmatpush2.msra.mxu0 0.0
        %1018 = vmatprep.subr.mxu0 0.0
        %1019 = vmatpush2.msra.mxu0 0.0
        %1020 = vmatprep.mubr.f32.mxu0 0.0
        %1021 = vmatmul.mubr.f32.gmra.mxu0 %v954
        %v1022 = vpop.f32.mrf.mxu0
        %v1023 = vadd.f32 0.0, %v1022
        %v1024 = vpop.f32.mrf.mxu0
        %1025 = vdwg.mxu0
        %s1026 = scalar_lea.vmem %s7, 128
        %v1027 = vld [vmem:[%s1026] sm:$0xff]
        %v1028 = vld [vmem:[%s1026 + $0x8] sm:$0xff]
        %v1029 = vld [vmem:[%s1026 + $0x10] sm:$0xff]
        %v1030 = vld [vmem:[%s1026 + $0x18] sm:$0xff]
        %v1031 = vld [vmem:[%s1026 + $0x20] sm:$0xff]
        %v1032 = vld [vmem:[%s1026 + $0x28] sm:$0xff]
        %v1033 = vld [vmem:[%s1026 + $0x30] sm:$0xff]
        %v1034 = vld [vmem:[%s1026 + $0x38] sm:$0xff]
        %v1035 = vld [vmem:[%s1026 + $0x40] sm:$0xff]
        %v1036 = vld [vmem:[%s1026 + $0x48] sm:$0xff]
        %v1037 = vld [vmem:[%s1026 + $0x50] sm:$0xff]
        %v1038 = vld [vmem:[%s1026 + $0x58] sm:$0xff]
        %v1039 = vld [vmem:[%s1026 + $0x60] sm:$0xff]
        %v1040 = vld [vmem:[%s1026 + $0x68] sm:$0xff]
        %v1041 = vld [vmem:[%s1026 + $0x70] sm:$0xff]
        %v1042 = vld [vmem:[%s1026 + $0x78] sm:$0xff]
        %1043 = vmatprep.subr.mxu0 0.0
        %1044 = vmatpush1.msra.mxu0 %v1042
        %1045 = vmatprep.subr.mxu0 0.0
        %1046 = vmatpush1.msra.mxu0 %v1041
        %1047 = vmatprep.subr.mxu0 0.0
        %1048 = vmatpush1.msra.mxu0 %v1040
        %1049 = vmatprep.subr.mxu0 0.0
        %1050 = vmatpush1.msra.mxu0 %v1039
        %1051 = vmatprep.subr.mxu0 0.0
        %1052 = vmatpush1.msra.mxu0 %v1038
        %1053 = vmatprep.subr.mxu0 0.0
        %1054 = vmatpush1.msra.mxu0 %v1037
        %1055 = vmatprep.subr.mxu0 0.0
        %1056 = vmatpush1.msra.mxu0 %v1036
        %1057 = vmatprep.subr.mxu0 0.0
        %1058 = vmatpush1.msra.mxu0 %v1035
        %1059 = vmatprep.subr.mxu0 0.0
        %1060 = vmatpush1.msra.mxu0 %v1034
        %1061 = vmatprep.subr.mxu0 0.0
        %1062 = vmatpush1.msra.mxu0 %v1033
        %1063 = vmatprep.subr.mxu0 0.0
        %1064 = vmatpush1.msra.mxu0 %v1032
        %1065 = vmatprep.subr.mxu0 0.0
        %1066 = vmatpush1.msra.mxu0 %v1031
        %1067 = vmatprep.subr.mxu0 0.0
        %1068 = vmatpush1.msra.mxu0 %v1030
        %1069 = vmatprep.subr.mxu0 0.0
        %1070 = vmatpush1.msra.mxu0 %v1029
        %1071 = vmatprep.subr.mxu0 0.0
        %1072 = vmatpush1.msra.mxu0 %v1028
        %1073 = vmatprep.subr.mxu0 0.0
        %1074 = vmatpush1.msra.mxu0 %v1027
        %1075 = vmatprep.subr.mxu0 0.0
        %1076 = vmatpush2.msra.mxu0 0.0
        %1077 = vmatprep.subr.mxu0 0.0
        %1078 = vmatpush2.msra.mxu0 0.0
        %1079 = vmatprep.subr.mxu0 0.0
        %1080 = vmatpush2.msra.mxu0 0.0
        %1081 = vmatprep.subr.mxu0 0.0
        %1082 = vmatpush2.msra.mxu0 0.0
        %1083 = vmatprep.subr.mxu0 0.0
        %1084 = vmatpush2.msra.mxu0 0.0
        %1085 = vmatprep.subr.mxu0 0.0
        %1086 = vmatpush2.msra.mxu0 0.0
        %1087 = vmatprep.subr.mxu0 0.0
        %1088 = vmatpush2.msra.mxu0 0.0
        %1089 = vmatprep.subr.mxu0 0.0
        %1090 = vmatpush2.msra.mxu0 0.0
        %1091 = vmatprep.subr.mxu0 0.0
        %1092 = vmatpush2.msra.mxu0 0.0
        %1093 = vmatprep.subr.mxu0 0.0
        %1094 = vmatpush2.msra.mxu0 0.0
        %1095 = vmatprep.subr.mxu0 0.0
        %1096 = vmatpush2.msra.mxu0 0.0
        %1097 = vmatprep.subr.mxu0 0.0
        %1098 = vmatpush2.msra.mxu0 0.0
        %1099 = vmatprep.subr.mxu0 0.0
        %1100 = vmatpush2.msra.mxu0 0.0
        %1101 = vmatprep.subr.mxu0 0.0
        %1102 = vmatpush2.msra.mxu0 0.0
        %1103 = vmatprep.subr.mxu0 0.0
        %1104 = vmatpush2.msra.mxu0 0.0
        %1105 = vmatprep.subr.mxu0 0.0
        %1106 = vmatpush2.msra.mxu0 0.0
        %1107 = vmatprep.mubr.f32.mxu0 0.0
        %1108 = vmatmul.mubr.f32.gmra.mxu0 %v1023
        %v1109 = vpop.f32.mrf.mxu0
        %v1110 = vadd.f32 0.0, %v1109
        %v1111 = vpop.f32.mrf.mxu0
        %1112 = vdwg.mxu0
        %1113 = vmatprep.subr.mxu0 0.0
        %1114 = vmatpush1.msra.mxu0 %v950
        %1115 = vmatprep.subr.mxu0 0.0
        %1116 = vmatpush1.msra.mxu0 %v949
        %1117 = vmatprep.subr.mxu0 0.0
        %1118 = vmatpush1.msra.mxu0 %v948
        %1119 = vmatprep.subr.mxu0 0.0
        %1120 = vmatpush1.msra.mxu0 %v947
        %1121 = vmatprep.subr.mxu0 0.0
        %1122 = vmatpush1.msra.mxu0 %v946
        %1123 = vmatprep.subr.mxu0 0.0
        %1124 = vmatpush1.msra.mxu0 %v945
        %1125 = vmatprep.subr.mxu0 0.0
        %1126 = vmatpush1.msra.mxu0 %v944
        %1127 = vmatprep.subr.mxu0 0.0
        %1128 = vmatpush1.msra.mxu0 %v943
        %1129 = vmatprep.subr.mxu0 0.0
        %1130 = vmatpush1.msra.mxu0 %v942
        %1131 = vmatprep.subr.mxu0 0.0
        %1132 = vmatpush1.msra.mxu0 %v941
        %1133 = vmatprep.subr.mxu0 0.0
        %1134 = vmatpush1.msra.mxu0 %v940
        %1135 = vmatprep.subr.mxu0 0.0
        %1136 = vmatpush1.msra.mxu0 %v939
        %1137 = vmatprep.subr.mxu0 0.0
        %1138 = vmatpush1.msra.mxu0 %v938
        %1139 = vmatprep.subr.mxu0 0.0
        %1140 = vmatpush1.msra.mxu0 %v937
        %1141 = vmatprep.subr.mxu0 0.0
        %1142 = vmatpush1.msra.mxu0 %v936
        %1143 = vmatprep.subr.mxu0 0.0
        %1144 = vmatpush1.msra.mxu0 %v935
        %1145 = vmatprep.subr.mxu0 0.0
        %1146 = vmatpush2.msra.mxu0 0.0
        %1147 = vmatprep.subr.mxu0 0.0
        %1148 = vmatpush2.msra.mxu0 0.0
        %1149 = vmatprep.subr.mxu0 0.0
        %1150 = vmatpush2.msra.mxu0 0.0
        %1151 = vmatprep.subr.mxu0 0.0
        %1152 = vmatpush2.msra.mxu0 0.0
        %1153 = vmatprep.subr.mxu0 0.0
        %1154 = vmatpush2.msra.mxu0 0.0
        %1155 = vmatprep.subr.mxu0 0.0
        %1156 = vmatpush2.msra.mxu0 0.0
        %1157 = vmatprep.subr.mxu0 0.0
        %1158 = vmatpush2.msra.mxu0 0.0
        %1159 = vmatprep.subr.mxu0 0.0
        %1160 = vmatpush2.msra.mxu0 0.0
        %1161 = vmatprep.subr.mxu0 0.0
        %1162 = vmatpush2.msra.mxu0 0.0
        %1163 = vmatprep.subr.mxu0 0.0
        %1164 = vmatpush2.msra.mxu0 0.0
        %1165 = vmatprep.subr.mxu0 0.0
        %1166 = vmatpush2.msra.mxu0 0.0
        %1167 = vmatprep.subr.mxu0 0.0
        %1168 = vmatpush2.msra.mxu0 0.0
        %1169 = vmatprep.subr.mxu0 0.0
        %1170 = vmatpush2.msra.mxu0 0.0
        %1171 = vmatprep.subr.mxu0 0.0
        %1172 = vmatpush2.msra.mxu0 0.0
        %1173 = vmatprep.subr.mxu0 0.0
        %1174 = vmatpush2.msra.mxu0 0.0
        %1175 = vmatprep.subr.mxu0 0.0
        %1176 = vmatpush2.msra.mxu0 0.0
        %1177 = vmatprep.mubr.f32.mxu0 0.0
        %1178 = vmatmul.mubr.f32.gmra.mxu0 %v932
        %v1179 = vpop.f32.mrf.mxu0
        %v1180 = vadd.f32 %v1110, %v1179
        %v1181 = vpop.f32.mrf.mxu0
        %1182 = vdwg.mxu0
        %s1183 = scalar_lea.vmem %s6, 16
        %v1184 = vld [vmem:[%s1183] sm:$0xff]
        %v1186 = vsel %vm861, %v1184, 0
        %1188 = vmatprep.subr.mxu0 0.0
        %1189 = vmatpush1.msra.mxu0 0.0
        %1190 = vmatprep.subr.mxu0 0.0
        %1191 = vmatpush1.msra.mxu0 0.0
        %1192 = vmatprep.subr.mxu0 0.0
        %1193 = vmatpush1.msra.mxu0 0.0
        %1194 = vmatprep.subr.mxu0 0.0
        %1195 = vmatpush1.msra.mxu0 0.0
        %1196 = vmatprep.subr.mxu0 0.0
        %1197 = vmatpush1.msra.mxu0 0.0
        %1198 = vmatprep.subr.mxu0 0.0
        %1199 = vmatpush1.msra.mxu0 0.0
        %1200 = vmatprep.subr.mxu0 0.0
        %1201 = vmatpush1.msra.mxu0 0.0
        %1202 = vmatprep.subr.mxu0 0.0
        %1203 = vmatpush1.msra.mxu0 0.0
        %1204 = vmatprep.subr.mxu0 0.0
        %1205 = vmatpush1.msra.mxu0 0.0
        %1206 = vmatprep.subr.mxu0 0.0
        %1207 = vmatpush1.msra.mxu0 0.0
        %1208 = vmatprep.subr.mxu0 0.0
        %1209 = vmatpush1.msra.mxu0 0.0
        %1210 = vmatprep.subr.mxu0 0.0
        %1211 = vmatpush1.msra.mxu0 0.0
        %1212 = vmatprep.subr.mxu0 0.0
        %1213 = vmatpush1.msra.mxu0 %v859
        %1214 = vmatprep.subr.mxu0 0.0
        %1215 = vmatpush1.msra.mxu0 %v858
        %1216 = vmatprep.subr.mxu0 0.0
        %1217 = vmatpush1.msra.mxu0 %v857
        %1218 = vmatprep.subr.mxu0 0.0
        %1219 = vmatpush1.msra.mxu0 %v856
        %1220 = vmatprep.subr.mxu0 0.0
        %1221 = vmatpush2.msra.mxu0 0.0
        %1222 = vmatprep.subr.mxu0 0.0
        %1223 = vmatpush2.msra.mxu0 0.0
        %1224 = vmatprep.subr.mxu0 0.0
        %1225 = vmatpush2.msra.mxu0 0.0
        %1226 = vmatprep.subr.mxu0 0.0
        %1227 = vmatpush2.msra.mxu0 0.0
        %1228 = vmatprep.subr.mxu0 0.0
        %1229 = vmatpush2.msra.mxu0 0.0
        %1230 = vmatprep.subr.mxu0 0.0
        %1231 = vmatpush2.msra.mxu0 0.0
        %1232 = vmatprep.subr.mxu0 0.0
        %1233 = vmatpush2.msra.mxu0 0.0
        %1234 = vmatprep.subr.mxu0 0.0
        %1235 = vmatpush2.msra.mxu0 0.0
        %1236 = vmatprep.subr.mxu0 0.0
        %1237 = vmatpush2.msra.mxu0 0.0
        %1238 = vmatprep.subr.mxu0 0.0
        %1239 = vmatpush2.msra.mxu0 0.0
        %1240 = vmatprep.subr.mxu0 0.0
        %1241 = vmatpush2.msra.mxu0 0.0
        %1242 = vmatprep.subr.mxu0 0.0
        %1243 = vmatpush2.msra.mxu0 0.0
        %1244 = vmatprep.subr.mxu0 0.0
        %1245 = vmatpush2.msra.mxu0 0.0
        %1246 = vmatprep.subr.mxu0 0.0
        %1247 = vmatpush2.msra.mxu0 0.0
        %1248 = vmatprep.subr.mxu0 0.0
        %1249 = vmatpush2.msra.mxu0 0.0
        %1250 = vmatprep.subr.mxu0 0.0
        %1251 = vmatpush2.msra.mxu0 0.0
        %1252 = vmatprep.mubr.f32.mxu0 0.0
        %1253 = vmatmul.mubr.f32.gmra.mxu0 %v1186
        %v1254 = vpop.f32.mrf.mxu0
        %v1255 = vadd.f32 0.0, %v1254
        %v1256 = vpop.f32.mrf.mxu0
        %1257 = vdwg.mxu0
        %s1258 = scalar_lea.vmem %s7, 256
        %v1259 = vld [vmem:[%s1258] sm:$0xff]
        %v1260 = vld [vmem:[%s1258 + $0x8] sm:$0xff]
        %v1261 = vld [vmem:[%s1258 + $0x10] sm:$0xff]
        %v1262 = vld [vmem:[%s1258 + $0x18] sm:$0xff]
        %v1263 = vld [vmem:[%s1258 + $0x20] sm:$0xff]
        %v1264 = vld [vmem:[%s1258 + $0x28] sm:$0xff]
        %v1265 = vld [vmem:[%s1258 + $0x30] sm:$0xff]
        %v1266 = vld [vmem:[%s1258 + $0x38] sm:$0xff]
        %v1267 = vld [vmem:[%s1258 + $0x40] sm:$0xff]
        %v1268 = vld [vmem:[%s1258 + $0x48] sm:$0xff]
        %v1269 = vld [vmem:[%s1258 + $0x50] sm:$0xff]
        %v1270 = vld [vmem:[%s1258 + $0x58] sm:$0xff]
        %v1271 = vld [vmem:[%s1258 + $0x60] sm:$0xff]
        %v1272 = vld [vmem:[%s1258 + $0x68] sm:$0xff]
        %v1273 = vld [vmem:[%s1258 + $0x70] sm:$0xff]
        %v1274 = vld [vmem:[%s1258 + $0x78] sm:$0xff]
        %1275 = vmatprep.subr.mxu0 0.0
        %1276 = vmatpush1.msra.mxu0 %v1274
        %1277 = vmatprep.subr.mxu0 0.0
        %1278 = vmatpush1.msra.mxu0 %v1273
        %1279 = vmatprep.subr.mxu0 0.0
        %1280 = vmatpush1.msra.mxu0 %v1272
        %1281 = vmatprep.subr.mxu0 0.0
        %1282 = vmatpush1.msra.mxu0 %v1271
        %1283 = vmatprep.subr.mxu0 0.0
        %1284 = vmatpush1.msra.mxu0 %v1270
        %1285 = vmatprep.subr.mxu0 0.0
        %1286 = vmatpush1.msra.mxu0 %v1269
        %1287 = vmatprep.subr.mxu0 0.0
        %1288 = vmatpush1.msra.mxu0 %v1268
        %1289 = vmatprep.subr.mxu0 0.0
        %1290 = vmatpush1.msra.mxu0 %v1267
        %1291 = vmatprep.subr.mxu0 0.0
        %1292 = vmatpush1.msra.mxu0 %v1266
        %1293 = vmatprep.subr.mxu0 0.0
        %1294 = vmatpush1.msra.mxu0 %v1265
        %1295 = vmatprep.subr.mxu0 0.0
        %1296 = vmatpush1.msra.mxu0 %v1264
        %1297 = vmatprep.subr.mxu0 0.0
        %1298 = vmatpush1.msra.mxu0 %v1263
        %1299 = vmatprep.subr.mxu0 0.0
        %1300 = vmatpush1.msra.mxu0 %v1262
        %1301 = vmatprep.subr.mxu0 0.0
        %1302 = vmatpush1.msra.mxu0 %v1261
        %1303 = vmatprep.subr.mxu0 0.0
        %1304 = vmatpush1.msra.mxu0 %v1260
        %1305 = vmatprep.subr.mxu0 0.0
        %1306 = vmatpush1.msra.mxu0 %v1259
        %1307 = vmatprep.subr.mxu0 0.0
        %1308 = vmatpush2.msra.mxu0 0.0
        %1309 = vmatprep.subr.mxu0 0.0
        %1310 = vmatpush2.msra.mxu0 0.0
        %1311 = vmatprep.subr.mxu0 0.0
        %1312 = vmatpush2.msra.mxu0 0.0
        %1313 = vmatprep.subr.mxu0 0.0
        %1314 = vmatpush2.msra.mxu0 0.0
        %1315 = vmatprep.subr.mxu0 0.0
        %1316 = vmatpush2.msra.mxu0 0.0
        %1317 = vmatprep.subr.mxu0 0.0
        %1318 = vmatpush2.msra.mxu0 0.0
        %1319 = vmatprep.subr.mxu0 0.0
        %1320 = vmatpush2.msra.mxu0 0.0
        %1321 = vmatprep.subr.mxu0 0.0
        %1322 = vmatpush2.msra.mxu0 0.0
        %1323 = vmatprep.subr.mxu0 0.0
        %1324 = vmatpush2.msra.mxu0 0.0
        %1325 = vmatprep.subr.mxu0 0.0
        %1326 = vmatpush2.msra.mxu0 0.0
        %1327 = vmatprep.subr.mxu0 0.0
        %1328 = vmatpush2.msra.mxu0 0.0
        %1329 = vmatprep.subr.mxu0 0.0
        %1330 = vmatpush2.msra.mxu0 0.0
        %1331 = vmatprep.subr.mxu0 0.0
        %1332 = vmatpush2.msra.mxu0 0.0
        %1333 = vmatprep.subr.mxu0 0.0
        %1334 = vmatpush2.msra.mxu0 0.0
        %1335 = vmatprep.subr.mxu0 0.0
        %1336 = vmatpush2.msra.mxu0 0.0
        %1337 = vmatprep.subr.mxu0 0.0
        %1338 = vmatpush2.msra.mxu0 0.0
        %1339 = vmatprep.mubr.f32.mxu0 0.0
        %1340 = vmatmul.mubr.f32.gmra.mxu0 %v1255
        %v1341 = vpop.f32.mrf.mxu0
        %v1342 = vadd.f32 0.0, %v1341
        %v1343 = vpop.f32.mrf.mxu0
        %1344 = vdwg.mxu0
        %v1345 = vadd.f32 %v1180, %v1342
        %s1346 = scalar_lea.vmem %s6, 24
        %v1347 = vld [vmem:[%s1346] sm:$0xff]
        %v1349 = vsel %vm861, %v1347, 0
        %1351 = vmatprep.subr.mxu0 0.0
        %1352 = vmatpush1.msra.mxu0 0.0
        %1353 = vmatprep.subr.mxu0 0.0
        %1354 = vmatpush1.msra.mxu0 0.0
        %1355 = vmatprep.subr.mxu0 0.0
        %1356 = vmatpush1.msra.mxu0 0.0
        %1357 = vmatprep.subr.mxu0 0.0
        %1358 = vmatpush1.msra.mxu0 0.0
        %1359 = vmatprep.subr.mxu0 0.0
        %1360 = vmatpush1.msra.mxu0 0.0
        %1361 = vmatprep.subr.mxu0 0.0
        %1362 = vmatpush1.msra.mxu0 0.0
        %1363 = vmatprep.subr.mxu0 0.0
        %1364 = vmatpush1.msra.mxu0 0.0
        %1365 = vmatprep.subr.mxu0 0.0
        %1366 = vmatpush1.msra.mxu0 0.0
        %1367 = vmatprep.subr.mxu0 0.0
        %1368 = vmatpush1.msra.mxu0 0.0
        %1369 = vmatprep.subr.mxu0 0.0
        %1370 = vmatpush1.msra.mxu0 0.0
        %1371 = vmatprep.subr.mxu0 0.0
        %1372 = vmatpush1.msra.mxu0 0.0
        %1373 = vmatprep.subr.mxu0 0.0
        %1374 = vmatpush1.msra.mxu0 0.0
        %1375 = vmatprep.subr.mxu0 0.0
        %1376 = vmatpush1.msra.mxu0 %v859
        %1377 = vmatprep.subr.mxu0 0.0
        %1378 = vmatpush1.msra.mxu0 %v858
        %1379 = vmatprep.subr.mxu0 0.0
        %1380 = vmatpush1.msra.mxu0 %v857
        %1381 = vmatprep.subr.mxu0 0.0
        %1382 = vmatpush1.msra.mxu0 %v856
        %1383 = vmatprep.subr.mxu0 0.0
        %1384 = vmatpush2.msra.mxu0 0.0
        %1385 = vmatprep.subr.mxu0 0.0
        %1386 = vmatpush2.msra.mxu0 0.0
        %1387 = vmatprep.subr.mxu0 0.0
        %1388 = vmatpush2.msra.mxu0 0.0
        %1389 = vmatprep.subr.mxu0 0.0
        %1390 = vmatpush2.msra.mxu0 0.0
        %1391 = vmatprep.subr.mxu0 0.0
        %1392 = vmatpush2.msra.mxu0 0.0
        %1393 = vmatprep.subr.mxu0 0.0
        %1394 = vmatpush2.msra.mxu0 0.0
        %1395 = vmatprep.subr.mxu0 0.0
        %1396 = vmatpush2.msra.mxu0 0.0
        %1397 = vmatprep.subr.mxu0 0.0
        %1398 = vmatpush2.msra.mxu0 0.0
        %1399 = vmatprep.subr.mxu0 0.0
        %1400 = vmatpush2.msra.mxu0 0.0
        %1401 = vmatprep.subr.mxu0 0.0
        %1402 = vmatpush2.msra.mxu0 0.0
        %1403 = vmatprep.subr.mxu0 0.0
        %1404 = vmatpush2.msra.mxu0 0.0
        %1405 = vmatprep.subr.mxu0 0.0
        %1406 = vmatpush2.msra.mxu0 0.0
        %1407 = vmatprep.subr.mxu0 0.0
        %1408 = vmatpush2.msra.mxu0 0.0
        %1409 = vmatprep.subr.mxu0 0.0
        %1410 = vmatpush2.msra.mxu0 0.0
        %1411 = vmatprep.subr.mxu0 0.0
        %1412 = vmatpush2.msra.mxu0 0.0
        %1413 = vmatprep.subr.mxu0 0.0
        %1414 = vmatpush2.msra.mxu0 0.0
        %1415 = vmatprep.mubr.f32.mxu0 0.0
        %1416 = vmatmul.mubr.f32.gmra.mxu0 %v1349
        %v1417 = vpop.f32.mrf.mxu0
        %v1418 = vadd.f32 0.0, %v1417
        %v1419 = vpop.f32.mrf.mxu0
        %1420 = vdwg.mxu0
        %s1421 = scalar_lea.vmem %s7, 384
        %v1422 = vld [vmem:[%s1421] sm:$0xff]
        %v1423 = vld [vmem:[%s1421 + $0x8] sm:$0xff]
        %v1424 = vld [vmem:[%s1421 + $0x10] sm:$0xff]
        %v1425 = vld [vmem:[%s1421 + $0x18] sm:$0xff]
        %v1426 = vld [vmem:[%s1421 + $0x20] sm:$0xff]
        %v1427 = vld [vmem:[%s1421 + $0x28] sm:$0xff]
        %v1428 = vld [vmem:[%s1421 + $0x30] sm:$0xff]
        %v1429 = vld [vmem:[%s1421 + $0x38] sm:$0xff]
        %v1430 = vld [vmem:[%s1421 + $0x40] sm:$0xff]
        %v1431 = vld [vmem:[%s1421 + $0x48] sm:$0xff]
        %v1432 = vld [vmem:[%s1421 + $0x50] sm:$0xff]
        %v1433 = vld [vmem:[%s1421 + $0x58] sm:$0xff]
        %v1434 = vld [vmem:[%s1421 + $0x60] sm:$0xff]
        %v1435 = vld [vmem:[%s1421 + $0x68] sm:$0xff]
        %v1436 = vld [vmem:[%s1421 + $0x70] sm:$0xff]
        %v1437 = vld [vmem:[%s1421 + $0x78] sm:$0xff]
        %1438 = vmatprep.subr.mxu0 0.0
        %1439 = vmatpush1.msra.mxu0 %v1437
        %1440 = vmatprep.subr.mxu0 0.0
        %1441 = vmatpush1.msra.mxu0 %v1436
        %1442 = vmatprep.subr.mxu0 0.0
        %1443 = vmatpush1.msra.mxu0 %v1435
        %1444 = vmatprep.subr.mxu0 0.0
        %1445 = vmatpush1.msra.mxu0 %v1434
        %1446 = vmatprep.subr.mxu0 0.0
        %1447 = vmatpush1.msra.mxu0 %v1433
        %1448 = vmatprep.subr.mxu0 0.0
        %1449 = vmatpush1.msra.mxu0 %v1432
        %1450 = vmatprep.subr.mxu0 0.0
        %1451 = vmatpush1.msra.mxu0 %v1431
        %1452 = vmatprep.subr.mxu0 0.0
        %1453 = vmatpush1.msra.mxu0 %v1430
        %1454 = vmatprep.subr.mxu0 0.0
        %1455 = vmatpush1.msra.mxu0 %v1429
        %1456 = vmatprep.subr.mxu0 0.0
        %1457 = vmatpush1.msra.mxu0 %v1428
        %1458 = vmatprep.subr.mxu0 0.0
        %1459 = vmatpush1.msra.mxu0 %v1427
        %1460 = vmatprep.subr.mxu0 0.0
        %1461 = vmatpush1.msra.mxu0 %v1426
        %1462 = vmatprep.subr.mxu0 0.0
        %1463 = vmatpush1.msra.mxu0 %v1425
        %1464 = vmatprep.subr.mxu0 0.0
        %1465 = vmatpush1.msra.mxu0 %v1424
        %1466 = vmatprep.subr.mxu0 0.0
        %1467 = vmatpush1.msra.mxu0 %v1423
        %1468 = vmatprep.subr.mxu0 0.0
        %1469 = vmatpush1.msra.mxu0 %v1422
        %1470 = vmatprep.subr.mxu0 0.0
        %1471 = vmatpush2.msra.mxu0 0.0
        %1472 = vmatprep.subr.mxu0 0.0
        %1473 = vmatpush2.msra.mxu0 0.0
        %1474 = vmatprep.subr.mxu0 0.0
        %1475 = vmatpush2.msra.mxu0 0.0
        %1476 = vmatprep.subr.mxu0 0.0
        %1477 = vmatpush2.msra.mxu0 0.0
        %1478 = vmatprep.subr.mxu0 0.0
        %1479 = vmatpush2.msra.mxu0 0.0
        %1480 = vmatprep.subr.mxu0 0.0
        %1481 = vmatpush2.msra.mxu0 0.0
        %1482 = vmatprep.subr.mxu0 0.0
        %1483 = vmatpush2.msra.mxu0 0.0
        %1484 = vmatprep.subr.mxu0 0.0
        %1485 = vmatpush2.msra.mxu0 0.0
        %1486 = vmatprep.subr.mxu0 0.0
        %1487 = vmatpush2.msra.mxu0 0.0
        %1488 = vmatprep.subr.mxu0 0.0
        %1489 = vmatpush2.msra.mxu0 0.0
        %1490 = vmatprep.subr.mxu0 0.0
        %1491 = vmatpush2.msra.mxu0 0.0
        %1492 = vmatprep.subr.mxu0 0.0
        %1493 = vmatpush2.msra.mxu0 0.0
        %1494 = vmatprep.subr.mxu0 0.0
        %1495 = vmatpush2.msra.mxu0 0.0
        %1496 = vmatprep.subr.mxu0 0.0
        %1497 = vmatpush2.msra.mxu0 0.0
        %1498 = vmatprep.subr.mxu0 0.0
        %1499 = vmatpush2.msra.mxu0 0.0
        %1500 = vmatprep.subr.mxu0 0.0
        %1501 = vmatpush2.msra.mxu0 0.0
        %1502 = vmatprep.mubr.f32.mxu0 0.0
        %1503 = vmatmul.mubr.f32.gmra.mxu0 %v1418
        %v1504 = vpop.f32.mrf.mxu0
        %v1505 = vadd.f32 0.0, %v1504
        %v1506 = vpop.f32.mrf.mxu0
        %1507 = vdwg.mxu0
        %v1508 = vadd.f32 %v1345, %v1505
        %s1509 = scalar_lea.vmem %s6, 32
        %v1510 = vld [vmem:[%s1509] sm:$0xff]
        %v1512 = vsel %vm861, %v1510, 0
        %1514 = vmatprep.subr.mxu0 0.0
        %1515 = vmatpush1.msra.mxu0 0.0
        %1516 = vmatprep.subr.mxu0 0.0
        %1517 = vmatpush1.msra.mxu0 0.0
        %1518 = vmatprep.subr.mxu0 0.0
        %1519 = vmatpush1.msra.mxu0 0.0
        %1520 = vmatprep.subr.mxu0 0.0
        %1521 = vmatpush1.msra.mxu0 0.0
        %1522 = vmatprep.subr.mxu0 0.0
        %1523 = vmatpush1.msra.mxu0 0.0
        %1524 = vmatprep.subr.mxu0 0.0
        %1525 = vmatpush1.msra.mxu0 0.0
        %1526 = vmatprep.subr.mxu0 0.0
        %1527 = vmatpush1.msra.mxu0 0.0
        %1528 = vmatprep.subr.mxu0 0.0
        %1529 = vmatpush1.msra.mxu0 0.0
        %1530 = vmatprep.subr.mxu0 0.0
        %1531 = vmatpush1.msra.mxu0 0.0
        %1532 = vmatprep.subr.mxu0 0.0
        %1533 = vmatpush1.msra.mxu0 0.0
        %1534 = vmatprep.subr.mxu0 0.0
        %1535 = vmatpush1.msra.mxu0 0.0
        %1536 = vmatprep.subr.mxu0 0.0
        %1537 = vmatpush1.msra.mxu0 0.0
        %1538 = vmatprep.subr.mxu0 0.0
        %1539 = vmatpush1.msra.mxu0 %v859
        %1540 = vmatprep.subr.mxu0 0.0
        %1541 = vmatpush1.msra.mxu0 %v858
        %1542 = vmatprep.subr.mxu0 0.0
        %1543 = vmatpush1.msra.mxu0 %v857
        %1544 = vmatprep.subr.mxu0 0.0
        %1545 = vmatpush1.msra.mxu0 %v856
        %1546 = vmatprep.subr.mxu0 0.0
        %1547 = vmatpush2.msra.mxu0 0.0
        %1548 = vmatprep.subr.mxu0 0.0
        %1549 = vmatpush2.msra.mxu0 0.0
        %1550 = vmatprep.subr.mxu0 0.0
        %1551 = vmatpush2.msra.mxu0 0.0
        %1552 = vmatprep.subr.mxu0 0.0
        %1553 = vmatpush2.msra.mxu0 0.0
        %1554 = vmatprep.subr.mxu0 0.0
        %1555 = vmatpush2.msra.mxu0 0.0
        %1556 = vmatprep.subr.mxu0 0.0
        %1557 = vmatpush2.msra.mxu0 0.0
        %1558 = vmatprep.subr.mxu0 0.0
        %1559 = vmatpush2.msra.mxu0 0.0
        %1560 = vmatprep.subr.mxu0 0.0
        %1561 = vmatpush2.msra.mxu0 0.0
        %1562 = vmatprep.subr.mxu0 0.0
        %1563 = vmatpush2.msra.mxu0 0.0
        %1564 = vmatprep.subr.mxu0 0.0
        %1565 = vmatpush2.msra.mxu0 0.0
        %1566 = vmatprep.subr.mxu0 0.0
        %1567 = vmatpush2.msra.mxu0 0.0
        %1568 = vmatprep.subr.mxu0 0.0
        %1569 = vmatpush2.msra.mxu0 0.0
        %1570 = vmatprep.subr.mxu0 0.0
        %1571 = vmatpush2.msra.mxu0 0.0
        %1572 = vmatprep.subr.mxu0 0.0
        %1573 = vmatpush2.msra.mxu0 0.0
        %1574 = vmatprep.subr.mxu0 0.0
        %1575 = vmatpush2.msra.mxu0 0.0
        %1576 = vmatprep.subr.mxu0 0.0
        %1577 = vmatpush2.msra.mxu0 0.0
        %1578 = vmatprep.mubr.f32.mxu0 0.0
        %1579 = vmatmul.mubr.f32.gmra.mxu0 %v1512
        %v1580 = vpop.f32.mrf.mxu0
        %v1581 = vadd.f32 0.0, %v1580
        %v1582 = vpop.f32.mrf.mxu0
        %1583 = vdwg.mxu0
        %s1584 = scalar_lea.vmem %s7, 512
        %v1585 = vld [vmem:[%s1584] sm:$0xff]
        %v1586 = vld [vmem:[%s1584 + $0x8] sm:$0xff]
        %v1587 = vld [vmem:[%s1584 + $0x10] sm:$0xff]
        %v1588 = vld [vmem:[%s1584 + $0x18] sm:$0xff]
        %v1589 = vld [vmem:[%s1584 + $0x20] sm:$0xff]
        %v1590 = vld [vmem:[%s1584 + $0x28] sm:$0xff]
        %v1591 = vld [vmem:[%s1584 + $0x30] sm:$0xff]
        %v1592 = vld [vmem:[%s1584 + $0x38] sm:$0xff]
        %v1593 = vld [vmem:[%s1584 + $0x40] sm:$0xff]
        %v1594 = vld [vmem:[%s1584 + $0x48] sm:$0xff]
        %v1595 = vld [vmem:[%s1584 + $0x50] sm:$0xff]
        %v1596 = vld [vmem:[%s1584 + $0x58] sm:$0xff]
        %v1597 = vld [vmem:[%s1584 + $0x60] sm:$0xff]
        %v1598 = vld [vmem:[%s1584 + $0x68] sm:$0xff]
        %v1599 = vld [vmem:[%s1584 + $0x70] sm:$0xff]
        %v1600 = vld [vmem:[%s1584 + $0x78] sm:$0xff]
        %1601 = vmatprep.subr.mxu0 0.0
        %1602 = vmatpush1.msra.mxu0 %v1600
        %1603 = vmatprep.subr.mxu0 0.0
        %1604 = vmatpush1.msra.mxu0 %v1599
        %1605 = vmatprep.subr.mxu0 0.0
        %1606 = vmatpush1.msra.mxu0 %v1598
        %1607 = vmatprep.subr.mxu0 0.0
        %1608 = vmatpush1.msra.mxu0 %v1597
        %1609 = vmatprep.subr.mxu0 0.0
        %1610 = vmatpush1.msra.mxu0 %v1596
        %1611 = vmatprep.subr.mxu0 0.0
        %1612 = vmatpush1.msra.mxu0 %v1595
        %1613 = vmatprep.subr.mxu0 0.0
        %1614 = vmatpush1.msra.mxu0 %v1594
        %1615 = vmatprep.subr.mxu0 0.0
        %1616 = vmatpush1.msra.mxu0 %v1593
        %1617 = vmatprep.subr.mxu0 0.0
        %1618 = vmatpush1.msra.mxu0 %v1592
        %1619 = vmatprep.subr.mxu0 0.0
        %1620 = vmatpush1.msra.mxu0 %v1591
        %1621 = vmatprep.subr.mxu0 0.0
        %1622 = vmatpush1.msra.mxu0 %v1590
        %1623 = vmatprep.subr.mxu0 0.0
        %1624 = vmatpush1.msra.mxu0 %v1589
        %1625 = vmatprep.subr.mxu0 0.0
        %1626 = vmatpush1.msra.mxu0 %v1588
        %1627 = vmatprep.subr.mxu0 0.0
        %1628 = vmatpush1.msra.mxu0 %v1587
        %1629 = vmatprep.subr.mxu0 0.0
        %1630 = vmatpush1.msra.mxu0 %v1586
        %1631 = vmatprep.subr.mxu0 0.0
        %1632 = vmatpush1.msra.mxu0 %v1585
        %1633 = vmatprep.subr.mxu0 0.0
        %1634 = vmatpush2.msra.mxu0 0.0
        %1635 = vmatprep.subr.mxu0 0.0
        %1636 = vmatpush2.msra.mxu0 0.0
        %1637 = vmatprep.subr.mxu0 0.0
        %1638 = vmatpush2.msra.mxu0 0.0
        %1639 = vmatprep.subr.mxu0 0.0
        %1640 = vmatpush2.msra.mxu0 0.0
        %1641 = vmatprep.subr.mxu0 0.0
        %1642 = vmatpush2.msra.mxu0 0.0
        %1643 = vmatprep.subr.mxu0 0.0
        %1644 = vmatpush2.msra.mxu0 0.0
        %1645 = vmatprep.subr.mxu0 0.0
        %1646 = vmatpush2.msra.mxu0 0.0
        %1647 = vmatprep.subr.mxu0 0.0
        %1648 = vmatpush2.msra.mxu0 0.0
        %1649 = vmatprep.subr.mxu0 0.0
        %1650 = vmatpush2.msra.mxu0 0.0
        %1651 = vmatprep.subr.mxu0 0.0
        %1652 = vmatpush2.msra.mxu0 0.0
        %1653 = vmatprep.subr.mxu0 0.0
        %1654 = vmatpush2.msra.mxu0 0.0
        %1655 = vmatprep.subr.mxu0 0.0
        %1656 = vmatpush2.msra.mxu0 0.0
        %1657 = vmatprep.subr.mxu0 0.0
        %1658 = vmatpush2.msra.mxu0 0.0
        %1659 = vmatprep.subr.mxu0 0.0
        %1660 = vmatpush2.msra.mxu0 0.0
        %1661 = vmatprep.subr.mxu0 0.0
        %1662 = vmatpush2.msra.mxu0 0.0
        %1663 = vmatprep.subr.mxu0 0.0
        %1664 = vmatpush2.msra.mxu0 0.0
        %1665 = vmatprep.mubr.f32.mxu0 0.0
        %1666 = vmatmul.mubr.f32.gmra.mxu0 %v1581
        %v1667 = vpop.f32.mrf.mxu0
        %v1668 = vadd.f32 0.0, %v1667
        %v1669 = vpop.f32.mrf.mxu0
        %1670 = vdwg.mxu0
        %v1671 = vadd.f32 %v1508, %v1668
        %s1672 = scalar_lea.vmem %s6, 40
        %v1673 = vld [vmem:[%s1672] sm:$0xff]
        %v1675 = vsel %vm861, %v1673, 0
        %1677 = vmatprep.subr.mxu0 0.0
        %1678 = vmatpush1.msra.mxu0 0.0
        %1679 = vmatprep.subr.mxu0 0.0
        %1680 = vmatpush1.msra.mxu0 0.0
        %1681 = vmatprep.subr.mxu0 0.0
        %1682 = vmatpush1.msra.mxu0 0.0
        %1683 = vmatprep.subr.mxu0 0.0
        %1684 = vmatpush1.msra.mxu0 0.0
        %1685 = vmatprep.subr.mxu0 0.0
        %1686 = vmatpush1.msra.mxu0 0.0
        %1687 = vmatprep.subr.mxu0 0.0
        %1688 = vmatpush1.msra.mxu0 0.0
        %1689 = vmatprep.subr.mxu0 0.0
        %1690 = vmatpush1.msra.mxu0 0.0
        %1691 = vmatprep.subr.mxu0 0.0
        %1692 = vmatpush1.msra.mxu0 0.0
        %1693 = vmatprep.subr.mxu0 0.0
        %1694 = vmatpush1.msra.mxu0 0.0
        %1695 = vmatprep.subr.mxu0 0.0
        %1696 = vmatpush1.msra.mxu0 0.0
        %1697 = vmatprep.subr.mxu0 0.0
        %1698 = vmatpush1.msra.mxu0 0.0
        %1699 = vmatprep.subr.mxu0 0.0
        %1700 = vmatpush1.msra.mxu0 0.0
        %1701 = vmatprep.subr.mxu0 0.0
        %1702 = vmatpush1.msra.mxu0 %v859
        %1703 = vmatprep.subr.mxu0 0.0
        %1704 = vmatpush1.msra.mxu0 %v858
        %1705 = vmatprep.subr.mxu0 0.0
        %1706 = vmatpush1.msra.mxu0 %v857
        %1707 = vmatprep.subr.mxu0 0.0
        %1708 = vmatpush1.msra.mxu0 %v856
        %1709 = vmatprep.subr.mxu0 0.0
        %1710 = vmatpush2.msra.mxu0 0.0
        %1711 = vmatprep.subr.mxu0 0.0
        %1712 = vmatpush2.msra.mxu0 0.0
        %1713 = vmatprep.subr.mxu0 0.0
        %1714 = vmatpush2.msra.mxu0 0.0
        %1715 = vmatprep.subr.mxu0 0.0
        %1716 = vmatpush2.msra.mxu0 0.0
        %1717 = vmatprep.subr.mxu0 0.0
        %1718 = vmatpush2.msra.mxu0 0.0
        %1719 = vmatprep.subr.mxu0 0.0
        %1720 = vmatpush2.msra.mxu0 0.0
        %1721 = vmatprep.subr.mxu0 0.0
        %1722 = vmatpush2.msra.mxu0 0.0
        %1723 = vmatprep.subr.mxu0 0.0
        %1724 = vmatpush2.msra.mxu0 0.0
        %1725 = vmatprep.subr.mxu0 0.0
        %1726 = vmatpush2.msra.mxu0 0.0
        %1727 = vmatprep.subr.mxu0 0.0
        %1728 = vmatpush2.msra.mxu0 0.0
        %1729 = vmatprep.subr.mxu0 0.0
        %1730 = vmatpush2.msra.mxu0 0.0
        %1731 = vmatprep.subr.mxu0 0.0
        %1732 = vmatpush2.msra.mxu0 0.0
        %1733 = vmatprep.subr.mxu0 0.0
        %1734 = vmatpush2.msra.mxu0 0.0
        %1735 = vmatprep.subr.mxu0 0.0
        %1736 = vmatpush2.msra.mxu0 0.0
        %1737 = vmatprep.subr.mxu0 0.0
        %1738 = vmatpush2.msra.mxu0 0.0
        %1739 = vmatprep.subr.mxu0 0.0
        %1740 = vmatpush2.msra.mxu0 0.0
        %1741 = vmatprep.mubr.f32.mxu0 0.0
        %1742 = vmatmul.mubr.f32.gmra.mxu0 %v1675
        %v1743 = vpop.f32.mrf.mxu0
        %v1744 = vadd.f32 0.0, %v1743
        %v1745 = vpop.f32.mrf.mxu0
        %1746 = vdwg.mxu0
        %s1747 = scalar_lea.vmem %s7, 640
        %v1748 = vld [vmem:[%s1747] sm:$0xff]
        %v1749 = vld [vmem:[%s1747 + $0x8] sm:$0xff]
        %v1750 = vld [vmem:[%s1747 + $0x10] sm:$0xff]
        %v1751 = vld [vmem:[%s1747 + $0x18] sm:$0xff]
        %v1752 = vld [vmem:[%s1747 + $0x20] sm:$0xff]
        %v1753 = vld [vmem:[%s1747 + $0x28] sm:$0xff]
        %v1754 = vld [vmem:[%s1747 + $0x30] sm:$0xff]
        %v1755 = vld [vmem:[%s1747 + $0x38] sm:$0xff]
        %v1756 = vld [vmem:[%s1747 + $0x40] sm:$0xff]
        %v1757 = vld [vmem:[%s1747 + $0x48] sm:$0xff]
        %v1758 = vld [vmem:[%s1747 + $0x50] sm:$0xff]
        %v1759 = vld [vmem:[%s1747 + $0x58] sm:$0xff]
        %v1760 = vld [vmem:[%s1747 + $0x60] sm:$0xff]
        %v1761 = vld [vmem:[%s1747 + $0x68] sm:$0xff]
        %v1762 = vld [vmem:[%s1747 + $0x70] sm:$0xff]
        %v1763 = vld [vmem:[%s1747 + $0x78] sm:$0xff]
        %1764 = vmatprep.subr.mxu0 0.0
        %1765 = vmatpush1.msra.mxu0 %v1763
        %1766 = vmatprep.subr.mxu0 0.0
        %1767 = vmatpush1.msra.mxu0 %v1762
        %1768 = vmatprep.subr.mxu0 0.0
        %1769 = vmatpush1.msra.mxu0 %v1761
        %1770 = vmatprep.subr.mxu0 0.0
        %1771 = vmatpush1.msra.mxu0 %v1760
        %1772 = vmatprep.subr.mxu0 0.0
        %1773 = vmatpush1.msra.mxu0 %v1759
        %1774 = vmatprep.subr.mxu0 0.0
        %1775 = vmatpush1.msra.mxu0 %v1758
        %1776 = vmatprep.subr.mxu0 0.0
        %1777 = vmatpush1.msra.mxu0 %v1757
        %1778 = vmatprep.subr.mxu0 0.0
        %1779 = vmatpush1.msra.mxu0 %v1756
        %1780 = vmatprep.subr.mxu0 0.0
        %1781 = vmatpush1.msra.mxu0 %v1755
        %1782 = vmatprep.subr.mxu0 0.0
        %1783 = vmatpush1.msra.mxu0 %v1754
        %1784 = vmatprep.subr.mxu0 0.0
        %1785 = vmatpush1.msra.mxu0 %v1753
        %1786 = vmatprep.subr.mxu0 0.0
        %1787 = vmatpush1.msra.mxu0 %v1752
        %1788 = vmatprep.subr.mxu0 0.0
        %1789 = vmatpush1.msra.mxu0 %v1751
        %1790 = vmatprep.subr.mxu0 0.0
        %1791 = vmatpush1.msra.mxu0 %v1750
        %1792 = vmatprep.subr.mxu0 0.0
        %1793 = vmatpush1.msra.mxu0 %v1749
        %1794 = vmatprep.subr.mxu0 0.0
        %1795 = vmatpush1.msra.mxu0 %v1748
        %1796 = vmatprep.subr.mxu0 0.0
        %1797 = vmatpush2.msra.mxu0 0.0
        %1798 = vmatprep.subr.mxu0 0.0
        %1799 = vmatpush2.msra.mxu0 0.0
        %1800 = vmatprep.subr.mxu0 0.0
        %1801 = vmatpush2.msra.mxu0 0.0
        %1802 = vmatprep.subr.mxu0 0.0
        %1803 = vmatpush2.msra.mxu0 0.0
        %1804 = vmatprep.subr.mxu0 0.0
        %1805 = vmatpush2.msra.mxu0 0.0
        %1806 = vmatprep.subr.mxu0 0.0
        %1807 = vmatpush2.msra.mxu0 0.0
        %1808 = vmatprep.subr.mxu0 0.0
        %1809 = vmatpush2.msra.mxu0 0.0
        %1810 = vmatprep.subr.mxu0 0.0
        %1811 = vmatpush2.msra.mxu0 0.0
        %1812 = vmatprep.subr.mxu0 0.0
        %1813 = vmatpush2.msra.mxu0 0.0
        %1814 = vmatprep.subr.mxu0 0.0
        %1815 = vmatpush2.msra.mxu0 0.0
        %1816 = vmatprep.subr.mxu0 0.0
        %1817 = vmatpush2.msra.mxu0 0.0
        %1818 = vmatprep.subr.mxu0 0.0
        %1819 = vmatpush2.msra.mxu0 0.0
        %1820 = vmatprep.subr.mxu0 0.0
        %1821 = vmatpush2.msra.mxu0 0.0
        %1822 = vmatprep.subr.mxu0 0.0
        %1823 = vmatpush2.msra.mxu0 0.0
        %1824 = vmatprep.subr.mxu0 0.0
        %1825 = vmatpush2.msra.mxu0 0.0
        %1826 = vmatprep.subr.mxu0 0.0
        %1827 = vmatpush2.msra.mxu0 0.0
        %1828 = vmatprep.mubr.f32.mxu0 0.0
        %1829 = vmatmul.mubr.f32.gmra.mxu0 %v1744
        %v1830 = vpop.f32.mrf.mxu0
        %v1831 = vadd.f32 0.0, %v1830
        %v1832 = vpop.f32.mrf.mxu0
        %1833 = vdwg.mxu0
        %v1834 = vadd.f32 %v1671, %v1831
        %s1835 = scalar_lea.vmem %s6, 48
        %v1836 = vld [vmem:[%s1835] sm:$0xff]
        %v1838 = vsel %vm861, %v1836, 0
        %1840 = vmatprep.subr.mxu0 0.0
        %1841 = vmatpush1.msra.mxu0 0.0
        %1842 = vmatprep.subr.mxu0 0.0
        %1843 = vmatpush1.msra.mxu0 0.0
        %1844 = vmatprep.subr.mxu0 0.0
        %1845 = vmatpush1.msra.mxu0 0.0
        %1846 = vmatprep.subr.mxu0 0.0
        %1847 = vmatpush1.msra.mxu0 0.0
        %1848 = vmatprep.subr.mxu0 0.0
        %1849 = vmatpush1.msra.mxu0 0.0
        %1850 = vmatprep.subr.mxu0 0.0
        %1851 = vmatpush1.msra.mxu0 0.0
        %1852 = vmatprep.subr.mxu0 0.0
        %1853 = vmatpush1.msra.mxu0 0.0
        %1854 = vmatprep.subr.mxu0 0.0
        %1855 = vmatpush1.msra.mxu0 0.0
        %1856 = vmatprep.subr.mxu0 0.0
        %1857 = vmatpush1.msra.mxu0 0.0
        %1858 = vmatprep.subr.mxu0 0.0
        %1859 = vmatpush1.msra.mxu0 0.0
        %1860 = vmatprep.subr.mxu0 0.0
        %1861 = vmatpush1.msra.mxu0 0.0
        %1862 = vmatprep.subr.mxu0 0.0
        %1863 = vmatpush1.msra.mxu0 0.0
        %1864 = vmatprep.subr.mxu0 0.0
        %1865 = vmatpush1.msra.mxu0 %v859
        %1866 = vmatprep.subr.mxu0 0.0
        %1867 = vmatpush1.msra.mxu0 %v858
        %1868 = vmatprep.subr.mxu0 0.0
        %1869 = vmatpush1.msra.mxu0 %v857
        %1870 = vmatprep.subr.mxu0 0.0
        %1871 = vmatpush1.msra.mxu0 %v856
        %1872 = vmatprep.subr.mxu0 0.0
        %1873 = vmatpush2.msra.mxu0 0.0
        %1874 = vmatprep.subr.mxu0 0.0
        %1875 = vmatpush2.msra.mxu0 0.0
        %1876 = vmatprep.subr.mxu0 0.0
        %1877 = vmatpush2.msra.mxu0 0.0
        %1878 = vmatprep.subr.mxu0 0.0
        %1879 = vmatpush2.msra.mxu0 0.0
        %1880 = vmatprep.subr.mxu0 0.0
        %1881 = vmatpush2.msra.mxu0 0.0
        %1882 = vmatprep.subr.mxu0 0.0
        %1883 = vmatpush2.msra.mxu0 0.0
        %1884 = vmatprep.subr.mxu0 0.0
        %1885 = vmatpush2.msra.mxu0 0.0
        %1886 = vmatprep.subr.mxu0 0.0
        %1887 = vmatpush2.msra.mxu0 0.0
        %1888 = vmatprep.subr.mxu0 0.0
        %1889 = vmatpush2.msra.mxu0 0.0
        %1890 = vmatprep.subr.mxu0 0.0
        %1891 = vmatpush2.msra.mxu0 0.0
        %1892 = vmatprep.subr.mxu0 0.0
        %1893 = vmatpush2.msra.mxu0 0.0
        %1894 = vmatprep.subr.mxu0 0.0
        %1895 = vmatpush2.msra.mxu0 0.0
        %1896 = vmatprep.subr.mxu0 0.0
        %1897 = vmatpush2.msra.mxu0 0.0
        %1898 = vmatprep.subr.mxu0 0.0
        %1899 = vmatpush2.msra.mxu0 0.0
        %1900 = vmatprep.subr.mxu0 0.0
        %1901 = vmatpush2.msra.mxu0 0.0
        %1902 = vmatprep.subr.mxu0 0.0
        %1903 = vmatpush2.msra.mxu0 0.0
        %1904 = vmatprep.mubr.f32.mxu0 0.0
        %1905 = vmatmul.mubr.f32.gmra.mxu0 %v1838
        %v1906 = vpop.f32.mrf.mxu0
        %v1907 = vadd.f32 0.0, %v1906
        %v1908 = vpop.f32.mrf.mxu0
        %1909 = vdwg.mxu0
        %s1910 = scalar_lea.vmem %s7, 768
        %v1911 = vld [vmem:[%s1910] sm:$0xff]
        %v1912 = vld [vmem:[%s1910 + $0x8] sm:$0xff]
        %v1913 = vld [vmem:[%s1910 + $0x10] sm:$0xff]
        %v1914 = vld [vmem:[%s1910 + $0x18] sm:$0xff]
        %v1915 = vld [vmem:[%s1910 + $0x20] sm:$0xff]
        %v1916 = vld [vmem:[%s1910 + $0x28] sm:$0xff]
        %v1917 = vld [vmem:[%s1910 + $0x30] sm:$0xff]
        %v1918 = vld [vmem:[%s1910 + $0x38] sm:$0xff]
        %v1919 = vld [vmem:[%s1910 + $0x40] sm:$0xff]
        %v1920 = vld [vmem:[%s1910 + $0x48] sm:$0xff]
        %v1921 = vld [vmem:[%s1910 + $0x50] sm:$0xff]
        %v1922 = vld [vmem:[%s1910 + $0x58] sm:$0xff]
        %v1923 = vld [vmem:[%s1910 + $0x60] sm:$0xff]
        %v1924 = vld [vmem:[%s1910 + $0x68] sm:$0xff]
        %v1925 = vld [vmem:[%s1910 + $0x70] sm:$0xff]
        %v1926 = vld [vmem:[%s1910 + $0x78] sm:$0xff]
        %1927 = vmatprep.subr.mxu0 0.0
        %1928 = vmatpush1.msra.mxu0 %v1926
        %1929 = vmatprep.subr.mxu0 0.0
        %1930 = vmatpush1.msra.mxu0 %v1925
        %1931 = vmatprep.subr.mxu0 0.0
        %1932 = vmatpush1.msra.mxu0 %v1924
        %1933 = vmatprep.subr.mxu0 0.0
        %1934 = vmatpush1.msra.mxu0 %v1923
        %1935 = vmatprep.subr.mxu0 0.0
        %1936 = vmatpush1.msra.mxu0 %v1922
        %1937 = vmatprep.subr.mxu0 0.0
        %1938 = vmatpush1.msra.mxu0 %v1921
        %1939 = vmatprep.subr.mxu0 0.0
        %1940 = vmatpush1.msra.mxu0 %v1920
        %1941 = vmatprep.subr.mxu0 0.0
        %1942 = vmatpush1.msra.mxu0 %v1919
        %1943 = vmatprep.subr.mxu0 0.0
        %1944 = vmatpush1.msra.mxu0 %v1918
        %1945 = vmatprep.subr.mxu0 0.0
        %1946 = vmatpush1.msra.mxu0 %v1917
        %1947 = vmatprep.subr.mxu0 0.0
        %1948 = vmatpush1.msra.mxu0 %v1916
        %1949 = vmatprep.subr.mxu0 0.0
        %1950 = vmatpush1.msra.mxu0 %v1915
        %1951 = vmatprep.subr.mxu0 0.0
        %1952 = vmatpush1.msra.mxu0 %v1914
        %1953 = vmatprep.subr.mxu0 0.0
        %1954 = vmatpush1.msra.mxu0 %v1913
        %1955 = vmatprep.subr.mxu0 0.0
        %1956 = vmatpush1.msra.mxu0 %v1912
        %1957 = vmatprep.subr.mxu0 0.0
        %1958 = vmatpush1.msra.mxu0 %v1911
        %1959 = vmatprep.subr.mxu0 0.0
        %1960 = vmatpush2.msra.mxu0 0.0
        %1961 = vmatprep.subr.mxu0 0.0
        %1962 = vmatpush2.msra.mxu0 0.0
        %1963 = vmatprep.subr.mxu0 0.0
        %1964 = vmatpush2.msra.mxu0 0.0
        %1965 = vmatprep.subr.mxu0 0.0
        %1966 = vmatpush2.msra.mxu0 0.0
        %1967 = vmatprep.subr.mxu0 0.0
        %1968 = vmatpush2.msra.mxu0 0.0
        %1969 = vmatprep.subr.mxu0 0.0
        %1970 = vmatpush2.msra.mxu0 0.0
        %1971 = vmatprep.subr.mxu0 0.0
        %1972 = vmatpush2.msra.mxu0 0.0
        %1973 = vmatprep.subr.mxu0 0.0
        %1974 = vmatpush2.msra.mxu0 0.0
        %1975 = vmatprep.subr.mxu0 0.0
        %1976 = vmatpush2.msra.mxu0 0.0
        %1977 = vmatprep.subr.mxu0 0.0
        %1978 = vmatpush2.msra.mxu0 0.0
        %1979 = vmatprep.subr.mxu0 0.0
        %1980 = vmatpush2.msra.mxu0 0.0
        %1981 = vmatprep.subr.mxu0 0.0
        %1982 = vmatpush2.msra.mxu0 0.0
        %1983 = vmatprep.subr.mxu0 0.0
        %1984 = vmatpush2.msra.mxu0 0.0
        %1985 = vmatprep.subr.mxu0 0.0
        %1986 = vmatpush2.msra.mxu0 0.0
        %1987 = vmatprep.subr.mxu0 0.0
        %1988 = vmatpush2.msra.mxu0 0.0
        %1989 = vmatprep.subr.mxu0 0.0
        %1990 = vmatpush2.msra.mxu0 0.0
        %1991 = vmatprep.mubr.f32.mxu0 0.0
        %1992 = vmatmul.mubr.f32.gmra.mxu0 %v1907
        %v1993 = vpop.f32.mrf.mxu0
        %v1994 = vadd.f32 0.0, %v1993
        %v1995 = vpop.f32.mrf.mxu0
        %1996 = vdwg.mxu0
        %v1997 = vadd.f32 %v1834, %v1994
        %s1998 = scalar_lea.vmem %s6, 56
        %v1999 = vld [vmem:[%s1998] sm:$0xff]
        %v2001 = vsel %vm861, %v1999, 0
        %2003 = vmatprep.subr.mxu0 0.0
        %2004 = vmatpush1.msra.mxu0 0.0
        %2005 = vmatprep.subr.mxu0 0.0
        %2006 = vmatpush1.msra.mxu0 0.0
        %2007 = vmatprep.subr.mxu0 0.0
        %2008 = vmatpush1.msra.mxu0 0.0
        %2009 = vmatprep.subr.mxu0 0.0
        %2010 = vmatpush1.msra.mxu0 0.0
        %2011 = vmatprep.subr.mxu0 0.0
        %2012 = vmatpush1.msra.mxu0 0.0
        %2013 = vmatprep.subr.mxu0 0.0
        %2014 = vmatpush1.msra.mxu0 0.0
        %2015 = vmatprep.subr.mxu0 0.0
        %2016 = vmatpush1.msra.mxu0 0.0
        %2017 = vmatprep.subr.mxu0 0.0
        %2018 = vmatpush1.msra.mxu0 0.0
        %2019 = vmatprep.subr.mxu0 0.0
        %2020 = vmatpush1.msra.mxu0 0.0
        %2021 = vmatprep.subr.mxu0 0.0
        %2022 = vmatpush1.msra.mxu0 0.0
        %2023 = vmatprep.subr.mxu0 0.0
        %2024 = vmatpush1.msra.mxu0 0.0
        %2025 = vmatprep.subr.mxu0 0.0
        %2026 = vmatpush1.msra.mxu0 0.0
        %2027 = vmatprep.subr.mxu0 0.0
        %2028 = vmatpush1.msra.mxu0 %v859
        %2029 = vmatprep.subr.mxu0 0.0
        %2030 = vmatpush1.msra.mxu0 %v858
        %2031 = vmatprep.subr.mxu0 0.0
        %2032 = vmatpush1.msra.mxu0 %v857
        %2033 = vmatprep.subr.mxu0 0.0
        %2034 = vmatpush1.msra.mxu0 %v856
        %2035 = vmatprep.subr.mxu0 0.0
        %2036 = vmatpush2.msra.mxu0 0.0
        %2037 = vmatprep.subr.mxu0 0.0
        %2038 = vmatpush2.msra.mxu0 0.0
        %2039 = vmatprep.subr.mxu0 0.0
        %2040 = vmatpush2.msra.mxu0 0.0
        %2041 = vmatprep.subr.mxu0 0.0
        %2042 = vmatpush2.msra.mxu0 0.0
        %2043 = vmatprep.subr.mxu0 0.0
        %2044 = vmatpush2.msra.mxu0 0.0
        %2045 = vmatprep.subr.mxu0 0.0
        %2046 = vmatpush2.msra.mxu0 0.0
        %2047 = vmatprep.subr.mxu0 0.0
        %2048 = vmatpush2.msra.mxu0 0.0
        %2049 = vmatprep.subr.mxu0 0.0
        %2050 = vmatpush2.msra.mxu0 0.0
        %2051 = vmatprep.subr.mxu0 0.0
        %2052 = vmatpush2.msra.mxu0 0.0
        %2053 = vmatprep.subr.mxu0 0.0
        %2054 = vmatpush2.msra.mxu0 0.0
        %2055 = vmatprep.subr.mxu0 0.0
        %2056 = vmatpush2.msra.mxu0 0.0
        %2057 = vmatprep.subr.mxu0 0.0
        %2058 = vmatpush2.msra.mxu0 0.0
        %2059 = vmatprep.subr.mxu0 0.0
        %2060 = vmatpush2.msra.mxu0 0.0
        %2061 = vmatprep.subr.mxu0 0.0
        %2062 = vmatpush2.msra.mxu0 0.0
        %2063 = vmatprep.subr.mxu0 0.0
        %2064 = vmatpush2.msra.mxu0 0.0
        %2065 = vmatprep.subr.mxu0 0.0
        %2066 = vmatpush2.msra.mxu0 0.0
        %2067 = vmatprep.mubr.f32.mxu0 0.0
        %2068 = vmatmul.mubr.f32.gmra.mxu0 %v2001
        %v2069 = vpop.f32.mrf.mxu0
        %v2070 = vadd.f32 0.0, %v2069
        %v2071 = vpop.f32.mrf.mxu0
        %2072 = vdwg.mxu0
        %s2073 = scalar_lea.vmem %s7, 896
        %v2074 = vld [vmem:[%s2073] sm:$0xff]
        %v2075 = vld [vmem:[%s2073 + $0x8] sm:$0xff]
        %v2076 = vld [vmem:[%s2073 + $0x10] sm:$0xff]
        %v2077 = vld [vmem:[%s2073 + $0x18] sm:$0xff]
        %v2078 = vld [vmem:[%s2073 + $0x20] sm:$0xff]
        %v2079 = vld [vmem:[%s2073 + $0x28] sm:$0xff]
        %v2080 = vld [vmem:[%s2073 + $0x30] sm:$0xff]
        %v2081 = vld [vmem:[%s2073 + $0x38] sm:$0xff]
        %v2082 = vld [vmem:[%s2073 + $0x40] sm:$0xff]
        %v2083 = vld [vmem:[%s2073 + $0x48] sm:$0xff]
        %v2084 = vld [vmem:[%s2073 + $0x50] sm:$0xff]
        %v2085 = vld [vmem:[%s2073 + $0x58] sm:$0xff]
        %v2086 = vld [vmem:[%s2073 + $0x60] sm:$0xff]
        %v2087 = vld [vmem:[%s2073 + $0x68] sm:$0xff]
        %v2088 = vld [vmem:[%s2073 + $0x70] sm:$0xff]
        %v2089 = vld [vmem:[%s2073 + $0x78] sm:$0xff]
        %2090 = vmatprep.subr.mxu0 0.0
        %2091 = vmatpush1.msra.mxu0 %v2089
        %2092 = vmatprep.subr.mxu0 0.0
        %2093 = vmatpush1.msra.mxu0 %v2088
        %2094 = vmatprep.subr.mxu0 0.0
        %2095 = vmatpush1.msra.mxu0 %v2087
        %2096 = vmatprep.subr.mxu0 0.0
        %2097 = vmatpush1.msra.mxu0 %v2086
        %2098 = vmatprep.subr.mxu0 0.0
        %2099 = vmatpush1.msra.mxu0 %v2085
        %2100 = vmatprep.subr.mxu0 0.0
        %2101 = vmatpush1.msra.mxu0 %v2084
        %2102 = vmatprep.subr.mxu0 0.0
        %2103 = vmatpush1.msra.mxu0 %v2083
        %2104 = vmatprep.subr.mxu0 0.0
        %2105 = vmatpush1.msra.mxu0 %v2082
        %2106 = vmatprep.subr.mxu0 0.0
        %2107 = vmatpush1.msra.mxu0 %v2081
        %2108 = vmatprep.subr.mxu0 0.0
        %2109 = vmatpush1.msra.mxu0 %v2080
        %2110 = vmatprep.subr.mxu0 0.0
        %2111 = vmatpush1.msra.mxu0 %v2079
        %2112 = vmatprep.subr.mxu0 0.0
        %2113 = vmatpush1.msra.mxu0 %v2078
        %2114 = vmatprep.subr.mxu0 0.0
        %2115 = vmatpush1.msra.mxu0 %v2077
        %2116 = vmatprep.subr.mxu0 0.0
        %2117 = vmatpush1.msra.mxu0 %v2076
        %2118 = vmatprep.subr.mxu0 0.0
        %2119 = vmatpush1.msra.mxu0 %v2075
        %2120 = vmatprep.subr.mxu0 0.0
        %2121 = vmatpush1.msra.mxu0 %v2074
        %2122 = vmatprep.subr.mxu0 0.0
        %2123 = vmatpush2.msra.mxu0 0.0
        %2124 = vmatprep.subr.mxu0 0.0
        %2125 = vmatpush2.msra.mxu0 0.0
        %2126 = vmatprep.subr.mxu0 0.0
        %2127 = vmatpush2.msra.mxu0 0.0
        %2128 = vmatprep.subr.mxu0 0.0
        %2129 = vmatpush2.msra.mxu0 0.0
        %2130 = vmatprep.subr.mxu0 0.0
        %2131 = vmatpush2.msra.mxu0 0.0
        %2132 = vmatprep.subr.mxu0 0.0
        %2133 = vmatpush2.msra.mxu0 0.0
        %2134 = vmatprep.subr.mxu0 0.0
        %2135 = vmatpush2.msra.mxu0 0.0
        %2136 = vmatprep.subr.mxu0 0.0
        %2137 = vmatpush2.msra.mxu0 0.0
        %2138 = vmatprep.subr.mxu0 0.0
        %2139 = vmatpush2.msra.mxu0 0.0
        %2140 = vmatprep.subr.mxu0 0.0
        %2141 = vmatpush2.msra.mxu0 0.0
        %2142 = vmatprep.subr.mxu0 0.0
        %2143 = vmatpush2.msra.mxu0 0.0
        %2144 = vmatprep.subr.mxu0 0.0
        %2145 = vmatpush2.msra.mxu0 0.0
        %2146 = vmatprep.subr.mxu0 0.0
        %2147 = vmatpush2.msra.mxu0 0.0
        %2148 = vmatprep.subr.mxu0 0.0
        %2149 = vmatpush2.msra.mxu0 0.0
        %2150 = vmatprep.subr.mxu0 0.0
        %2151 = vmatpush2.msra.mxu0 0.0
        %2152 = vmatprep.subr.mxu0 0.0
        %2153 = vmatpush2.msra.mxu0 0.0
        %2154 = vmatprep.mubr.f32.mxu0 0.0
        %2155 = vmatmul.mubr.f32.gmra.mxu0 %v2070
        %v2156 = vpop.f32.mrf.mxu0
        %v2157 = vadd.f32 0.0, %v2156
        %v2158 = vpop.f32.mrf.mxu0
        %2159 = vdwg.mxu0
        %v2160 = vadd.f32 %v1997, %v2157
        %s2161 = scalar_lea.vmem %s6, 64
        %v2162 = vld [vmem:[%s2161] sm:$0xff]
        %v2164 = vsel %vm861, %v2162, 0
        %2166 = vmatprep.subr.mxu0 0.0
        %2167 = vmatpush1.msra.mxu0 0.0
        %2168 = vmatprep.subr.mxu0 0.0
        %2169 = vmatpush1.msra.mxu0 0.0
        %2170 = vmatprep.subr.mxu0 0.0
        %2171 = vmatpush1.msra.mxu0 0.0
        %2172 = vmatprep.subr.mxu0 0.0
        %2173 = vmatpush1.msra.mxu0 0.0
        %2174 = vmatprep.subr.mxu0 0.0
        %2175 = vmatpush1.msra.mxu0 0.0
        %2176 = vmatprep.subr.mxu0 0.0
        %2177 = vmatpush1.msra.mxu0 0.0
        %2178 = vmatprep.subr.mxu0 0.0
        %2179 = vmatpush1.msra.mxu0 0.0
        %2180 = vmatprep.subr.mxu0 0.0
        %2181 = vmatpush1.msra.mxu0 0.0
        %2182 = vmatprep.subr.mxu0 0.0
        %2183 = vmatpush1.msra.mxu0 0.0
        %2184 = vmatprep.subr.mxu0 0.0
        %2185 = vmatpush1.msra.mxu0 0.0
        %2186 = vmatprep.subr.mxu0 0.0
        %2187 = vmatpush1.msra.mxu0 0.0
        %2188 = vmatprep.subr.mxu0 0.0
        %2189 = vmatpush1.msra.mxu0 0.0
        %2190 = vmatprep.subr.mxu0 0.0
        %2191 = vmatpush1.msra.mxu0 %v859
        %2192 = vmatprep.subr.mxu0 0.0
        %2193 = vmatpush1.msra.mxu0 %v858
        %2194 = vmatprep.subr.mxu0 0.0
        %2195 = vmatpush1.msra.mxu0 %v857
        %2196 = vmatprep.subr.mxu0 0.0
        %2197 = vmatpush1.msra.mxu0 %v856
        %2198 = vmatprep.subr.mxu0 0.0
        %2199 = vmatpush2.msra.mxu0 0.0
        %2200 = vmatprep.subr.mxu0 0.0
        %2201 = vmatpush2.msra.mxu0 0.0
        %2202 = vmatprep.subr.mxu0 0.0
        %2203 = vmatpush2.msra.mxu0 0.0
        %2204 = vmatprep.subr.mxu0 0.0
        %2205 = vmatpush2.msra.mxu0 0.0
        %2206 = vmatprep.subr.mxu0 0.0
        %2207 = vmatpush2.msra.mxu0 0.0
        %2208 = vmatprep.subr.mxu0 0.0
        %2209 = vmatpush2.msra.mxu0 0.0
        %2210 = vmatprep.subr.mxu0 0.0
        %2211 = vmatpush2.msra.mxu0 0.0
        %2212 = vmatprep.subr.mxu0 0.0
        %2213 = vmatpush2.msra.mxu0 0.0
        %2214 = vmatprep.subr.mxu0 0.0
        %2215 = vmatpush2.msra.mxu0 0.0
        %2216 = vmatprep.subr.mxu0 0.0
        %2217 = vmatpush2.msra.mxu0 0.0
        %2218 = vmatprep.subr.mxu0 0.0
        %2219 = vmatpush2.msra.mxu0 0.0
        %2220 = vmatprep.subr.mxu0 0.0
        %2221 = vmatpush2.msra.mxu0 0.0
        %2222 = vmatprep.subr.mxu0 0.0
        %2223 = vmatpush2.msra.mxu0 0.0
        %2224 = vmatprep.subr.mxu0 0.0
        %2225 = vmatpush2.msra.mxu0 0.0
        %2226 = vmatprep.subr.mxu0 0.0
        %2227 = vmatpush2.msra.mxu0 0.0
        %2228 = vmatprep.subr.mxu0 0.0
        %2229 = vmatpush2.msra.mxu0 0.0
        %2230 = vmatprep.mubr.f32.mxu0 0.0
        %2231 = vmatmul.mubr.f32.gmra.mxu0 %v2164
        %v2232 = vpop.f32.mrf.mxu0
        %v2233 = vadd.f32 0.0, %v2232
        %v2234 = vpop.f32.mrf.mxu0
        %2235 = vdwg.mxu0
        %s2236 = scalar_lea.vmem %s7, 1024
        %v2237 = vld [vmem:[%s2236] sm:$0xff]
        %v2238 = vld [vmem:[%s2236 + $0x8] sm:$0xff]
        %v2239 = vld [vmem:[%s2236 + $0x10] sm:$0xff]
        %v2240 = vld [vmem:[%s2236 + $0x18] sm:$0xff]
        %v2241 = vld [vmem:[%s2236 + $0x20] sm:$0xff]
        %v2242 = vld [vmem:[%s2236 + $0x28] sm:$0xff]
        %v2243 = vld [vmem:[%s2236 + $0x30] sm:$0xff]
        %v2244 = vld [vmem:[%s2236 + $0x38] sm:$0xff]
        %v2245 = vld [vmem:[%s2236 + $0x40] sm:$0xff]
        %v2246 = vld [vmem:[%s2236 + $0x48] sm:$0xff]
        %v2247 = vld [vmem:[%s2236 + $0x50] sm:$0xff]
        %v2248 = vld [vmem:[%s2236 + $0x58] sm:$0xff]
        %v2249 = vld [vmem:[%s2236 + $0x60] sm:$0xff]
        %v2250 = vld [vmem:[%s2236 + $0x68] sm:$0xff]
        %v2251 = vld [vmem:[%s2236 + $0x70] sm:$0xff]
        %v2252 = vld [vmem:[%s2236 + $0x78] sm:$0xff]
        %2253 = vmatprep.subr.mxu0 0.0
        %2254 = vmatpush1.msra.mxu0 %v2252
        %2255 = vmatprep.subr.mxu0 0.0
        %2256 = vmatpush1.msra.mxu0 %v2251
        %2257 = vmatprep.subr.mxu0 0.0
        %2258 = vmatpush1.msra.mxu0 %v2250
        %2259 = vmatprep.subr.mxu0 0.0
        %2260 = vmatpush1.msra.mxu0 %v2249
        %2261 = vmatprep.subr.mxu0 0.0
        %2262 = vmatpush1.msra.mxu0 %v2248
        %2263 = vmatprep.subr.mxu0 0.0
        %2264 = vmatpush1.msra.mxu0 %v2247
        %2265 = vmatprep.subr.mxu0 0.0
        %2266 = vmatpush1.msra.mxu0 %v2246
        %2267 = vmatprep.subr.mxu0 0.0
        %2268 = vmatpush1.msra.mxu0 %v2245
        %2269 = vmatprep.subr.mxu0 0.0
        %2270 = vmatpush1.msra.mxu0 %v2244
        %2271 = vmatprep.subr.mxu0 0.0
        %2272 = vmatpush1.msra.mxu0 %v2243
        %2273 = vmatprep.subr.mxu0 0.0
        %2274 = vmatpush1.msra.mxu0 %v2242
        %2275 = vmatprep.subr.mxu0 0.0
        %2276 = vmatpush1.msra.mxu0 %v2241
        %2277 = vmatprep.subr.mxu0 0.0
        %2278 = vmatpush1.msra.mxu0 %v2240
        %2279 = vmatprep.subr.mxu0 0.0
        %2280 = vmatpush1.msra.mxu0 %v2239
        %2281 = vmatprep.subr.mxu0 0.0
        %2282 = vmatpush1.msra.mxu0 %v2238
        %2283 = vmatprep.subr.mxu0 0.0
        %2284 = vmatpush1.msra.mxu0 %v2237
        %2285 = vmatprep.subr.mxu0 0.0
        %2286 = vmatpush2.msra.mxu0 0.0
        %2287 = vmatprep.subr.mxu0 0.0
        %2288 = vmatpush2.msra.mxu0 0.0
        %2289 = vmatprep.subr.mxu0 0.0
        %2290 = vmatpush2.msra.mxu0 0.0
        %2291 = vmatprep.subr.mxu0 0.0
        %2292 = vmatpush2.msra.mxu0 0.0
        %2293 = vmatprep.subr.mxu0 0.0
        %2294 = vmatpush2.msra.mxu0 0.0
        %2295 = vmatprep.subr.mxu0 0.0
        %2296 = vmatpush2.msra.mxu0 0.0
        %2297 = vmatprep.subr.mxu0 0.0
        %2298 = vmatpush2.msra.mxu0 0.0
        %2299 = vmatprep.subr.mxu0 0.0
        %2300 = vmatpush2.msra.mxu0 0.0
        %2301 = vmatprep.subr.mxu0 0.0
        %2302 = vmatpush2.msra.mxu0 0.0
        %2303 = vmatprep.subr.mxu0 0.0
        %2304 = vmatpush2.msra.mxu0 0.0
        %2305 = vmatprep.subr.mxu0 0.0
        %2306 = vmatpush2.msra.mxu0 0.0
        %2307 = vmatprep.subr.mxu0 0.0
        %2308 = vmatpush2.msra.mxu0 0.0
        %2309 = vmatprep.subr.mxu0 0.0
        %2310 = vmatpush2.msra.mxu0 0.0
        %2311 = vmatprep.subr.mxu0 0.0
        %2312 = vmatpush2.msra.mxu0 0.0
        %2313 = vmatprep.subr.mxu0 0.0
        %2314 = vmatpush2.msra.mxu0 0.0
        %2315 = vmatprep.subr.mxu0 0.0
        %2316 = vmatpush2.msra.mxu0 0.0
        %2317 = vmatprep.mubr.f32.mxu0 0.0
        %2318 = vmatmul.mubr.f32.gmra.mxu0 %v2233
        %v2319 = vpop.f32.mrf.mxu0
        %v2320 = vadd.f32 0.0, %v2319
        %v2321 = vpop.f32.mrf.mxu0
        %2322 = vdwg.mxu0
        %v2323 = vadd.f32 %v2160, %v2320
        %v2324 = vld [vmem:[%s8] sm:$0x1]
        %v2326 = vlaneseq
        %v2327 = vshrl.u32 %v2326, 7
        %v2328 = vsub.s32 0, %v2327
        %v2329 = vrot.slane %v2324, %v2328
        %v2331 = vadd.f32 %v2323, %v2329
        %v2332 = vld [vmem:[%s10] sm:$0x1]
        %v2333 = vld [vmem:[%s9] sm:$0xff]
        %v2334 = vld [vmem:[%s9 + $0x8] sm:$0xff]
        %v2335 = vld [vmem:[%s9 + $0x10] sm:$0xff]
        %v2336 = vld [vmem:[%s9 + $0x18] sm:$0xff]
        %v2338 = vsel %vm861, %v2331, 0
        %2340 = vmatprep.subr.mxu0 0.0
        %2341 = vmatpush1.msra.mxu0 0.0
        %2342 = vmatprep.subr.mxu0 0.0
        %2343 = vmatpush1.msra.mxu0 0.0
        %2344 = vmatprep.subr.mxu0 0.0
        %2345 = vmatpush1.msra.mxu0 0.0
        %2346 = vmatprep.subr.mxu0 0.0
        %2347 = vmatpush1.msra.mxu0 0.0
        %2348 = vmatprep.subr.mxu0 0.0
        %2349 = vmatpush1.msra.mxu0 0.0
        %2350 = vmatprep.subr.mxu0 0.0
        %2351 = vmatpush1.msra.mxu0 0.0
        %2352 = vmatprep.subr.mxu0 0.0
        %2353 = vmatpush1.msra.mxu0 0.0
        %2354 = vmatprep.subr.mxu0 0.0
        %2355 = vmatpush1.msra.mxu0 0.0
        %2356 = vmatprep.subr.mxu0 0.0
        %2357 = vmatpush1.msra.mxu0 0.0
        %2358 = vmatprep.subr.mxu0 0.0
        %2359 = vmatpush1.msra.mxu0 0.0
        %2360 = vmatprep.subr.mxu0 0.0
        %2361 = vmatpush1.msra.mxu0 0.0
        %2362 = vmatprep.subr.mxu0 0.0
        %2363 = vmatpush1.msra.mxu0 0.0
        %2364 = vmatprep.subr.mxu0 0.0
        %2365 = vmatpush1.msra.mxu0 %v2336
        %2366 = vmatprep.subr.mxu0 0.0
        %2367 = vmatpush1.msra.mxu0 %v2335
        %2368 = vmatprep.subr.mxu0 0.0
        %2369 = vmatpush1.msra.mxu0 %v2334
        %2370 = vmatprep.subr.mxu0 0.0
        %2371 = vmatpush1.msra.mxu0 %v2333
        %2372 = vmatprep.subr.mxu0 0.0
        %2373 = vmatpush2.msra.mxu0 0.0
        %2374 = vmatprep.subr.mxu0 0.0
        %2375 = vmatpush2.msra.mxu0 0.0
        %2376 = vmatprep.subr.mxu0 0.0
        %2377 = vmatpush2.msra.mxu0 0.0
        %2378 = vmatprep.subr.mxu0 0.0
        %2379 = vmatpush2.msra.mxu0 0.0
        %2380 = vmatprep.subr.mxu0 0.0
        %2381 = vmatpush2.msra.mxu0 0.0
        %2382 = vmatprep.subr.mxu0 0.0
        %2383 = vmatpush2.msra.mxu0 0.0
        %2384 = vmatprep.subr.mxu0 0.0
        %2385 = vmatpush2.msra.mxu0 0.0
        %2386 = vmatprep.subr.mxu0 0.0
        %2387 = vmatpush2.msra.mxu0 0.0
        %2388 = vmatprep.subr.mxu0 0.0
        %2389 = vmatpush2.msra.mxu0 0.0
        %2390 = vmatprep.subr.mxu0 0.0
        %2391 = vmatpush2.msra.mxu0 0.0
        %2392 = vmatprep.subr.mxu0 0.0
        %2393 = vmatpush2.msra.mxu0 0.0
        %2394 = vmatprep.subr.mxu0 0.0
        %2395 = vmatpush2.msra.mxu0 0.0
        %2396 = vmatprep.subr.mxu0 0.0
        %2397 = vmatpush2.msra.mxu0 0.0
        %2398 = vmatprep.subr.mxu0 0.0
        %2399 = vmatpush2.msra.mxu0 0.0
        %2400 = vmatprep.subr.mxu0 0.0
        %2401 = vmatpush2.msra.mxu0 0.0
        %2402 = vmatprep.subr.mxu0 0.0
        %2403 = vmatpush2.msra.mxu0 0.0
        %2404 = vmatprep.mubr.f32.mxu0 0.0
        %2405 = vmatmul.mubr.f32.gmra.mxu0 %v2338
        %v2406 = vpop.f32.mrf.mxu0
        %v2407 = vadd.f32 0.0, %v2406
        %v2408 = vpop.f32.mrf.mxu0
        %2409 = vdwg.mxu0
        %v2410 = vadd.f32 %v2332, %v2407
        %s2411 = scalar_lea.vmem %s9, 32
        %v2412 = vld [vmem:[%s2411] sm:$0xff]
        %v2413 = vld [vmem:[%s2411 + $0x8] sm:$0xff]
        %v2414 = vld [vmem:[%s2411 + $0x10] sm:$0xff]
        %v2415 = vld [vmem:[%s2411 + $0x18] sm:$0xff]
        %v2416 = vrot.slane %v2331, 1
        %v2417 = vsel %vm861, %v2416, 0
        %2419 = vmatprep.subr.mxu0 0.0
        %2420 = vmatpush1.msra.mxu0 0.0
        %2421 = vmatprep.subr.mxu0 0.0
        %2422 = vmatpush1.msra.mxu0 0.0
        %2423 = vmatprep.subr.mxu0 0.0
        %2424 = vmatpush1.msra.mxu0 0.0
        %2425 = vmatprep.subr.mxu0 0.0
        %2426 = vmatpush1.msra.mxu0 0.0
        %2427 = vmatprep.subr.mxu0 0.0
        %2428 = vmatpush1.msra.mxu0 0.0
        %2429 = vmatprep.subr.mxu0 0.0
        %2430 = vmatpush1.msra.mxu0 0.0
        %2431 = vmatprep.subr.mxu0 0.0
        %2432 = vmatpush1.msra.mxu0 0.0
        %2433 = vmatprep.subr.mxu0 0.0
        %2434 = vmatpush1.msra.mxu0 0.0
        %2435 = vmatprep.subr.mxu0 0.0
        %2436 = vmatpush1.msra.mxu0 0.0
        %2437 = vmatprep.subr.mxu0 0.0
        %2438 = vmatpush1.msra.mxu0 0.0
        %2439 = vmatprep.subr.mxu0 0.0
        %2440 = vmatpush1.msra.mxu0 0.0
        %2441 = vmatprep.subr.mxu0 0.0
        %2442 = vmatpush1.msra.mxu0 0.0
        %2443 = vmatprep.subr.mxu0 0.0
        %2444 = vmatpush1.msra.mxu0 %v2415
        %2445 = vmatprep.subr.mxu0 0.0
        %2446 = vmatpush1.msra.mxu0 %v2414
        %2447 = vmatprep.subr.mxu0 0.0
        %2448 = vmatpush1.msra.mxu0 %v2413
        %2449 = vmatprep.subr.mxu0 0.0
        %2450 = vmatpush1.msra.mxu0 %v2412
        %2451 = vmatprep.subr.mxu0 0.0
        %2452 = vmatpush2.msra.mxu0 0.0
        %2453 = vmatprep.subr.mxu0 0.0
        %2454 = vmatpush2.msra.mxu0 0.0
        %2455 = vmatprep.subr.mxu0 0.0
        %2456 = vmatpush2.msra.mxu0 0.0
        %2457 = vmatprep.subr.mxu0 0.0
        %2458 = vmatpush2.msra.mxu0 0.0
        %2459 = vmatprep.subr.mxu0 0.0
        %2460 = vmatpush2.msra.mxu0 0.0
        %2461 = vmatprep.subr.mxu0 0.0
        %2462 = vmatpush2.msra.mxu0 0.0
        %2463 = vmatprep.subr.mxu0 0.0
        %2464 = vmatpush2.msra.mxu0 0.0
        %2465 = vmatprep.subr.mxu0 0.0
        %2466 = vmatpush2.msra.mxu0 0.0
        %2467 = vmatprep.subr.mxu0 0.0
        %2468 = vmatpush2.msra.mxu0 0.0
        %2469 = vmatprep.subr.mxu0 0.0
        %2470 = vmatpush2.msra.mxu0 0.0
        %2471 = vmatprep.subr.mxu0 0.0
        %2472 = vmatpush2.msra.mxu0 0.0
        %2473 = vmatprep.subr.mxu0 0.0
        %2474 = vmatpush2.msra.mxu0 0.0
        %2475 = vmatprep.subr.mxu0 0.0
        %2476 = vmatpush2.msra.mxu0 0.0
        %2477 = vmatprep.subr.mxu0 0.0
        %2478 = vmatpush2.msra.mxu0 0.0
        %2479 = vmatprep.subr.mxu0 0.0
        %2480 = vmatpush2.msra.mxu0 0.0
        %2481 = vmatprep.subr.mxu0 0.0
        %2482 = vmatpush2.msra.mxu0 0.0
        %2483 = vmatprep.mubr.f32.mxu0 0.0
        %2484 = vmatmul.mubr.f32.gmra.mxu0 %v2417
        %v2485 = vpop.f32.mrf.mxu0
        %v2486 = vadd.f32 0.0, %v2485
        %v2487 = vpop.f32.mrf.mxu0
        %2488 = vdwg.mxu0
        %v2489 = vadd.f32 %v2410, %v2486
        %s2490 = scalar_lea.vmem %s9, 64
        %v2491 = vld [vmem:[%s2490] sm:$0xff]
        %v2492 = vld [vmem:[%s2490 + $0x8] sm:$0xff]
        %v2493 = vld [vmem:[%s2490 + $0x10] sm:$0xff]
        %v2494 = vld [vmem:[%s2490 + $0x18] sm:$0xff]
        %v2495 = vrot.slane %v2331, 2
        %v2496 = vsel %vm861, %v2495, 0
        %2498 = vmatprep.subr.mxu0 0.0
        %2499 = vmatpush1.msra.mxu0 0.0
        %2500 = vmatprep.subr.mxu0 0.0
        %2501 = vmatpush1.msra.mxu0 0.0
        %2502 = vmatprep.subr.mxu0 0.0
        %2503 = vmatpush1.msra.mxu0 0.0
        %2504 = vmatprep.subr.mxu0 0.0
        %2505 = vmatpush1.msra.mxu0 0.0
        %2506 = vmatprep.subr.mxu0 0.0
        %2507 = vmatpush1.msra.mxu0 0.0
        %2508 = vmatprep.subr.mxu0 0.0
        %2509 = vmatpush1.msra.mxu0 0.0
        %2510 = vmatprep.subr.mxu0 0.0
        %2511 = vmatpush1.msra.mxu0 0.0
        %2512 = vmatprep.subr.mxu0 0.0
        %2513 = vmatpush1.msra.mxu0 0.0
        %2514 = vmatprep.subr.mxu0 0.0
        %2515 = vmatpush1.msra.mxu0 0.0
        %2516 = vmatprep.subr.mxu0 0.0
        %2517 = vmatpush1.msra.mxu0 0.0
        %2518 = vmatprep.subr.mxu0 0.0
        %2519 = vmatpush1.msra.mxu0 0.0
        %2520 = vmatprep.subr.mxu0 0.0
        %2521 = vmatpush1.msra.mxu0 0.0
        %2522 = vmatprep.subr.mxu0 0.0
        %2523 = vmatpush1.msra.mxu0 %v2494
        %2524 = vmatprep.subr.mxu0 0.0
        %2525 = vmatpush1.msra.mxu0 %v2493
        %2526 = vmatprep.subr.mxu0 0.0
        %2527 = vmatpush1.msra.mxu0 %v2492
        %2528 = vmatprep.subr.mxu0 0.0
        %2529 = vmatpush1.msra.mxu0 %v2491
        %2530 = vmatprep.subr.mxu0 0.0
        %2531 = vmatpush2.msra.mxu0 0.0
        %2532 = vmatprep.subr.mxu0 0.0
        %2533 = vmatpush2.msra.mxu0 0.0
        %2534 = vmatprep.subr.mxu0 0.0
        %2535 = vmatpush2.msra.mxu0 0.0
        %2536 = vmatprep.subr.mxu0 0.0
        %2537 = vmatpush2.msra.mxu0 0.0
        %2538 = vmatprep.subr.mxu0 0.0
        %2539 = vmatpush2.msra.mxu0 0.0
        %2540 = vmatprep.subr.mxu0 0.0
        %2541 = vmatpush2.msra.mxu0 0.0
        %2542 = vmatprep.subr.mxu0 0.0
        %2543 = vmatpush2.msra.mxu0 0.0
        %2544 = vmatprep.subr.mxu0 0.0
        %2545 = vmatpush2.msra.mxu0 0.0
        %2546 = vmatprep.subr.mxu0 0.0
        %2547 = vmatpush2.msra.mxu0 0.0
        %2548 = vmatprep.subr.mxu0 0.0
        %2549 = vmatpush2.msra.mxu0 0.0
        %2550 = vmatprep.subr.mxu0 0.0
        %2551 = vmatpush2.msra.mxu0 0.0
        %2552 = vmatprep.subr.mxu0 0.0
        %2553 = vmatpush2.msra.mxu0 0.0
        %2554 = vmatprep.subr.mxu0 0.0
        %2555 = vmatpush2.msra.mxu0 0.0
        %2556 = vmatprep.subr.mxu0 0.0
        %2557 = vmatpush2.msra.mxu0 0.0
        %2558 = vmatprep.subr.mxu0 0.0
        %2559 = vmatpush2.msra.mxu0 0.0
        %2560 = vmatprep.subr.mxu0 0.0
        %2561 = vmatpush2.msra.mxu0 0.0
        %2562 = vmatprep.mubr.f32.mxu0 0.0
        %2563 = vmatmul.mubr.f32.gmra.mxu0 %v2496
        %v2564 = vpop.f32.mrf.mxu0
        %v2565 = vadd.f32 0.0, %v2564
        %v2566 = vpop.f32.mrf.mxu0
        %2567 = vdwg.mxu0
        %v2568 = vadd.f32 %v2489, %v2565
        %s2569 = scalar_lea.vmem %s9, 96
        %v2570 = vld [vmem:[%s2569] sm:$0xff]
        %v2571 = vld [vmem:[%s2569 + $0x8] sm:$0xff]
        %v2572 = vld [vmem:[%s2569 + $0x10] sm:$0xff]
        %v2573 = vld [vmem:[%s2569 + $0x18] sm:$0xff]
        %v2574 = vrot.slane %v2331, 3
        %v2575 = vsel %vm861, %v2574, 0
        %2577 = vmatprep.subr.mxu0 0.0
        %2578 = vmatpush1.msra.mxu0 0.0
        %2579 = vmatprep.subr.mxu0 0.0
        %2580 = vmatpush1.msra.mxu0 0.0
        %2581 = vmatprep.subr.mxu0 0.0
        %2582 = vmatpush1.msra.mxu0 0.0
        %2583 = vmatprep.subr.mxu0 0.0
        %2584 = vmatpush1.msra.mxu0 0.0
        %2585 = vmatprep.subr.mxu0 0.0
        %2586 = vmatpush1.msra.mxu0 0.0
        %2587 = vmatprep.subr.mxu0 0.0
        %2588 = vmatpush1.msra.mxu0 0.0
        %2589 = vmatprep.subr.mxu0 0.0
        %2590 = vmatpush1.msra.mxu0 0.0
        %2591 = vmatprep.subr.mxu0 0.0
        %2592 = vmatpush1.msra.mxu0 0.0
        %2593 = vmatprep.subr.mxu0 0.0
        %2594 = vmatpush1.msra.mxu0 0.0
        %2595 = vmatprep.subr.mxu0 0.0
        %2596 = vmatpush1.msra.mxu0 0.0
        %2597 = vmatprep.subr.mxu0 0.0
        %2598 = vmatpush1.msra.mxu0 0.0
        %2599 = vmatprep.subr.mxu0 0.0
        %2600 = vmatpush1.msra.mxu0 0.0
        %2601 = vmatprep.subr.mxu0 0.0
        %2602 = vmatpush1.msra.mxu0 %v2573
        %2603 = vmatprep.subr.mxu0 0.0
        %2604 = vmatpush1.msra.mxu0 %v2572
        %2605 = vmatprep.subr.mxu0 0.0
        %2606 = vmatpush1.msra.mxu0 %v2571
        %2607 = vmatprep.subr.mxu0 0.0
        %2608 = vmatpush1.msra.mxu0 %v2570
        %2609 = vmatprep.subr.mxu0 0.0
        %2610 = vmatpush2.msra.mxu0 0.0
        %2611 = vmatprep.subr.mxu0 0.0
        %2612 = vmatpush2.msra.mxu0 0.0
        %2613 = vmatprep.subr.mxu0 0.0
        %2614 = vmatpush2.msra.mxu0 0.0
        %2615 = vmatprep.subr.mxu0 0.0
        %2616 = vmatpush2.msra.mxu0 0.0
        %2617 = vmatprep.subr.mxu0 0.0
        %2618 = vmatpush2.msra.mxu0 0.0
        %2619 = vmatprep.subr.mxu0 0.0
        %2620 = vmatpush2.msra.mxu0 0.0
        %2621 = vmatprep.subr.mxu0 0.0
        %2622 = vmatpush2.msra.mxu0 0.0
        %2623 = vmatprep.subr.mxu0 0.0
        %2624 = vmatpush2.msra.mxu0 0.0
        %2625 = vmatprep.subr.mxu0 0.0
        %2626 = vmatpush2.msra.mxu0 0.0
        %2627 = vmatprep.subr.mxu0 0.0
        %2628 = vmatpush2.msra.mxu0 0.0
        %2629 = vmatprep.subr.mxu0 0.0
        %2630 = vmatpush2.msra.mxu0 0.0
        %2631 = vmatprep.subr.mxu0 0.0
        %2632 = vmatpush2.msra.mxu0 0.0
        %2633 = vmatprep.subr.mxu0 0.0
        %2634 = vmatpush2.msra.mxu0 0.0
        %2635 = vmatprep.subr.mxu0 0.0
        %2636 = vmatpush2.msra.mxu0 0.0
        %2637 = vmatprep.subr.mxu0 0.0
        %2638 = vmatpush2.msra.mxu0 0.0
        %2639 = vmatprep.subr.mxu0 0.0
        %2640 = vmatpush2.msra.mxu0 0.0
        %2641 = vmatprep.mubr.f32.mxu0 0.0
        %2642 = vmatmul.mubr.f32.gmra.mxu0 %v2575
        %v2643 = vpop.f32.mrf.mxu0
        %v2644 = vadd.f32 0.0, %v2643
        %v2645 = vpop.f32.mrf.mxu0
        %2646 = vdwg.mxu0
        %v2647 = vadd.f32 %v2568, %v2644
        %s2648 = scalar_lea.vmem %s9, 128
        %v2649 = vld [vmem:[%s2648] sm:$0xff]
        %v2650 = vld [vmem:[%s2648 + $0x8] sm:$0xff]
        %v2651 = vld [vmem:[%s2648 + $0x10] sm:$0xff]
        %v2652 = vld [vmem:[%s2648 + $0x18] sm:$0xff]
        %v2653 = vrot.slane %v2331, 4
        %v2654 = vsel %vm861, %v2653, 0
        %2656 = vmatprep.subr.mxu0 0.0
        %2657 = vmatpush1.msra.mxu0 0.0
        %2658 = vmatprep.subr.mxu0 0.0
        %2659 = vmatpush1.msra.mxu0 0.0
        %2660 = vmatprep.subr.mxu0 0.0
        %2661 = vmatpush1.msra.mxu0 0.0
        %2662 = vmatprep.subr.mxu0 0.0
        %2663 = vmatpush1.msra.mxu0 0.0
        %2664 = vmatprep.subr.mxu0 0.0
        %2665 = vmatpush1.msra.mxu0 0.0
        %2666 = vmatprep.subr.mxu0 0.0
        %2667 = vmatpush1.msra.mxu0 0.0
        %2668 = vmatprep.subr.mxu0 0.0
        %2669 = vmatpush1.msra.mxu0 0.0
        %2670 = vmatprep.subr.mxu0 0.0
        %2671 = vmatpush1.msra.mxu0 0.0
        %2672 = vmatprep.subr.mxu0 0.0
        %2673 = vmatpush1.msra.mxu0 0.0
        %2674 = vmatprep.subr.mxu0 0.0
        %2675 = vmatpush1.msra.mxu0 0.0
        %2676 = vmatprep.subr.mxu0 0.0
        %2677 = vmatpush1.msra.mxu0 0.0
        %2678 = vmatprep.subr.mxu0 0.0
        %2679 = vmatpush1.msra.mxu0 0.0
        %2680 = vmatprep.subr.mxu0 0.0
        %2681 = vmatpush1.msra.mxu0 %v2652
        %2682 = vmatprep.subr.mxu0 0.0
        %2683 = vmatpush1.msra.mxu0 %v2651
        %2684 = vmatprep.subr.mxu0 0.0
        %2685 = vmatpush1.msra.mxu0 %v2650
        %2686 = vmatprep.subr.mxu0 0.0
        %2687 = vmatpush1.msra.mxu0 %v2649
        %2688 = vmatprep.subr.mxu0 0.0
        %2689 = vmatpush2.msra.mxu0 0.0
        %2690 = vmatprep.subr.mxu0 0.0
        %2691 = vmatpush2.msra.mxu0 0.0
        %2692 = vmatprep.subr.mxu0 0.0
        %2693 = vmatpush2.msra.mxu0 0.0
        %2694 = vmatprep.subr.mxu0 0.0
        %2695 = vmatpush2.msra.mxu0 0.0
        %2696 = vmatprep.subr.mxu0 0.0
        %2697 = vmatpush2.msra.mxu0 0.0
        %2698 = vmatprep.subr.mxu0 0.0
        %2699 = vmatpush2.msra.mxu0 0.0
        %2700 = vmatprep.subr.mxu0 0.0
        %2701 = vmatpush2.msra.mxu0 0.0
        %2702 = vmatprep.subr.mxu0 0.0
        %2703 = vmatpush2.msra.mxu0 0.0
        %2704 = vmatprep.subr.mxu0 0.0
        %2705 = vmatpush2.msra.mxu0 0.0
        %2706 = vmatprep.subr.mxu0 0.0
        %2707 = vmatpush2.msra.mxu0 0.0
        %2708 = vmatprep.subr.mxu0 0.0
        %2709 = vmatpush2.msra.mxu0 0.0
        %2710 = vmatprep.subr.mxu0 0.0
        %2711 = vmatpush2.msra.mxu0 0.0
        %2712 = vmatprep.subr.mxu0 0.0
        %2713 = vmatpush2.msra.mxu0 0.0
        %2714 = vmatprep.subr.mxu0 0.0
        %2715 = vmatpush2.msra.mxu0 0.0
        %2716 = vmatprep.subr.mxu0 0.0
        %2717 = vmatpush2.msra.mxu0 0.0
        %2718 = vmatprep.subr.mxu0 0.0
        %2719 = vmatpush2.msra.mxu0 0.0
        %2720 = vmatprep.mubr.f32.mxu0 0.0
        %2721 = vmatmul.mubr.f32.gmra.mxu0 %v2654
        %v2722 = vpop.f32.mrf.mxu0
        %v2723 = vadd.f32 0.0, %v2722
        %v2724 = vpop.f32.mrf.mxu0
        %2725 = vdwg.mxu0
        %v2726 = vadd.f32 %v2647, %v2723
        %s2727 = scalar_lea.vmem %s9, 160
        %v2728 = vld [vmem:[%s2727] sm:$0xff]
        %v2729 = vld [vmem:[%s2727 + $0x8] sm:$0xff]
        %v2730 = vld [vmem:[%s2727 + $0x10] sm:$0xff]
        %v2731 = vld [vmem:[%s2727 + $0x18] sm:$0xff]
        %v2732 = vrot.slane %v2331, 5
        %v2733 = vsel %vm861, %v2732, 0
        %2735 = vmatprep.subr.mxu0 0.0
        %2736 = vmatpush1.msra.mxu0 0.0
        %2737 = vmatprep.subr.mxu0 0.0
        %2738 = vmatpush1.msra.mxu0 0.0
        %2739 = vmatprep.subr.mxu0 0.0
        %2740 = vmatpush1.msra.mxu0 0.0
        %2741 = vmatprep.subr.mxu0 0.0
        %2742 = vmatpush1.msra.mxu0 0.0
        %2743 = vmatprep.subr.mxu0 0.0
        %2744 = vmatpush1.msra.mxu0 0.0
        %2745 = vmatprep.subr.mxu0 0.0
        %2746 = vmatpush1.msra.mxu0 0.0
        %2747 = vmatprep.subr.mxu0 0.0
        %2748 = vmatpush1.msra.mxu0 0.0
        %2749 = vmatprep.subr.mxu0 0.0
        %2750 = vmatpush1.msra.mxu0 0.0
        %2751 = vmatprep.subr.mxu0 0.0
        %2752 = vmatpush1.msra.mxu0 0.0
        %2753 = vmatprep.subr.mxu0 0.0
        %2754 = vmatpush1.msra.mxu0 0.0
        %2755 = vmatprep.subr.mxu0 0.0
        %2756 = vmatpush1.msra.mxu0 0.0
        %2757 = vmatprep.subr.mxu0 0.0
        %2758 = vmatpush1.msra.mxu0 0.0
        %2759 = vmatprep.subr.mxu0 0.0
        %2760 = vmatpush1.msra.mxu0 %v2731
        %2761 = vmatprep.subr.mxu0 0.0
        %2762 = vmatpush1.msra.mxu0 %v2730
        %2763 = vmatprep.subr.mxu0 0.0
        %2764 = vmatpush1.msra.mxu0 %v2729
        %2765 = vmatprep.subr.mxu0 0.0
        %2766 = vmatpush1.msra.mxu0 %v2728
        %2767 = vmatprep.subr.mxu0 0.0
        %2768 = vmatpush2.msra.mxu0 0.0
        %2769 = vmatprep.subr.mxu0 0.0
        %2770 = vmatpush2.msra.mxu0 0.0
        %2771 = vmatprep.subr.mxu0 0.0
        %2772 = vmatpush2.msra.mxu0 0.0
        %2773 = vmatprep.subr.mxu0 0.0
        %2774 = vmatpush2.msra.mxu0 0.0
        %2775 = vmatprep.subr.mxu0 0.0
        %2776 = vmatpush2.msra.mxu0 0.0
        %2777 = vmatprep.subr.mxu0 0.0
        %2778 = vmatpush2.msra.mxu0 0.0
        %2779 = vmatprep.subr.mxu0 0.0
        %2780 = vmatpush2.msra.mxu0 0.0
        %2781 = vmatprep.subr.mxu0 0.0
        %2782 = vmatpush2.msra.mxu0 0.0
        %2783 = vmatprep.subr.mxu0 0.0
        %2784 = vmatpush2.msra.mxu0 0.0
        %2785 = vmatprep.subr.mxu0 0.0
        %2786 = vmatpush2.msra.mxu0 0.0
        %2787 = vmatprep.subr.mxu0 0.0
        %2788 = vmatpush2.msra.mxu0 0.0
        %2789 = vmatprep.subr.mxu0 0.0
        %2790 = vmatpush2.msra.mxu0 0.0
        %2791 = vmatprep.subr.mxu0 0.0
        %2792 = vmatpush2.msra.mxu0 0.0
        %2793 = vmatprep.subr.mxu0 0.0
        %2794 = vmatpush2.msra.mxu0 0.0
        %2795 = vmatprep.subr.mxu0 0.0
        %2796 = vmatpush2.msra.mxu0 0.0
        %2797 = vmatprep.subr.mxu0 0.0
        %2798 = vmatpush2.msra.mxu0 0.0
        %2799 = vmatprep.mubr.f32.mxu0 0.0
        %2800 = vmatmul.mubr.f32.gmra.mxu0 %v2733
        %v2801 = vpop.f32.mrf.mxu0
        %v2802 = vadd.f32 0.0, %v2801
        %v2803 = vpop.f32.mrf.mxu0
        %2804 = vdwg.mxu0
        %v2805 = vadd.f32 %v2726, %v2802
        %s2806 = scalar_lea.vmem %s9, 192
        %v2807 = vld [vmem:[%s2806] sm:$0xff]
        %v2808 = vld [vmem:[%s2806 + $0x8] sm:$0xff]
        %v2809 = vld [vmem:[%s2806 + $0x10] sm:$0xff]
        %v2810 = vld [vmem:[%s2806 + $0x18] sm:$0xff]
        %v2811 = vrot.slane %v2331, 6
        %v2812 = vsel %vm861, %v2811, 0
        %2814 = vmatprep.subr.mxu0 0.0
        %2815 = vmatpush1.msra.mxu0 0.0
        %2816 = vmatprep.subr.mxu0 0.0
        %2817 = vmatpush1.msra.mxu0 0.0
        %2818 = vmatprep.subr.mxu0 0.0
        %2819 = vmatpush1.msra.mxu0 0.0
        %2820 = vmatprep.subr.mxu0 0.0
        %2821 = vmatpush1.msra.mxu0 0.0
        %2822 = vmatprep.subr.mxu0 0.0
        %2823 = vmatpush1.msra.mxu0 0.0
        %2824 = vmatprep.subr.mxu0 0.0
        %2825 = vmatpush1.msra.mxu0 0.0
        %2826 = vmatprep.subr.mxu0 0.0
        %2827 = vmatpush1.msra.mxu0 0.0
        %2828 = vmatprep.subr.mxu0 0.0
        %2829 = vmatpush1.msra.mxu0 0.0
        %2830 = vmatprep.subr.mxu0 0.0
        %2831 = vmatpush1.msra.mxu0 0.0
        %2832 = vmatprep.subr.mxu0 0.0
        %2833 = vmatpush1.msra.mxu0 0.0
        %2834 = vmatprep.subr.mxu0 0.0
        %2835 = vmatpush1.msra.mxu0 0.0
        %2836 = vmatprep.subr.mxu0 0.0
        %2837 = vmatpush1.msra.mxu0 0.0
        %2838 = vmatprep.subr.mxu0 0.0
        %2839 = vmatpush1.msra.mxu0 %v2810
        %2840 = vmatprep.subr.mxu0 0.0
        %2841 = vmatpush1.msra.mxu0 %v2809
        %2842 = vmatprep.subr.mxu0 0.0
        %2843 = vmatpush1.msra.mxu0 %v2808
        %2844 = vmatprep.subr.mxu0 0.0
        %2845 = vmatpush1.msra.mxu0 %v2807
        %2846 = vmatprep.subr.mxu0 0.0
        %2847 = vmatpush2.msra.mxu0 0.0
        %2848 = vmatprep.subr.mxu0 0.0
        %2849 = vmatpush2.msra.mxu0 0.0
        %2850 = vmatprep.subr.mxu0 0.0
        %2851 = vmatpush2.msra.mxu0 0.0
        %2852 = vmatprep.subr.mxu0 0.0
        %2853 = vmatpush2.msra.mxu0 0.0
        %2854 = vmatprep.subr.mxu0 0.0
        %2855 = vmatpush2.msra.mxu0 0.0
        %2856 = vmatprep.subr.mxu0 0.0
        %2857 = vmatpush2.msra.mxu0 0.0
        %2858 = vmatprep.subr.mxu0 0.0
        %2859 = vmatpush2.msra.mxu0 0.0
        %2860 = vmatprep.subr.mxu0 0.0
        %2861 = vmatpush2.msra.mxu0 0.0
        %2862 = vmatprep.subr.mxu0 0.0
        %2863 = vmatpush2.msra.mxu0 0.0
        %2864 = vmatprep.subr.mxu0 0.0
        %2865 = vmatpush2.msra.mxu0 0.0
        %2866 = vmatprep.subr.mxu0 0.0
        %2867 = vmatpush2.msra.mxu0 0.0
        %2868 = vmatprep.subr.mxu0 0.0
        %2869 = vmatpush2.msra.mxu0 0.0
        %2870 = vmatprep.subr.mxu0 0.0
        %2871 = vmatpush2.msra.mxu0 0.0
        %2872 = vmatprep.subr.mxu0 0.0
        %2873 = vmatpush2.msra.mxu0 0.0
        %2874 = vmatprep.subr.mxu0 0.0
        %2875 = vmatpush2.msra.mxu0 0.0
        %2876 = vmatprep.subr.mxu0 0.0
        %2877 = vmatpush2.msra.mxu0 0.0
        %2878 = vmatprep.mubr.f32.mxu0 0.0
        %2879 = vmatmul.mubr.f32.gmra.mxu0 %v2812
        %v2880 = vpop.f32.mrf.mxu0
        %v2881 = vadd.f32 0.0, %v2880
        %v2882 = vpop.f32.mrf.mxu0
        %2883 = vdwg.mxu0
        %v2884 = vadd.f32 %v2805, %v2881
        %s2885 = scalar_lea.vmem %s9, 224
        %v2886 = vld [vmem:[%s2885] sm:$0xff]
        %v2887 = vld [vmem:[%s2885 + $0x8] sm:$0xff]
        %v2888 = vld [vmem:[%s2885 + $0x10] sm:$0xff]
        %v2889 = vld [vmem:[%s2885 + $0x18] sm:$0xff]
        %v2890 = vrot.slane %v2331, 7
        %v2891 = vsel %vm861, %v2890, 0
        %2893 = vmatprep.subr.mxu0 0.0
        %2894 = vmatpush1.msra.mxu0 0.0
        %2895 = vmatprep.subr.mxu0 0.0
        %2896 = vmatpush1.msra.mxu0 0.0
        %2897 = vmatprep.subr.mxu0 0.0
        %2898 = vmatpush1.msra.mxu0 0.0
        %2899 = vmatprep.subr.mxu0 0.0
        %2900 = vmatpush1.msra.mxu0 0.0
        %2901 = vmatprep.subr.mxu0 0.0
        %2902 = vmatpush1.msra.mxu0 0.0
        %2903 = vmatprep.subr.mxu0 0.0
        %2904 = vmatpush1.msra.mxu0 0.0
        %2905 = vmatprep.subr.mxu0 0.0
        %2906 = vmatpush1.msra.mxu0 0.0
        %2907 = vmatprep.subr.mxu0 0.0
        %2908 = vmatpush1.msra.mxu0 0.0
        %2909 = vmatprep.subr.mxu0 0.0
        %2910 = vmatpush1.msra.mxu0 0.0
        %2911 = vmatprep.subr.mxu0 0.0
        %2912 = vmatpush1.msra.mxu0 0.0
        %2913 = vmatprep.subr.mxu0 0.0
        %2914 = vmatpush1.msra.mxu0 0.0
        %2915 = vmatprep.subr.mxu0 0.0
        %2916 = vmatpush1.msra.mxu0 0.0
        %2917 = vmatprep.subr.mxu0 0.0
        %2918 = vmatpush1.msra.mxu0 %v2889
        %2919 = vmatprep.subr.mxu0 0.0
        %2920 = vmatpush1.msra.mxu0 %v2888
        %2921 = vmatprep.subr.mxu0 0.0
        %2922 = vmatpush1.msra.mxu0 %v2887
        %2923 = vmatprep.subr.mxu0 0.0
        %2924 = vmatpush1.msra.mxu0 %v2886
        %2925 = vmatprep.subr.mxu0 0.0
        %2926 = vmatpush2.msra.mxu0 0.0
        %2927 = vmatprep.subr.mxu0 0.0
        %2928 = vmatpush2.msra.mxu0 0.0
        %2929 = vmatprep.subr.mxu0 0.0
        %2930 = vmatpush2.msra.mxu0 0.0
        %2931 = vmatprep.subr.mxu0 0.0
        %2932 = vmatpush2.msra.mxu0 0.0
        %2933 = vmatprep.subr.mxu0 0.0
        %2934 = vmatpush2.msra.mxu0 0.0
        %2935 = vmatprep.subr.mxu0 0.0
        %2936 = vmatpush2.msra.mxu0 0.0
        %2937 = vmatprep.subr.mxu0 0.0
        %2938 = vmatpush2.msra.mxu0 0.0
        %2939 = vmatprep.subr.mxu0 0.0
        %2940 = vmatpush2.msra.mxu0 0.0
        %2941 = vmatprep.subr.mxu0 0.0
        %2942 = vmatpush2.msra.mxu0 0.0
        %2943 = vmatprep.subr.mxu0 0.0
        %2944 = vmatpush2.msra.mxu0 0.0
        %2945 = vmatprep.subr.mxu0 0.0
        %2946 = vmatpush2.msra.mxu0 0.0
        %2947 = vmatprep.subr.mxu0 0.0
        %2948 = vmatpush2.msra.mxu0 0.0
        %2949 = vmatprep.subr.mxu0 0.0
        %2950 = vmatpush2.msra.mxu0 0.0
        %2951 = vmatprep.subr.mxu0 0.0
        %2952 = vmatpush2.msra.mxu0 0.0
        %2953 = vmatprep.subr.mxu0 0.0
        %2954 = vmatpush2.msra.mxu0 0.0
        %2955 = vmatprep.subr.mxu0 0.0
        %2956 = vmatpush2.msra.mxu0 0.0
        %2957 = vmatprep.mubr.f32.mxu0 0.0
        %2958 = vmatmul.mubr.f32.gmra.mxu0 %v2891
        %v2959 = vpop.f32.mrf.mxu0
        %v2960 = vadd.f32 0.0, %v2959
        %v2961 = vpop.f32.mrf.mxu0
        %2962 = vdwg.mxu0
        %v2963 = vadd.f32 %v2884, %v2960
        %v2964 = vsub.f32 0.0, %v2963
        %v2965 = vmul.f32 %v2964, 1.442695
        %v2966 = vpow.pop %v2965
        %v2967 = vadd.f32 %v2966, 1.0
        %v2968 = vrcp.pop %v2967
        %v2969 = vmul.f32 1.0, %v2968
        %vm2970 = vcmask 253952
        %2971 = vst.msk [vmem:[%s474] sm:$0x1] %vm2970, %v2969
        %v2972 = vld [vmem:[%s489] sm:$0x1]
        %2974 = vrot.lane.b32.xlu0 %v2972, 16
        %v2975 = vpop.permute.xlu0 %2974
        %v2977 = vmul.f32 %v2969, %v2975
        %2979 = vrot.lane.b32.xlu0 %v2977, 112
        %v2980 = vpop.permute.xlu0 %2979
        %v2982 = vadd.f32 %v2969, %v2980
        %v2983 = vld [vmem:[%s11] sm:$0xff]
        %v2984 = vld [vmem:[%s11 + $0x8] sm:$0xff]
        %v2985 = vld [vmem:[%s11 + $0x10] sm:$0xff]
        %v2986 = vld [vmem:[%s11 + $0x18] sm:$0xff]
        %v2987 = vld [vmem:[%s11 + $0x20] sm:$0xff]
        %v2988 = vld [vmem:[%s11 + $0x28] sm:$0xff]
        %v2989 = vld [vmem:[%s11 + $0x30] sm:$0xff]
        %v2990 = vld [vmem:[%s11 + $0x38] sm:$0xff]
        %v2991 = vld [vmem:[%s11 + $0x40] sm:$0xff]
        %v2992 = vld [vmem:[%s11 + $0x48] sm:$0xff]
        %v2993 = vld [vmem:[%s11 + $0x50] sm:$0xff]
        %v2994 = vld [vmem:[%s11 + $0x58] sm:$0xff]
        %v2995 = vld [vmem:[%s11 + $0x60] sm:$0xff]
        %v2996 = vld [vmem:[%s11 + $0x68] sm:$0xff]
        %v2997 = vld [vmem:[%s11 + $0x70] sm:$0xff]
        %v2998 = vld [vmem:[%s11 + $0x78] sm:$0xff]
        %v2999 = vld [vmem:[%s12] sm:$0xff]
        %v3001 = vlaneseq
        %v3002 = vshrl.u32 %v3001, 7
        %v3003 = vsub.s32 0, %v3002
        %v3004 = vrot.slane %v2999, %v3003
        %v3005 = vlaneseq
        %v3006 = vshrl.u32 %v3005, 7
        %v3007 = vsub.s32 1, %v3006
        %v3008 = vrot.slane %v2999, %v3007
        %v3009 = vlaneseq
        %v3010 = vshrl.u32 %v3009, 7
        %v3011 = vsub.s32 2, %v3010
        %v3012 = vrot.slane %v2999, %v3011
        %v3013 = vlaneseq
        %v3014 = vshrl.u32 %v3013, 7
        %v3015 = vsub.s32 3, %v3014
        %v3016 = vrot.slane %v2999, %v3015
        %v3017 = vlaneseq
        %v3018 = vshrl.u32 %v3017, 7
        %v3019 = vsub.s32 4, %v3018
        %v3020 = vrot.slane %v2999, %v3019
        %v3021 = vlaneseq
        %v3022 = vshrl.u32 %v3021, 7
        %v3023 = vsub.s32 5, %v3022
        %v3024 = vrot.slane %v2999, %v3023
        %v3025 = vlaneseq
        %v3026 = vshrl.u32 %v3025, 7
        %v3027 = vsub.s32 6, %v3026
        %v3028 = vrot.slane %v2999, %v3027
        %v3029 = vlaneseq
        %v3030 = vshrl.u32 %v3029, 7
        %v3031 = vsub.s32 7, %v3030
        %v3032 = vrot.slane %v2999, %v3031
        %vm3041 = vcmask 130048
        %v3043 = vsel %vm3041, %v2982, 0
        %3045 = vmatprep.subr.mxu0 0.0
        %3046 = vmatpush1.msra.mxu0 0.0
        %3047 = vmatprep.subr.mxu0 0.0
        %3048 = vmatpush1.msra.mxu0 0.0
        %3049 = vmatprep.subr.mxu0 0.0
        %3050 = vmatpush1.msra.mxu0 0.0
        %3051 = vmatprep.subr.mxu0 0.0
        %3052 = vmatpush1.msra.mxu0 0.0
        %3053 = vmatprep.subr.mxu0 0.0
        %3054 = vmatpush1.msra.mxu0 0.0
        %3055 = vmatprep.subr.mxu0 0.0
        %3056 = vmatpush1.msra.mxu0 0.0
        %3057 = vmatprep.subr.mxu0 0.0
        %3058 = vmatpush1.msra.mxu0 0.0
        %3059 = vmatprep.subr.mxu0 0.0
        %3060 = vmatpush1.msra.mxu0 0.0
        %3061 = vmatprep.subr.mxu0 0.0
        %3062 = vmatpush1.msra.mxu0 0.0
        %3063 = vmatprep.subr.mxu0 0.0
        %3064 = vmatpush1.msra.mxu0 0.0
        %3065 = vmatprep.subr.mxu0 0.0
        %3066 = vmatpush1.msra.mxu0 0.0
        %3067 = vmatprep.subr.mxu0 0.0
        %3068 = vmatpush1.msra.mxu0 0.0
        %3069 = vmatprep.subr.mxu0 0.0
        %3070 = vmatpush1.msra.mxu0 0.0
        %3071 = vmatprep.subr.mxu0 0.0
        %3072 = vmatpush1.msra.mxu0 0.0
        %3073 = vmatprep.subr.mxu0 %v2992
        %3074 = vmatpush1.msra.mxu0 %v2991
        %3075 = vmatprep.subr.mxu0 %v2984
        %3076 = vmatpush1.msra.mxu0 %v2983
        %3077 = vmatprep.subr.mxu0 0.0
        %3078 = vmatpush2.msra.mxu0 0.0
        %3079 = vmatprep.subr.mxu0 0.0
        %3080 = vmatpush2.msra.mxu0 0.0
        %3081 = vmatprep.subr.mxu0 0.0
        %3082 = vmatpush2.msra.mxu0 0.0
        %3083 = vmatprep.subr.mxu0 0.0
        %3084 = vmatpush2.msra.mxu0 0.0
        %3085 = vmatprep.subr.mxu0 0.0
        %3086 = vmatpush2.msra.mxu0 0.0
        %3087 = vmatprep.subr.mxu0 0.0
        %3088 = vmatpush2.msra.mxu0 0.0
        %3089 = vmatprep.subr.mxu0 0.0
        %3090 = vmatpush2.msra.mxu0 0.0
        %3091 = vmatprep.subr.mxu0 0.0
        %3092 = vmatpush2.msra.mxu0 0.0
        %3093 = vmatprep.subr.mxu0 0.0
        %3094 = vmatpush2.msra.mxu0 0.0
        %3095 = vmatprep.subr.mxu0 0.0
        %3096 = vmatpush2.msra.mxu0 0.0
        %3097 = vmatprep.subr.mxu0 0.0
        %3098 = vmatpush2.msra.mxu0 0.0
        %3099 = vmatprep.subr.mxu0 0.0
        %3100 = vmatpush2.msra.mxu0 0.0
        %3101 = vmatprep.subr.mxu0 0.0
        %3102 = vmatpush2.msra.mxu0 0.0
        %3103 = vmatprep.subr.mxu0 0.0
        %3104 = vmatpush2.msra.mxu0 0.0
        %3105 = vmatprep.subr.mxu0 0.0
        %3106 = vmatpush2.msra.mxu0 0.0
        %3107 = vmatprep.subr.mxu0 0.0
        %3108 = vmatpush2.msra.mxu0 0.0
        %3109 = vmatprep.mubr.f32.mxu0 0.0
        %3110 = vmatmul.mubr.f32.gmra.mxu0 %v3043
        %v3111 = vpop.f32.mrf.mxu0
        %v3112 = vadd.f32 %v3004, %v3111
        %v3113 = vpop.f32.mrf.mxu0
        %v3114 = vadd.f32 %v3008, %v3113
        %3115 = vdwg.mxu0
        %3116 = vmatprep.subr.mxu0 0.0
        %3117 = vmatpush1.msra.mxu0 0.0
        %3118 = vmatprep.subr.mxu0 0.0
        %3119 = vmatpush1.msra.mxu0 0.0
        %3120 = vmatprep.subr.mxu0 0.0
        %3121 = vmatpush1.msra.mxu0 0.0
        %3122 = vmatprep.subr.mxu0 0.0
        %3123 = vmatpush1.msra.mxu0 0.0
        %3124 = vmatprep.subr.mxu0 0.0
        %3125 = vmatpush1.msra.mxu0 0.0
        %3126 = vmatprep.subr.mxu0 0.0
        %3127 = vmatpush1.msra.mxu0 0.0
        %3128 = vmatprep.subr.mxu0 0.0
        %3129 = vmatpush1.msra.mxu0 0.0
        %3130 = vmatprep.subr.mxu0 0.0
        %3131 = vmatpush1.msra.mxu0 0.0
        %3132 = vmatprep.subr.mxu0 0.0
        %3133 = vmatpush1.msra.mxu0 0.0
        %3134 = vmatprep.subr.mxu0 0.0
        %3135 = vmatpush1.msra.mxu0 0.0
        %3136 = vmatprep.subr.mxu0 0.0
        %3137 = vmatpush1.msra.mxu0 0.0
        %3138 = vmatprep.subr.mxu0 0.0
        %3139 = vmatpush1.msra.mxu0 0.0
        %3140 = vmatprep.subr.mxu0 0.0
        %3141 = vmatpush1.msra.mxu0 0.0
        %3142 = vmatprep.subr.mxu0 0.0
        %3143 = vmatpush1.msra.mxu0 0.0
        %3144 = vmatprep.subr.mxu0 %v2994
        %3145 = vmatpush1.msra.mxu0 %v2993
        %3146 = vmatprep.subr.mxu0 %v2986
        %3147 = vmatpush1.msra.mxu0 %v2985
        %3148 = vmatprep.subr.mxu0 0.0
        %3149 = vmatpush2.msra.mxu0 0.0
        %3150 = vmatprep.subr.mxu0 0.0
        %3151 = vmatpush2.msra.mxu0 0.0
        %3152 = vmatprep.subr.mxu0 0.0
        %3153 = vmatpush2.msra.mxu0 0.0
        %3154 = vmatprep.subr.mxu0 0.0
        %3155 = vmatpush2.msra.mxu0 0.0
        %3156 = vmatprep.subr.mxu0 0.0
        %3157 = vmatpush2.msra.mxu0 0.0
        %3158 = vmatprep.subr.mxu0 0.0
        %3159 = vmatpush2.msra.mxu0 0.0
        %3160 = vmatprep.subr.mxu0 0.0
        %3161 = vmatpush2.msra.mxu0 0.0
        %3162 = vmatprep.subr.mxu0 0.0
        %3163 = vmatpush2.msra.mxu0 0.0
        %3164 = vmatprep.subr.mxu0 0.0
        %3165 = vmatpush2.msra.mxu0 0.0
        %3166 = vmatprep.subr.mxu0 0.0
        %3167 = vmatpush2.msra.mxu0 0.0
        %3168 = vmatprep.subr.mxu0 0.0
        %3169 = vmatpush2.msra.mxu0 0.0
        %3170 = vmatprep.subr.mxu0 0.0
        %3171 = vmatpush2.msra.mxu0 0.0
        %3172 = vmatprep.subr.mxu0 0.0
        %3173 = vmatpush2.msra.mxu0 0.0
        %3174 = vmatprep.subr.mxu0 0.0
        %3175 = vmatpush2.msra.mxu0 0.0
        %3176 = vmatprep.subr.mxu0 0.0
        %3177 = vmatpush2.msra.mxu0 0.0
        %3178 = vmatprep.subr.mxu0 0.0
        %3179 = vmatpush2.msra.mxu0 0.0
        %3180 = vmatprep.mubr.f32.mxu0 0.0
        %3181 = vmatmul.mubr.f32.gmra.mxu0 %v3043
        %v3182 = vpop.f32.mrf.mxu0
        %v3183 = vadd.f32 %v3012, %v3182
        %v3184 = vpop.f32.mrf.mxu0
        %v3185 = vadd.f32 %v3016, %v3184
        %3186 = vdwg.mxu0
        %3187 = vmatprep.subr.mxu0 0.0
        %3188 = vmatpush1.msra.mxu0 0.0
        %3189 = vmatprep.subr.mxu0 0.0
        %3190 = vmatpush1.msra.mxu0 0.0
        %3191 = vmatprep.subr.mxu0 0.0
        %3192 = vmatpush1.msra.mxu0 0.0
        %3193 = vmatprep.subr.mxu0 0.0
        %3194 = vmatpush1.msra.mxu0 0.0
        %3195 = vmatprep.subr.mxu0 0.0
        %3196 = vmatpush1.msra.mxu0 0.0
        %3197 = vmatprep.subr.mxu0 0.0
        %3198 = vmatpush1.msra.mxu0 0.0
        %3199 = vmatprep.subr.mxu0 0.0
        %3200 = vmatpush1.msra.mxu0 0.0
        %3201 = vmatprep.subr.mxu0 0.0
        %3202 = vmatpush1.msra.mxu0 0.0
        %3203 = vmatprep.subr.mxu0 0.0
        %3204 = vmatpush1.msra.mxu0 0.0
        %3205 = vmatprep.subr.mxu0 0.0
        %3206 = vmatpush1.msra.mxu0 0.0
        %3207 = vmatprep.subr.mxu0 0.0
        %3208 = vmatpush1.msra.mxu0 0.0
        %3209 = vmatprep.subr.mxu0 0.0
        %3210 = vmatpush1.msra.mxu0 0.0
        %3211 = vmatprep.subr.mxu0 0.0
        %3212 = vmatpush1.msra.mxu0 0.0
        %3213 = vmatprep.subr.mxu0 0.0
        %3214 = vmatpush1.msra.mxu0 0.0
        %3215 = vmatprep.subr.mxu0 %v2996
        %3216 = vmatpush1.msra.mxu0 %v2995
        %3217 = vmatprep.subr.mxu0 %v2988
        %3218 = vmatpush1.msra.mxu0 %v2987
        %3219 = vmatprep.subr.mxu0 0.0
        %3220 = vmatpush2.msra.mxu0 0.0
        %3221 = vmatprep.subr.mxu0 0.0
        %3222 = vmatpush2.msra.mxu0 0.0
        %3223 = vmatprep.subr.mxu0 0.0
        %3224 = vmatpush2.msra.mxu0 0.0
        %3225 = vmatprep.subr.mxu0 0.0
        %3226 = vmatpush2.msra.mxu0 0.0
        %3227 = vmatprep.subr.mxu0 0.0
        %3228 = vmatpush2.msra.mxu0 0.0
        %3229 = vmatprep.subr.mxu0 0.0
        %3230 = vmatpush2.msra.mxu0 0.0
        %3231 = vmatprep.subr.mxu0 0.0
        %3232 = vmatpush2.msra.mxu0 0.0
        %3233 = vmatprep.subr.mxu0 0.0
        %3234 = vmatpush2.msra.mxu0 0.0
        %3235 = vmatprep.subr.mxu0 0.0
        %3236 = vmatpush2.msra.mxu0 0.0
        %3237 = vmatprep.subr.mxu0 0.0
        %3238 = vmatpush2.msra.mxu0 0.0
        %3239 = vmatprep.subr.mxu0 0.0
        %3240 = vmatpush2.msra.mxu0 0.0
        %3241 = vmatprep.subr.mxu0 0.0
        %3242 = vmatpush2.msra.mxu0 0.0
        %3243 = vmatprep.subr.mxu0 0.0
        %3244 = vmatpush2.msra.mxu0 0.0
        %3245 = vmatprep.subr.mxu0 0.0
        %3246 = vmatpush2.msra.mxu0 0.0
        %3247 = vmatprep.subr.mxu0 0.0
        %3248 = vmatpush2.msra.mxu0 0.0
        %3249 = vmatprep.subr.mxu0 0.0
        %3250 = vmatpush2.msra.mxu0 0.0
        %3251 = vmatprep.mubr.f32.mxu0 0.0
        %3252 = vmatmul.mubr.f32.gmra.mxu0 %v3043
        %v3253 = vpop.f32.mrf.mxu0
        %v3254 = vadd.f32 %v3020, %v3253
        %v3255 = vpop.f32.mrf.mxu0
        %v3256 = vadd.f32 %v3024, %v3255
        %3257 = vdwg.mxu0
        %3258 = vmatprep.subr.mxu0 0.0
        %3259 = vmatpush1.msra.mxu0 0.0
        %3260 = vmatprep.subr.mxu0 0.0
        %3261 = vmatpush1.msra.mxu0 0.0
        %3262 = vmatprep.subr.mxu0 0.0
        %3263 = vmatpush1.msra.mxu0 0.0
        %3264 = vmatprep.subr.mxu0 0.0
        %3265 = vmatpush1.msra.mxu0 0.0
        %3266 = vmatprep.subr.mxu0 0.0
        %3267 = vmatpush1.msra.mxu0 0.0
        %3268 = vmatprep.subr.mxu0 0.0
        %3269 = vmatpush1.msra.mxu0 0.0
        %3270 = vmatprep.subr.mxu0 0.0
        %3271 = vmatpush1.msra.mxu0 0.0
        %3272 = vmatprep.subr.mxu0 0.0
        %3273 = vmatpush1.msra.mxu0 0.0
        %3274 = vmatprep.subr.mxu0 0.0
        %3275 = vmatpush1.msra.mxu0 0.0
        %3276 = vmatprep.subr.mxu0 0.0
        %3277 = vmatpush1.msra.mxu0 0.0
        %3278 = vmatprep.subr.mxu0 0.0
        %3279 = vmatpush1.msra.mxu0 0.0
        %3280 = vmatprep.subr.mxu0 0.0
        %3281 = vmatpush1.msra.mxu0 0.0
        %3282 = vmatprep.subr.mxu0 0.0
        %3283 = vmatpush1.msra.mxu0 0.0
        %3284 = vmatprep.subr.mxu0 0.0
        %3285 = vmatpush1.msra.mxu0 0.0
        %3286 = vmatprep.subr.mxu0 %v2998
        %3287 = vmatpush1.msra.mxu0 %v2997
        %3288 = vmatprep.subr.mxu0 %v2990
        %3289 = vmatpush1.msra.mxu0 %v2989
        %3290 = vmatprep.subr.mxu0 0.0
        %3291 = vmatpush2.msra.mxu0 0.0
        %3292 = vmatprep.subr.mxu0 0.0
        %3293 = vmatpush2.msra.mxu0 0.0
        %3294 = vmatprep.subr.mxu0 0.0
        %3295 = vmatpush2.msra.mxu0 0.0
        %3296 = vmatprep.subr.mxu0 0.0
        %3297 = vmatpush2.msra.mxu0 0.0
        %3298 = vmatprep.subr.mxu0 0.0
        %3299 = vmatpush2.msra.mxu0 0.0
        %3300 = vmatprep.subr.mxu0 0.0
        %3301 = vmatpush2.msra.mxu0 0.0
        %3302 = vmatprep.subr.mxu0 0.0
        %3303 = vmatpush2.msra.mxu0 0.0
        %3304 = vmatprep.subr.mxu0 0.0
        %3305 = vmatpush2.msra.mxu0 0.0
        %3306 = vmatprep.subr.mxu0 0.0
        %3307 = vmatpush2.msra.mxu0 0.0
        %3308 = vmatprep.subr.mxu0 0.0
        %3309 = vmatpush2.msra.mxu0 0.0
        %3310 = vmatprep.subr.mxu0 0.0
        %3311 = vmatpush2.msra.mxu0 0.0
        %3312 = vmatprep.subr.mxu0 0.0
        %3313 = vmatpush2.msra.mxu0 0.0
        %3314 = vmatprep.subr.mxu0 0.0
        %3315 = vmatpush2.msra.mxu0 0.0
        %3316 = vmatprep.subr.mxu0 0.0
        %3317 = vmatpush2.msra.mxu0 0.0
        %3318 = vmatprep.subr.mxu0 0.0
        %3319 = vmatpush2.msra.mxu0 0.0
        %3320 = vmatprep.subr.mxu0 0.0
        %3321 = vmatpush2.msra.mxu0 0.0
        %3322 = vmatprep.mubr.f32.mxu0 0.0
        %3323 = vmatmul.mubr.f32.gmra.mxu0 %v3043
        %v3324 = vpop.f32.mrf.mxu0
        %v3325 = vadd.f32 %v3028, %v3324
        %v3326 = vpop.f32.mrf.mxu0
        %v3327 = vadd.f32 %v3032, %v3326
        %3328 = vdwg.mxu0
        %vm3329 = vcmp.ge.f32.partialorder %v3112, 0.0
        %vm3330 = vcmp.ge.f32.partialorder %v3114, 0.0
        %vm3331 = vcmp.ge.f32.partialorder %v3183, 0.0
        %vm3332 = vcmp.ge.f32.partialorder %v3185, 0.0
        %vm3333 = vcmp.ge.f32.partialorder %v3254, 0.0
        %vm3334 = vcmp.ge.f32.partialorder %v3256, 0.0
        %vm3335 = vcmp.ge.f32.partialorder %v3325, 0.0
        %vm3336 = vcmp.ge.f32.partialorder %v3327, 0.0
        %v3337 = vmul.f32 %v3112, 0.01
        %v3338 = vmul.f32 %v3114, 0.01
        %v3339 = vmul.f32 %v3183, 0.01
        %v3340 = vmul.f32 %v3185, 0.01
        %v3341 = vmul.f32 %v3254, 0.01
        %v3342 = vmul.f32 %v3256, 0.01
        %v3343 = vmul.f32 %v3325, 0.01
        %v3344 = vmul.f32 %v3327, 0.01
        %v3345 = vsel %vm3329, %v3112, %v3337
        %v3346 = vsel %vm3330, %v3114, %v3338
        %v3347 = vsel %vm3331, %v3183, %v3339
        %v3348 = vsel %vm3332, %v3185, %v3340
        %v3349 = vsel %vm3333, %v3254, %v3341
        %v3350 = vsel %vm3334, %v3256, %v3342
        %v3351 = vsel %vm3335, %v3325, %v3343
        %v3352 = vsel %vm3336, %v3327, %v3344
        %v3361 = vcombine.low %v3345, %v3346
        %v3362 = vcombine.low %v3347, %v3348
        %v3363 = vcombine.low %v3349, %v3350
        %v3364 = vcombine.low %v3351, %v3352
        %v3366 = vunpack.c.l.s4 1966171168
        %v3367 = vunpack.c.0.s8 %v3366
        %v3368 = vlaneseq
        %v3369 = vshrl.u32 %v3368, 7
        %v3370 = vsub.s32 %v3367, %v3369
        %v3371 = vrot.slane %v3361, %v3370
        %v3373 = vunpack.c.l.s4 1966171168
        %v3374 = vunpack.c.0.s8 %v3373
        %v3375 = vlaneseq
        %v3376 = vshrl.u32 %v3375, 7
        %v3377 = vsub.s32 %v3374, %v3376
        %v3378 = vrot.slane %v3362, %v3377
        %v3380 = vunpack.c.l.s4 1966171168
        %v3381 = vunpack.c.0.s8 %v3380
        %v3382 = vlaneseq
        %v3383 = vshrl.u32 %v3382, 7
        %v3384 = vsub.s32 %v3381, %v3383
        %v3385 = vrot.slane %v3363, %v3384
        %v3387 = vunpack.c.l.s4 1966171168
        %v3388 = vunpack.c.0.s8 %v3387
        %v3389 = vlaneseq
        %v3390 = vshrl.u32 %v3389, 7
        %v3391 = vsub.s32 %v3388, %v3390
        %v3392 = vrot.slane %v3364, %v3391
        %v3393 = vcombine.low %v3371, %v3378
        %v3394 = vcombine.low %v3385, %v3392
        %v3396 = vunpack.c.l.s4 1966171168
        %v3397 = vunpack.c.0.s8 %v3396
        %v3398 = vlaneseq
        %v3399 = vshrl.u32 %v3398, 7
        %v3400 = vsub.s32 %v3397, %v3399
        %v3401 = vrot.slane %v3393, %v3400
        %v3403 = vunpack.c.l.s4 1966171168
        %v3404 = vunpack.c.0.s8 %v3403
        %v3405 = vlaneseq
        %v3406 = vshrl.u32 %v3405, 7
        %v3407 = vsub.s32 %v3404, %v3406
        %v3408 = vrot.slane %v3394, %v3407
        %v3409 = vcombine.low %v3401, %v3408
        %3411 = vst [vmem:[%s481] sm:$0xff] %v3409
        %s3412 = sand.u32 %s323, 1
        %s3413 = scalar_lea.sflag [#allocation3], %s3412
        %s3414 = sand.u32 %s323, 1
        %s3415 = scalar_lea.vmem [#allocation2], %s3414
        %s3416 = sand.u32 %s349, 1
        %s3417 = scalar_lea.sflag [#allocation5], %s3416
        %s3418 = sand.u32 %s349, 1
        %s3419 = smul.addr %s3418, 8
        %s3420 = scalar_lea.vmem [#allocation4], %s3419
        // Predicated region
        $region73: #{tpu_custom_call.1} parent=71 // pred_check
          %p3421 = pneg %p333
        $region74: #{tpu_custom_call.1} parent=71 // pred_check_branch
          %3423 = sbr.rel (%p3421) target = $region76
        $region75: #{tpu_custom_call.1} parent=71 // pred_region
          %s3425 = ssub.s32 16, 16
          %3426 = vsyncadd %s3413, %s3425
          %s3427 = smul.addr %s32, 16
          %s3428 = scalar_lea.hbm %s13, %s3427
          %s3430 = sshll.u32 %s3415, 4
          %s3431 = int_to_ptr.vmem [resolvable:$true] %s3430
          %3433 = dma.vmem_to_hbm [thread:$0]  %s3431, 16, %s3428, %s3413
        $region76: #{tpu_custom_call.1} parent=71 // pred_fallthru
          _
        // Predicated region
        $region77: #{tpu_custom_call.1} parent=71 // pred_check
          %p3434 = pneg %p359
        $region78: #{tpu_custom_call.1} parent=71 // pred_check_branch
          %3436 = sbr.rel (%p3434) target = $region80
        $region79: #{tpu_custom_call.1} parent=71 // pred_region
          %s3438 = ssub.s32 128, 128
          %3439 = vsyncadd %s3417, %s3438
          %s3440 = smul.addr %s32, 8
          %s3441 = smul.addr %s3440, 16
          %s3442 = scalar_lea.hbm %s14, %s3441
          %s3444 = sshll.u32 %s3420, 4
          %s3445 = int_to_ptr.vmem [resolvable:$true] %s3444
          %3447 = dma.vmem_to_hbm [thread:$0]  %s3445, 128, %s3442, %s3417
        $region80: #{tpu_custom_call.1} parent=71 // pred_fallthru
          _
      $region72: #{tpu_custom_call.1} parent=5 // pred_fallthru
        _
      %p3448 = scmp.le.s32.totalorder 2, %s27
      // Predicated region
      $region81: #{tpu_custom_call.1} parent=5 // pred_check
        %p3449 = pneg %p3448
      $region82: #{tpu_custom_call.1} parent=5 // pred_check_branch
        %3451 = sbr.rel (%p3449) target = $region84
      $region83: #{tpu_custom_call.1} parent=5 // pred_region
        %s3452 = ssub.s32 %s27, 2
        // Predicated region
        $region85: #{tpu_custom_call.1} parent=83 // pred_check
          %p3453 = pneg %p339
        $region86: #{tpu_custom_call.1} parent=83 // pred_check_branch
          %3455 = sbr.rel (%p3453) target = $region88
        $region87: #{tpu_custom_call.1} parent=83 // pred_region
          %s3456 = sand.u32 %s324, 1
          %s3457 = scalar_lea.sflag [#allocation3], %s3456
          %s3458 = sand.u32 %s324, 1
          %s3459 = scalar_lea.vmem [#allocation2], %s3458
          %3460 = dma.done %s3457, 16
        $region88: #{tpu_custom_call.1} parent=83 // pred_fallthru
          _
        // Predicated region
        $region89: #{tpu_custom_call.1} parent=83 // pred_check
          %p3461 = pneg %p365
        $region90: #{tpu_custom_call.1} parent=83 // pred_check_branch
          %3463 = sbr.rel (%p3461) target = $region92
        $region91: #{tpu_custom_call.1} parent=83 // pred_region
          %s3464 = sand.u32 %s350, 1
          %s3465 = scalar_lea.sflag [#allocation5], %s3464
          %s3466 = sand.u32 %s350, 1
          %s3467 = smul.addr %s3466, 8
          %s3468 = scalar_lea.vmem [#allocation4], %s3467
          %3469 = dma.done %s3465, 128
        $region92: #{tpu_custom_call.1} parent=83 // pred_fallthru
          _
      $region84: #{tpu_custom_call.1} parent=5 // pred_fallthru
        _
    $region6: #{tpu_custom_call.1} parent=1 // loop_footer
      %s31 = sadd.s32 1, %s27
    $region7: #{tpu_custom_call.1} parent=1 // loop_footer_branch
      %26 = sbr.rel target = $region3
    $region8: #{tpu_custom_call.1} parent=1 // loop_exit
      _
    %3470 = vsyncpa [#allocation3], 1
    %s3471 = scalar_lea.sflag [#allocation3], 1
    %3472 = vsyncpa %s3471, 1
    %3473 = vsyncpa [#allocation5], 1
    %s3474 = scalar_lea.sflag [#allocation5], 1
    %3475 = vsyncpa %s3474, 1

</llo_original>
